<compile_context>
chip_gen: v7x
topology: tpu7x:2x2x1
jax: 0.10.0
libtpu: 0.0.40
codegen_flags: <defaults>
</compile_context>

<pallas_src>
import math

import jax
import jax.numpy as jnp
from jax.experimental import pallas as pl
from jax.experimental.pallas import tpu as pltpu  # noqa: F401  (TPU backend assumed)

# ---------------- small, shape-consistent config (ViT-style, scaled down) ----------
BATCH        = 2
NUM_CHANNELS = 4            # RGBD input, as in TomatoViT
IMG          = 16
PATCH        = 8
HIDDEN       = 32
NUM_HEADS    = 4
HEAD_DIM     = HIDDEN // NUM_HEADS
NUM_LAYERS   = 2
INTERMEDIATE = 64
NUM_TRAITS   = 5
NUM_PATCHES  = (IMG // PATCH) ** 2
SEQ          = NUM_PATCHES + 1          # CLS token + patches (= 5)
SEQ_PAD      = 8                        # padded to one sublane tile per image
CPP          = NUM_CHANNELS * PATCH * PATCH
VIT_LN_EPS   = 1e-12                    # ViTConfig.layer_norm_eps default
HEAD_LN_EPS  = 1e-5                     # nn.LayerNorm default eps


# ------------------------------- in-kernel helpers ---------------------------------
def _layer_norm(x, gamma, beta, eps):
    mu = jnp.mean(x, axis=-1, keepdims=True)
    var = jnp.mean(jnp.square(x - mu), axis=-1, keepdims=True)
    return (x - mu) * jax.lax.rsqrt(var + eps) * gamma + beta


def _gelu_exact(x):
    # HF ViT uses exact (erf-based) GELU.
    return 0.5 * x * (1.0 + jax.lax.erf(x * (1.0 / math.sqrt(2.0))))


# --------------------------- the single fused forward kernel -----------------------
def _fused_kernel(patches_ref,            # (R, CPP) f32; R=B*SEQ_PAD, CLS/pad rows = 0
                  patch_w_ref,            # (CPP, H)   bf16
                  embed_ref,              # (R, H)     f32  (cls+pos / patch_b+pos, tiled)
                  kmask_ref,              # (1, SEQ_PAD) f32: 0 real keys, -1e30 pad keys
                  ln_ref,                 # (L, 4, H)  f32  = [ln1_g, ln1_b, ln2_g, ln2_b]
                  wqkv_ref, bqkv_ref,     # (L, H, 3H) bf16, (L, 1, 3H) f32
                  wo_ref, bo_ref,         # (L, H, H)  bf16, (L, 1, H)  f32
                  w1_ref, b1_ref,         # (L, H, I)  bf16, (L, 1, I)  f32
                  w2_ref, b2_ref,         # (L, I, H)  bf16, (L, 1, H)  f32
                  final_ln_ref,           # (4, H) f32 = [vit_g, vit_b, head_g, head_b]
                  fc_w_ref, fc_b_ref,     # (H, T), (1, T) f32
                  o_ref):                 # (R, T) f32
    R = patches_ref.shape[0]
    B = R // SEQ_PAD
    H, HD, NH = HIDDEN, HEAD_DIM, NUM_HEADS
    f32, bf16 = jnp.float32, jnp.bfloat16
    scale = 1.0 / math.sqrt(HEAD_DIM)
    kmask = kmask_ref[...]                                     # (1, SEQ_PAD)

    # ---- patch embedding + CLS token + pos embeddings: one M=R bf16 dot + one add ----
    x = (jnp.dot(patches_ref[...].astype(bf16), patch_w_ref[...],
                 preferred_element_type=f32) + embed_ref[...])               # (R, H)

    for l in range(NUM_LAYERS):            # L=2: keep the static unroll (stacked weights)
        lnp = ln_ref[l]                    # (4, H)

        # -------------- pre-norm MHSA: one packed QKV matmul with M = R --------------
        h = _layer_norm(x, lnp[0:1, :], lnp[1:2, :], VIT_LN_EPS)
        qkv = (jnp.dot(h.astype(bf16), wqkv_ref[l], preferred_element_type=f32)
               + bqkv_ref[l])                                                # (R, 3H)

        # Phase 0: all per-(image, head) Q/K/V slices up front (off the serial chain).
        qkvb = [qkv[b * SEQ_PAD:(b + 1) * SEQ_PAD, :] for b in range(B)]     # aligned rows
        q = [[qkvb[b][:, n * HD:(n + 1) * HD]
              for n in range(NH)] for b in range(B)]
        k = [[qkvb[b][:, H + n * HD:H + (n + 1) * HD]
              for n in range(NH)] for b in range(B)]
        v = [[qkvb[b][:, 2 * H + n * HD:2 * H + (n + 1) * HD]
              for n in range(NH)] for b in range(B)]

        # Phase 1: all score matmuls back-to-back (independent MXU pushes -> ILP).
        scores = [[jax.lax.dot_general(q[b][n], k[b][n], (((1,), (1,)), ((), ())),
                                       preferred_element_type=f32) * scale + kmask
                   for n in range(NH)] for b in range(B)]                    # (S, S)
        # Phase 2: all softmaxes (padding keys masked; EUP exp + approx reciprocal).
        expd = [[jnp.exp(s - jnp.max(s, axis=-1, keepdims=True)) for s in sb]
                for sb in scores]
        probs = [[e * pl.reciprocal(jnp.sum(e, axis=-1, keepdims=True), approx=True)
                  for e in eb] for eb in expd]
        # Phase 3: all context matmuls.
        ctx = [[jnp.dot(probs[b][n], v[b][n], preferred_element_type=f32)
                for n in range(NH)] for b in range(B)]                       # (S, HD)
        # Phase 4: lane-concat heads per image, sublane-concat images (aligned at 8),
        # then ONE (R,H)x(H,H) output projection.
        ctx_cat = jnp.concatenate(
            [jnp.concatenate(ctx[b], axis=-1) for b in range(B)], axis=0)    # (R, H)
        x = x + jnp.dot(ctx_cat.astype(bf16), wo_ref[l],
                        preferred_element_type=f32) + bo_ref[l]              # residual 1

        # ---------------------------------- pre-norm MLP ----------------------------
        h2 = _layer_norm(x, lnp[2:3, :], lnp[3:4, :], VIT_LN_EPS)
        m = _gelu_exact(jnp.dot(h2.astype(bf16), w1_ref[l],
                                preferred_element_type=f32) + b1_ref[l])
        x = x + jnp.dot(m.astype(bf16), w2_ref[l],
                        preferred_element_type=f32) + b2_ref[l]              # residual 2

    # ---- final ViT LayerNorm + head LayerNorm + Linear on all rows (per-row ops; the
    #      CLS rows are sliced outside, which is mathematically identical for CLS) ----
    fl = final_ln_ref[...]
    y = _layer_norm(x, fl[0:1, :], fl[1:2, :], VIT_LN_EPS)     # ViTModel.layernorm
    y = _layer_norm(y, fl[2:3, :], fl[3:4, :], HEAD_LN_EPS)    # TomatoViT.layer_norm
    o_ref[...] = (jnp.dot(y, fc_w_ref[...], preferred_element_type=f32)
                  + fc_b_ref[...])


def fused_forward(patches_flat, embed_tiled, kmask, kp):
    R = patches_flat.shape[0]
    # Single program (no grid): all operands fit VMEM as full-array blocks, every
    # matmul sees M = R = B*SEQ_PAD rows, and there is no serial grid overhead.
    return pl.pallas_call(
        _fused_kernel,
        out_shape=jax.ShapeDtypeStruct((R, NUM_TRAITS), jnp.float32),
    )(patches_flat, kp["patch_w"], embed_tiled, kmask, kp["ln"],
      kp["wqkv"], kp["bqkv"], kp["wo"], kp["bo"],
      kp["w1"], kp["b1"], kp["w2"], kp["b2"],
      kp["final_ln"], kp["fc_w"], kp["fc_b"])


# --------------------------- deterministic parameter init --------------------------
def init_params(key):
    def nrm(k, shape, scale=0.02):
        return scale * jax.random.normal(k, shape, dtype=jnp.float32)

    keys = jax.random.split(key, 4 + NUM_LAYERS)
    params = {
        "patch_w": nrm(keys[0], (CPP, HIDDEN)),
        "patch_b": jnp.zeros((1, HIDDEN), jnp.float32),
        "cls_token": nrm(keys[1], (1, 1, HIDDEN)),
        "pos_emb": nrm(keys[2], (1, SEQ, HIDDEN)),
        "vit_ln_g": jnp.ones((1, HIDDEN), jnp.float32),
        "vit_ln_b": jnp.zeros((1, HIDDEN), jnp.float32),
        "head_ln_g": jnp.ones((1, HIDDEN), jnp.float32),
        "head_ln_b": jnp.zeros((1, HIDDEN), jnp.float32),
        "fc_w": nrm(keys[3], (HIDDEN, NUM_TRAITS)),
        "fc_b": jnp.zeros((1, NUM_TRAITS), jnp.float32),
    }
    layers = []
    for l in range(NUM_LAYERS):
        lk = jax.random.split(keys[4 + l], 6)
        layers.append({
            "ln1_g": jnp.ones((1, HIDDEN), jnp.float32),
            "ln1_b": jnp.zeros((1, HIDDEN), jnp.float32),
            "wq": nrm(lk[0], (HIDDEN, HIDDEN)), "bq": jnp.zeros((1, HIDDEN), jnp.float32),
            "wk": nrm(lk[1], (HIDDEN, HIDDEN)), "bk": jnp.zeros((1, HIDDEN), jnp.float32),
            "wv": nrm(lk[2], (HIDDEN, HIDDEN)), "bv": jnp.zeros((1, HIDDEN), jnp.float32),
            "wo": nrm(lk[3], (HIDDEN, HIDDEN)), "bo": jnp.zeros((1, HIDDEN), jnp.float32),
            "ln2_g": jnp.ones((1, HIDDEN), jnp.float32),
            "ln2_b": jnp.zeros((1, HIDDEN), jnp.float32),
            "w1": nrm(lk[4], (HIDDEN, INTERMEDIATE)),
            "b1": jnp.zeros((1, INTERMEDIATE), jnp.float32),
            "w2": nrm(lk[5], (INTERMEDIATE, HIDDEN)),
            "b2": jnp.zeros((1, HIDDEN), jnp.float32),
        })
    params["layers"] = layers
    return params


def pack_params(p):
    """Pack/stack the logical (PyTorch-layout) params into the fused-kernel layout."""
    bf = jnp.bfloat16
    # CLS token, patch bias and position embeddings folded into one additive table,
    # padded to SEQ_PAD rows (padding rows are zero; they are masked in attention).
    embed_add = jnp.concatenate(
        [p["cls_token"].reshape(1, HIDDEN) + p["pos_emb"][0, 0:1, :],
         p["patch_b"] + p["pos_emb"][0, 1:, :],
         jnp.zeros((SEQ_PAD - SEQ, HIDDEN), jnp.float32)],
        axis=0)                                               # (SEQ_PAD, H)

    stack = lambda f: jnp.stack([f(lp) for lp in p["layers"]], axis=0)
    return {
        "patch_w": p["patch_w"].astype(bf),
        "embed_add": embed_add,
        "ln": stack(lambda lp: jnp.concatenate(
            [lp["ln1_g"], lp["ln1_b"], lp["ln2_g"], lp["ln2_b"]], axis=0)),   # (L,4,H)
        "wqkv": stack(lambda lp: jnp.concatenate(
            [lp["wq"], lp["wk"], lp["wv"]], axis=1)).astype(bf),               # (L,H,3H)
        "bqkv": stack(lambda lp: jnp.concatenate(
            [lp["bq"], lp["bk"], lp["bv"]], axis=1)),                          # (L,1,3H)
        "wo": stack(lambda lp: lp["wo"]).astype(bf),                           # (L,H,H)
        "bo": stack(lambda lp: lp["bo"]),
        "w1": stack(lambda lp: lp["w1"]).astype(bf),
        "b1": stack(lambda lp: lp["b1"]),
        "w2": stack(lambda lp: lp["w2"]).astype(bf),
        "b2": stack(lambda lp: lp["b2"]),
        "final_ln": jnp.concatenate(
            [p["vit_ln_g"], p["vit_ln_b"], p["head_ln_g"], p["head_ln_b"]], axis=0),
        "fc_w": p["fc_w"], "fc_b": p["fc_b"],
    }


# ----------------------------------- forward ---------------------------------------
def tomato_vit_forward(params, x):
    B, C, Hi, Wi = x.shape
    nh, nw = Hi // PATCH, Wi // PATCH
    kp = pack_params(params)

    # Conv2d(patch, stride=patch) == patch extraction + matmul; the matmul lives inside
    # the fused kernel.  Each image is padded to SEQ_PAD=8 rows (row 0 = CLS slot,
    # trailing rows = padding) and the batch is folded into the row dimension so all
    # in-kernel matmuls run with M = B*SEQ_PAD.
    patches = x.reshape(B, C, nh, PATCH, nw, PATCH)
    patches = patches.transpose(0, 2, 4, 1, 3, 5).reshape(B, nh * nw, CPP)
    patches_pad = jnp.concatenate(
        [jnp.zeros((B, 1, CPP), jnp.float32),                              # CLS slot
         patches,
         jnp.zeros((B, SEQ_PAD - 1 - nh * nw, CPP), jnp.float32)],         # seq padding
        axis=1)                                                            # (B, SEQ_PAD, CPP)
    patches_flat = patches_pad.reshape(B * SEQ_PAD, CPP)

    embed_tiled = jnp.tile(kp["embed_add"], (B, 1))                        # (B*SEQ_PAD, H)
    kmask = jnp.where(jnp.arange(SEQ_PAD) < SEQ, 0.0, -1e30)
    kmask = kmask.astype(jnp.float32).reshape(1, SEQ_PAD)                  # pad-key mask

    out = fused_forward(patches_flat, embed_tiled, kmask, kp)              # (B*SEQ_PAD, T)
    return out.reshape(B, SEQ_PAD, NUM_TRAITS)[:, 0, :]                    # CLS rows


if __name__ == "__main__":
    key = jax.random.PRNGKey(0)
    pkey, xkey = jax.random.split(key)
    params = init_params(pkey)
    x = jax.random.normal(xkey, (BATCH, NUM_CHANNELS, IMG, IMG), dtype=jnp.float32)

    out = jax.jit(tomato_vit_forward)(params, x)
    out = jax.block_until_ready(out)

    assert out.shape == (BATCH, NUM_TRAITS), out.shape
    assert bool(jnp.all(jnp.isfinite(out)))
    print("KERNEL_OK")
</pallas_src>

<mosaic_0001>
module attributes {stable_mosaic.version = 11 : i64} {
  func.func @_fused_kernel(%arg0: memref<16x256xf32, #tpu.memory_space<vmem>>, %arg1: memref<256x32xbf16, #tpu.memory_space<vmem>>, %arg2: memref<16x32xf32, #tpu.memory_space<vmem>>, %arg3: memref<1x8xf32, #tpu.memory_space<vmem>>, %arg4: memref<2x4x32xf32, #tpu.memory_space<vmem>>, %arg5: memref<2x32x96xbf16, #tpu.memory_space<vmem>>, %arg6: memref<2x1x96xf32, #tpu.memory_space<vmem>>, %arg7: memref<2x32x32xbf16, #tpu.memory_space<vmem>>, %arg8: memref<2x1x32xf32, #tpu.memory_space<vmem>>, %arg9: memref<2x32x64xbf16, #tpu.memory_space<vmem>>, %arg10: memref<2x1x64xf32, #tpu.memory_space<vmem>>, %arg11: memref<2x64x32xbf16, #tpu.memory_space<vmem>>, %arg12: memref<2x1x32xf32, #tpu.memory_space<vmem>>, %arg13: memref<4x32xf32, #tpu.memory_space<vmem>>, %arg14: memref<32x5xf32, #tpu.memory_space<vmem>>, %arg15: memref<1x5xf32, #tpu.memory_space<vmem>>, %arg16: memref<16x5xf32, #tpu.memory_space<vmem>>) attributes {dimension_semantics = [], scalar_prefetch = 0 : i64, scratch_operands = 0 : i64, tpu.core_type = #tpu.core_type<tc>} {
    %c0 = arith.constant 0 : index
    %c0_0 = arith.constant 0 : index
    %0 = vector.load %arg3[%c0, %c0_0] : memref<1x8xf32, #tpu.memory_space<vmem>>, vector<1x8xf32>
    %c0_1 = arith.constant 0 : index
    %c0_2 = arith.constant 0 : index
    %1 = vector.load %arg0[%c0_1, %c0_2] : memref<16x256xf32, #tpu.memory_space<vmem>>, vector<16x256xf32>
    %2 = arith.truncf %1 : vector<16x256xf32> to vector<16x256xbf16>
    %c0_3 = arith.constant 0 : index
    %c0_4 = arith.constant 0 : index
    %3 = vector.load %arg1[%c0_3, %c0_4] : memref<256x32xbf16, #tpu.memory_space<vmem>>, vector<256x32xbf16>
    %cst = arith.constant dense<0.000000e+00> : vector<16x32xf32>
    %4 = tpu.matmul %2, %3, %cst {dimension_numbers = #tpu.dot_dimension_numbers<[1], [0], [0], [1], [0, 0, 1, 1], [], []>} : vector<16x256xbf16>, vector<256x32xbf16>, vector<16x32xf32> -> vector<16x32xf32>
    %c0_5 = arith.constant 0 : index
    %c0_6 = arith.constant 0 : index
    %5 = vector.load %arg2[%c0_5, %c0_6] : memref<16x32xf32, #tpu.memory_space<vmem>>, vector<16x32xf32>
    %6 = arith.addf %4, %5 : vector<16x32xf32>
    %c0_7 = arith.constant 0 : index
    %c0_8 = arith.constant 0 : index
    %c0_9 = arith.constant 0 : index
    %7 = vector.load %arg4[%c0_7, %c0_8, %c0_9] : memref<2x4x32xf32, #tpu.memory_space<vmem>>, vector<1x4x32xf32>
    %8 = vector.shape_cast %7 : vector<1x4x32xf32> to vector<4x32xf32>
    %9 = vector.extract_strided_slice %8 {offsets = [0, 0], sizes = [1, 32], strides = [1, 1]} : vector<4x32xf32> to vector<1x32xf32>
    %10 = vector.extract_strided_slice %8 {offsets = [1, 0], sizes = [1, 32], strides = [1, 1]} : vector<4x32xf32> to vector<1x32xf32>
    %cst_10 = arith.constant dense<0.000000e+00> : vector<16xf32>
    %11 = vector.multi_reduction <add>, %6, %cst_10 [1] : vector<16x32xf32> to vector<16xf32>
    %12 = vector.shape_cast %11 : vector<16xf32> to vector<16x1xf32>
    %cst_11 = arith.constant 3.200000e+01 : f32
    %13 = vector.broadcast %cst_11 : f32 to vector<16x1xf32>
    %14 = arith.divf %12, %13 : vector<16x1xf32>
    %15 = vector.broadcast %14 : vector<16x1xf32> to vector<16x32xf32>
    %16 = arith.subf %6, %15 : vector<16x32xf32>
    %17 = arith.mulf %16, %16 : vector<16x32xf32>
    %cst_12 = arith.constant dense<0.000000e+00> : vector<16xf32>
    %18 = vector.multi_reduction <add>, %17, %cst_12 [1] : vector<16x32xf32> to vector<16xf32>
    %19 = vector.shape_cast %18 : vector<16xf32> to vector<16x1xf32>
    %cst_13 = arith.constant 3.200000e+01 : f32
    %20 = vector.broadcast %cst_13 : f32 to vector<16x1xf32>
    %21 = arith.divf %19, %20 : vector<16x1xf32>
    %22 = vector.broadcast %14 : vector<16x1xf32> to vector<16x32xf32>
    %23 = arith.subf %6, %22 : vector<16x32xf32>
    %cst_14 = arith.constant 9.99999996E-13 : f32
    %24 = vector.broadcast %cst_14 : f32 to vector<16x1xf32>
    %25 = arith.addf %21, %24 : vector<16x1xf32>
    %26 = math.rsqrt %25 : vector<16x1xf32>
    %27 = vector.broadcast %26 : vector<16x1xf32> to vector<16x32xf32>
    %28 = arith.mulf %23, %27 : vector<16x32xf32>
    %29 = vector.broadcast %9 : vector<1x32xf32> to vector<16x32xf32>
    %30 = arith.mulf %28, %29 : vector<16x32xf32>
    %31 = vector.broadcast %10 : vector<1x32xf32> to vector<16x32xf32>
    %32 = arith.addf %30, %31 : vector<16x32xf32>
    %33 = arith.truncf %32 : vector<16x32xf32> to vector<16x32xbf16>
    %c0_15 = arith.constant 0 : index
    %c0_16 = arith.constant 0 : index
    %c0_17 = arith.constant 0 : index
    %34 = vector.load %arg5[%c0_15, %c0_16, %c0_17] : memref<2x32x96xbf16, #tpu.memory_space<vmem>>, vector<1x32x96xbf16>
    %35 = vector.shape_cast %34 : vector<1x32x96xbf16> to vector<32x96xbf16>
    %cst_18 = arith.constant dense<0.000000e+00> : vector<16x96xf32>
    %36 = tpu.matmul %33, %35, %cst_18 {dimension_numbers = #tpu.dot_dimension_numbers<[1], [0], [0], [1], [0, 0, 1, 1], [], []>} : vector<16x32xbf16>, vector<32x96xbf16>, vector<16x96xf32> -> vector<16x96xf32>
    %c0_19 = arith.constant 0 : index
    %c0_20 = arith.constant 0 : index
    %c0_21 = arith.constant 0 : index
    %37 = vector.load %arg6[%c0_19, %c0_20, %c0_21] : memref<2x1x96xf32, #tpu.memory_space<vmem>>, vector<1x1x96xf32>
    %38 = vector.shape_cast %37 : vector<1x1x96xf32> to vector<1x96xf32>
    %39 = vector.broadcast %38 : vector<1x96xf32> to vector<16x96xf32>
    %40 = arith.addf %36, %39 : vector<16x96xf32>
    %41 = vector.extract_strided_slice %40 {offsets = [0, 0], sizes = [8, 96], strides = [1, 1]} : vector<16x96xf32> to vector<8x96xf32>
    %42 = vector.extract_strided_slice %40 {offsets = [8, 0], sizes = [8, 96], strides = [1, 1]} : vector<16x96xf32> to vector<8x96xf32>
    %43 = vector.extract_strided_slice %41 {offsets = [0, 0], sizes = [8, 8], strides = [1, 1]} : vector<8x96xf32> to vector<8x8xf32>
    %44 = vector.extract_strided_slice %41 {offsets = [0, 8], sizes = [8, 8], strides = [1, 1]} : vector<8x96xf32> to vector<8x8xf32>
    %45 = vector.extract_strided_slice %41 {offsets = [0, 16], sizes = [8, 8], strides = [1, 1]} : vector<8x96xf32> to vector<8x8xf32>
    %46 = vector.extract_strided_slice %41 {offsets = [0, 24], sizes = [8, 8], strides = [1, 1]} : vector<8x96xf32> to vector<8x8xf32>
    %47 = vector.extract_strided_slice %42 {offsets = [0, 0], sizes = [8, 8], strides = [1, 1]} : vector<8x96xf32> to vector<8x8xf32>
    %48 = vector.extract_strided_slice %42 {offsets = [0, 8], sizes = [8, 8], strides = [1, 1]} : vector<8x96xf32> to vector<8x8xf32>
    %49 = vector.extract_strided_slice %42 {offsets = [0, 16], sizes = [8, 8], strides = [1, 1]} : vector<8x96xf32> to vector<8x8xf32>
    %50 = vector.extract_strided_slice %42 {offsets = [0, 24], sizes = [8, 8], strides = [1, 1]} : vector<8x96xf32> to vector<8x8xf32>
    %51 = vector.extract_strided_slice %41 {offsets = [0, 32], sizes = [8, 8], strides = [1, 1]} : vector<8x96xf32> to vector<8x8xf32>
    %52 = vector.extract_strided_slice %41 {offsets = [0, 40], sizes = [8, 8], strides = [1, 1]} : vector<8x96xf32> to vector<8x8xf32>
    %53 = vector.extract_strided_slice %41 {offsets = [0, 48], sizes = [8, 8], strides = [1, 1]} : vector<8x96xf32> to vector<8x8xf32>
    %54 = vector.extract_strided_slice %41 {offsets = [0, 56], sizes = [8, 8], strides = [1, 1]} : vector<8x96xf32> to vector<8x8xf32>
    %55 = vector.extract_strided_slice %42 {offsets = [0, 32], sizes = [8, 8], strides = [1, 1]} : vector<8x96xf32> to vector<8x8xf32>
    %56 = vector.extract_strided_slice %42 {offsets = [0, 40], sizes = [8, 8], strides = [1, 1]} : vector<8x96xf32> to vector<8x8xf32>
    %57 = vector.extract_strided_slice %42 {offsets = [0, 48], sizes = [8, 8], strides = [1, 1]} : vector<8x96xf32> to vector<8x8xf32>
    %58 = vector.extract_strided_slice %42 {offsets = [0, 56], sizes = [8, 8], strides = [1, 1]} : vector<8x96xf32> to vector<8x8xf32>
    %59 = vector.extract_strided_slice %41 {offsets = [0, 64], sizes = [8, 8], strides = [1, 1]} : vector<8x96xf32> to vector<8x8xf32>
    %60 = vector.extract_strided_slice %41 {offsets = [0, 72], sizes = [8, 8], strides = [1, 1]} : vector<8x96xf32> to vector<8x8xf32>
    %61 = vector.extract_strided_slice %41 {offsets = [0, 80], sizes = [8, 8], strides = [1, 1]} : vector<8x96xf32> to vector<8x8xf32>
    %62 = vector.extract_strided_slice %41 {offsets = [0, 88], sizes = [8, 8], strides = [1, 1]} : vector<8x96xf32> to vector<8x8xf32>
    %63 = vector.extract_strided_slice %42 {offsets = [0, 64], sizes = [8, 8], strides = [1, 1]} : vector<8x96xf32> to vector<8x8xf32>
    %64 = vector.extract_strided_slice %42 {offsets = [0, 72], sizes = [8, 8], strides = [1, 1]} : vector<8x96xf32> to vector<8x8xf32>
    %65 = vector.extract_strided_slice %42 {offsets = [0, 80], sizes = [8, 8], strides = [1, 1]} : vector<8x96xf32> to vector<8x8xf32>
    %66 = vector.extract_strided_slice %42 {offsets = [0, 88], sizes = [8, 8], strides = [1, 1]} : vector<8x96xf32> to vector<8x8xf32>
    %cst_22 = arith.constant dense<0.000000e+00> : vector<8x8xf32>
    %67 = tpu.matmul %43, %51, %cst_22 {dimension_numbers = #tpu.dot_dimension_numbers<[1], [1], [0], [0], [0, 0, 1, 0], [], []>} : vector<8x8xf32>, vector<8x8xf32>, vector<8x8xf32> -> vector<8x8xf32>
    %cst_23 = arith.constant 0.353553385 : f32
    %68 = vector.broadcast %cst_23 : f32 to vector<8x8xf32>
    %69 = arith.mulf %67, %68 : vector<8x8xf32>
    %70 = vector.broadcast %0 : vector<1x8xf32> to vector<8x8xf32>
    %71 = arith.addf %69, %70 : vector<8x8xf32>
    %cst_24 = arith.constant dense<0.000000e+00> : vector<8x8xf32>
    %72 = tpu.matmul %44, %52, %cst_24 {dimension_numbers = #tpu.dot_dimension_numbers<[1], [1], [0], [0], [0, 0, 1, 0], [], []>} : vector<8x8xf32>, vector<8x8xf32>, vector<8x8xf32> -> vector<8x8xf32>
    %cst_25 = arith.constant 0.353553385 : f32
    %73 = vector.broadcast %cst_25 : f32 to vector<8x8xf32>
    %74 = arith.mulf %72, %73 : vector<8x8xf32>
    %75 = vector.broadcast %0 : vector<1x8xf32> to vector<8x8xf32>
    %76 = arith.addf %74, %75 : vector<8x8xf32>
    %cst_26 = arith.constant dense<0.000000e+00> : vector<8x8xf32>
    %77 = tpu.matmul %45, %53, %cst_26 {dimension_numbers = #tpu.dot_dimension_numbers<[1], [1], [0], [0], [0, 0, 1, 0], [], []>} : vector<8x8xf32>, vector<8x8xf32>, vector<8x8xf32> -> vector<8x8xf32>
    %cst_27 = arith.constant 0.353553385 : f32
    %78 = vector.broadcast %cst_27 : f32 to vector<8x8xf32>
    %79 = arith.mulf %77, %78 : vector<8x8xf32>
    %80 = vector.broadcast %0 : vector<1x8xf32> to vector<8x8xf32>
    %81 = arith.addf %79, %80 : vector<8x8xf32>
    %cst_28 = arith.constant dense<0.000000e+00> : vector<8x8xf32>
    %82 = tpu.matmul %46, %54, %cst_28 {dimension_numbers = #tpu.dot_dimension_numbers<[1], [1], [0], [0], [0, 0, 1, 0], [], []>} : vector<8x8xf32>, vector<8x8xf32>, vector<8x8xf32> -> vector<8x8xf32>
    %cst_29 = arith.constant 0.353553385 : f32
    %83 = vector.broadcast %cst_29 : f32 to vector<8x8xf32>
    %84 = arith.mulf %82, %83 : vector<8x8xf32>
    %85 = vector.broadcast %0 : vector<1x8xf32> to vector<8x8xf32>
    %86 = arith.addf %84, %85 : vector<8x8xf32>
    %cst_30 = arith.constant dense<0.000000e+00> : vector<8x8xf32>
    %87 = tpu.matmul %47, %55, %cst_30 {dimension_numbers = #tpu.dot_dimension_numbers<[1], [1], [0], [0], [0, 0, 1, 0], [], []>} : vector<8x8xf32>, vector<8x8xf32>, vector<8x8xf32> -> vector<8x8xf32>
    %cst_31 = arith.constant 0.353553385 : f32
    %88 = vector.broadcast %cst_31 : f32 to vector<8x8xf32>
    %89 = arith.mulf %87, %88 : vector<8x8xf32>
    %90 = vector.broadcast %0 : vector<1x8xf32> to vector<8x8xf32>
    %91 = arith.addf %89, %90 : vector<8x8xf32>
    %cst_32 = arith.constant dense<0.000000e+00> : vector<8x8xf32>
    %92 = tpu.matmul %48, %56, %cst_32 {dimension_numbers = #tpu.dot_dimension_numbers<[1], [1], [0], [0], [0, 0, 1, 0], [], []>} : vector<8x8xf32>, vector<8x8xf32>, vector<8x8xf32> -> vector<8x8xf32>
    %cst_33 = arith.constant 0.353553385 : f32
    %93 = vector.broadcast %cst_33 : f32 to vector<8x8xf32>
    %94 = arith.mulf %92, %93 : vector<8x8xf32>
    %95 = vector.broadcast %0 : vector<1x8xf32> to vector<8x8xf32>
    %96 = arith.addf %94, %95 : vector<8x8xf32>
    %cst_34 = arith.constant dense<0.000000e+00> : vector<8x8xf32>
    %97 = tpu.matmul %49, %57, %cst_34 {dimension_numbers = #tpu.dot_dimension_numbers<[1], [1], [0], [0], [0, 0, 1, 0], [], []>} : vector<8x8xf32>, vector<8x8xf32>, vector<8x8xf32> -> vector<8x8xf32>
    %cst_35 = arith.constant 0.353553385 : f32
    %98 = vector.broadcast %cst_35 : f32 to vector<8x8xf32>
    %99 = arith.mulf %97, %98 : vector<8x8xf32>
    %100 = vector.broadcast %0 : vector<1x8xf32> to vector<8x8xf32>
    %101 = arith.addf %99, %100 : vector<8x8xf32>
    %cst_36 = arith.constant dense<0.000000e+00> : vector<8x8xf32>
    %102 = tpu.matmul %50, %58, %cst_36 {dimension_numbers = #tpu.dot_dimension_numbers<[1], [1], [0], [0], [0, 0, 1, 0], [], []>} : vector<8x8xf32>, vector<8x8xf32>, vector<8x8xf32> -> vector<8x8xf32>
    %cst_37 = arith.constant 0.353553385 : f32
    %103 = vector.broadcast %cst_37 : f32 to vector<8x8xf32>
    %104 = arith.mulf %102, %103 : vector<8x8xf32>
    %105 = vector.broadcast %0 : vector<1x8xf32> to vector<8x8xf32>
    %106 = arith.addf %104, %105 : vector<8x8xf32>
    %cst_38 = arith.constant dense<0xFF800000> : vector<8xf32>
    %107 = vector.multi_reduction <maximumf>, %71, %cst_38 [1] : vector<8x8xf32> to vector<8xf32>
    %108 = vector.shape_cast %107 : vector<8xf32> to vector<8x1xf32>
    %109 = vector.broadcast %108 : vector<8x1xf32> to vector<8x8xf32>
    %110 = arith.subf %71, %109 : vector<8x8xf32>
    %111 = math.exp %110 : vector<8x8xf32>
    %cst_39 = arith.constant dense<0xFF800000> : vector<8xf32>
    %112 = vector.multi_reduction <maximumf>, %76, %cst_39 [1] : vector<8x8xf32> to vector<8xf32>
    %113 = vector.shape_cast %112 : vector<8xf32> to vector<8x1xf32>
    %114 = vector.broadcast %113 : vector<8x1xf32> to vector<8x8xf32>
    %115 = arith.subf %76, %114 : vector<8x8xf32>
    %116 = math.exp %115 : vector<8x8xf32>
    %cst_40 = arith.constant dense<0xFF800000> : vector<8xf32>
    %117 = vector.multi_reduction <maximumf>, %81, %cst_40 [1] : vector<8x8xf32> to vector<8xf32>
    %118 = vector.shape_cast %117 : vector<8xf32> to vector<8x1xf32>
    %119 = vector.broadcast %118 : vector<8x1xf32> to vector<8x8xf32>
    %120 = arith.subf %81, %119 : vector<8x8xf32>
    %121 = math.exp %120 : vector<8x8xf32>
    %cst_41 = arith.constant dense<0xFF800000> : vector<8xf32>
    %122 = vector.multi_reduction <maximumf>, %86, %cst_41 [1] : vector<8x8xf32> to vector<8xf32>
    %123 = vector.shape_cast %122 : vector<8xf32> to vector<8x1xf32>
    %124 = vector.broadcast %123 : vector<8x1xf32> to vector<8x8xf32>
    %125 = arith.subf %86, %124 : vector<8x8xf32>
    %126 = math.exp %125 : vector<8x8xf32>
    %cst_42 = arith.constant dense<0xFF800000> : vector<8xf32>
    %127 = vector.multi_reduction <maximumf>, %91, %cst_42 [1] : vector<8x8xf32> to vector<8xf32>
    %128 = vector.shape_cast %127 : vector<8xf32> to vector<8x1xf32>
    %129 = vector.broadcast %128 : vector<8x1xf32> to vector<8x8xf32>
    %130 = arith.subf %91, %129 : vector<8x8xf32>
    %131 = math.exp %130 : vector<8x8xf32>
    %cst_43 = arith.constant dense<0xFF800000> : vector<8xf32>
    %132 = vector.multi_reduction <maximumf>, %96, %cst_43 [1] : vector<8x8xf32> to vector<8xf32>
    %133 = vector.shape_cast %132 : vector<8xf32> to vector<8x1xf32>
    %134 = vector.broadcast %133 : vector<8x1xf32> to vector<8x8xf32>
    %135 = arith.subf %96, %134 : vector<8x8xf32>
    %136 = math.exp %135 : vector<8x8xf32>
    %cst_44 = arith.constant dense<0xFF800000> : vector<8xf32>
    %137 = vector.multi_reduction <maximumf>, %101, %cst_44 [1] : vector<8x8xf32> to vector<8xf32>
    %138 = vector.shape_cast %137 : vector<8xf32> to vector<8x1xf32>
    %139 = vector.broadcast %138 : vector<8x1xf32> to vector<8x8xf32>
    %140 = arith.subf %101, %139 : vector<8x8xf32>
    %141 = math.exp %140 : vector<8x8xf32>
    %cst_45 = arith.constant dense<0xFF800000> : vector<8xf32>
    %142 = vector.multi_reduction <maximumf>, %106, %cst_45 [1] : vector<8x8xf32> to vector<8xf32>
    %143 = vector.shape_cast %142 : vector<8xf32> to vector<8x1xf32>
    %144 = vector.broadcast %143 : vector<8x1xf32> to vector<8x8xf32>
    %145 = arith.subf %106, %144 : vector<8x8xf32>
    %146 = math.exp %145 : vector<8x8xf32>
    %cst_46 = arith.constant dense<0.000000e+00> : vector<8xf32>
    %147 = vector.multi_reduction <add>, %111, %cst_46 [1] : vector<8x8xf32> to vector<8xf32>
    %148 = vector.shape_cast %147 : vector<8xf32> to vector<8x1xf32>
    %149 = tpu.reciprocal %148 {approx = true} : vector<8x1xf32> -> vector<8x1xf32>
    %150 = vector.broadcast %149 : vector<8x1xf32> to vector<8x8xf32>
    %151 = arith.mulf %111, %150 : vector<8x8xf32>
    %cst_47 = arith.constant dense<0.000000e+00> : vector<8xf32>
    %152 = vector.multi_reduction <add>, %116, %cst_47 [1] : vector<8x8xf32> to vector<8xf32>
    %153 = vector.shape_cast %152 : vector<8xf32> to vector<8x1xf32>
    %154 = tpu.reciprocal %153 {approx = true} : vector<8x1xf32> -> vector<8x1xf32>
    %155 = vector.broadcast %154 : vector<8x1xf32> to vector<8x8xf32>
    %156 = arith.mulf %116, %155 : vector<8x8xf32>
    %cst_48 = arith.constant dense<0.000000e+00> : vector<8xf32>
    %157 = vector.multi_reduction <add>, %121, %cst_48 [1] : vector<8x8xf32> to vector<8xf32>
    %158 = vector.shape_cast %157 : vector<8xf32> to vector<8x1xf32>
    %159 = tpu.reciprocal %158 {approx = true} : vector<8x1xf32> -> vector<8x1xf32>
    %160 = vector.broadcast %159 : vector<8x1xf32> to vector<8x8xf32>
    %161 = arith.mulf %121, %160 : vector<8x8xf32>
    %cst_49 = arith.constant dense<0.000000e+00> : vector<8xf32>
    %162 = vector.multi_reduction <add>, %126, %cst_49 [1] : vector<8x8xf32> to vector<8xf32>
    %163 = vector.shape_cast %162 : vector<8xf32> to vector<8x1xf32>
    %164 = tpu.reciprocal %163 {approx = true} : vector<8x1xf32> -> vector<8x1xf32>
    %165 = vector.broadcast %164 : vector<8x1xf32> to vector<8x8xf32>
    %166 = arith.mulf %126, %165 : vector<8x8xf32>
    %cst_50 = arith.constant dense<0.000000e+00> : vector<8xf32>
    %167 = vector.multi_reduction <add>, %131, %cst_50 [1] : vector<8x8xf32> to vector<8xf32>
    %168 = vector.shape_cast %167 : vector<8xf32> to vector<8x1xf32>
    %169 = tpu.reciprocal %168 {approx = true} : vector<8x1xf32> -> vector<8x1xf32>
    %170 = vector.broadcast %169 : vector<8x1xf32> to vector<8x8xf32>
    %171 = arith.mulf %131, %170 : vector<8x8xf32>
    %cst_51 = arith.constant dense<0.000000e+00> : vector<8xf32>
    %172 = vector.multi_reduction <add>, %136, %cst_51 [1] : vector<8x8xf32> to vector<8xf32>
    %173 = vector.shape_cast %172 : vector<8xf32> to vector<8x1xf32>
    %174 = tpu.reciprocal %173 {approx = true} : vector<8x1xf32> -> vector<8x1xf32>
    %175 = vector.broadcast %174 : vector<8x1xf32> to vector<8x8xf32>
    %176 = arith.mulf %136, %175 : vector<8x8xf32>
    %cst_52 = arith.constant dense<0.000000e+00> : vector<8xf32>
    %177 = vector.multi_reduction <add>, %141, %cst_52 [1] : vector<8x8xf32> to vector<8xf32>
    %178 = vector.shape_cast %177 : vector<8xf32> to vector<8x1xf32>
    %179 = tpu.reciprocal %178 {approx = true} : vector<8x1xf32> -> vector<8x1xf32>
    %180 = vector.broadcast %179 : vector<8x1xf32> to vector<8x8xf32>
    %181 = arith.mulf %141, %180 : vector<8x8xf32>
    %cst_53 = arith.constant dense<0.000000e+00> : vector<8xf32>
    %182 = vector.multi_reduction <add>, %146, %cst_53 [1] : vector<8x8xf32> to vector<8xf32>
    %183 = vector.shape_cast %182 : vector<8xf32> to vector<8x1xf32>
    %184 = tpu.reciprocal %183 {approx = true} : vector<8x1xf32> -> vector<8x1xf32>
    %185 = vector.broadcast %184 : vector<8x1xf32> to vector<8x8xf32>
    %186 = arith.mulf %146, %185 : vector<8x8xf32>
    %cst_54 = arith.constant dense<0.000000e+00> : vector<8x8xf32>
    %187 = tpu.matmul %151, %59, %cst_54 {dimension_numbers = #tpu.dot_dimension_numbers<[1], [0], [0], [1], [0, 0, 1, 1], [], []>} : vector<8x8xf32>, vector<8x8xf32>, vector<8x8xf32> -> vector<8x8xf32>
    %cst_55 = arith.constant dense<0.000000e+00> : vector<8x8xf32>
    %188 = tpu.matmul %156, %60, %cst_55 {dimension_numbers = #tpu.dot_dimension_numbers<[1], [0], [0], [1], [0, 0, 1, 1], [], []>} : vector<8x8xf32>, vector<8x8xf32>, vector<8x8xf32> -> vector<8x8xf32>
    %cst_56 = arith.constant dense<0.000000e+00> : vector<8x8xf32>
    %189 = tpu.matmul %161, %61, %cst_56 {dimension_numbers = #tpu.dot_dimension_numbers<[1], [0], [0], [1], [0, 0, 1, 1], [], []>} : vector<8x8xf32>, vector<8x8xf32>, vector<8x8xf32> -> vector<8x8xf32>
    %cst_57 = arith.constant dense<0.000000e+00> : vector<8x8xf32>
    %190 = tpu.matmul %166, %62, %cst_57 {dimension_numbers = #tpu.dot_dimension_numbers<[1], [0], [0], [1], [0, 0, 1, 1], [], []>} : vector<8x8xf32>, vector<8x8xf32>, vector<8x8xf32> -> vector<8x8xf32>
    %cst_58 = arith.constant dense<0.000000e+00> : vector<8x8xf32>
    %191 = tpu.matmul %171, %63, %cst_58 {dimension_numbers = #tpu.dot_dimension_numbers<[1], [0], [0], [1], [0, 0, 1, 1], [], []>} : vector<8x8xf32>, vector<8x8xf32>, vector<8x8xf32> -> vector<8x8xf32>
    %cst_59 = arith.constant dense<0.000000e+00> : vector<8x8xf32>
    %192 = tpu.matmul %176, %64, %cst_59 {dimension_numbers = #tpu.dot_dimension_numbers<[1], [0], [0], [1], [0, 0, 1, 1], [], []>} : vector<8x8xf32>, vector<8x8xf32>, vector<8x8xf32> -> vector<8x8xf32>
    %cst_60 = arith.constant dense<0.000000e+00> : vector<8x8xf32>
    %193 = tpu.matmul %181, %65, %cst_60 {dimension_numbers = #tpu.dot_dimension_numbers<[1], [0], [0], [1], [0, 0, 1, 1], [], []>} : vector<8x8xf32>, vector<8x8xf32>, vector<8x8xf32> -> vector<8x8xf32>
    %cst_61 = arith.constant dense<0.000000e+00> : vector<8x8xf32>
    %194 = tpu.matmul %186, %66, %cst_61 {dimension_numbers = #tpu.dot_dimension_numbers<[1], [0], [0], [1], [0, 0, 1, 1], [], []>} : vector<8x8xf32>, vector<8x8xf32>, vector<8x8xf32> -> vector<8x8xf32>
    %195 = tpu.concatenate %187, %188, %189, %190 in 1 : vector<8x8xf32>, vector<8x8xf32>, vector<8x8xf32>, vector<8x8xf32> -> vector<8x32xf32>
    %196 = tpu.concatenate %191, %192, %193, %194 in 1 : vector<8x8xf32>, vector<8x8xf32>, vector<8x8xf32>, vector<8x8xf32> -> vector<8x32xf32>
    %197 = tpu.concatenate %195, %196 in 0 : vector<8x32xf32>, vector<8x32xf32> -> vector<16x32xf32>
    %198 = arith.truncf %197 : vector<16x32xf32> to vector<16x32xbf16>
    %c0_62 = arith.constant 0 : index
    %c0_63 = arith.constant 0 : index
    %c0_64 = arith.constant 0 : index
    %199 = vector.load %arg7[%c0_62, %c0_63, %c0_64] : memref<2x32x32xbf16, #tpu.memory_space<vmem>>, vector<1x32x32xbf16>
    %200 = vector.shape_cast %199 : vector<1x32x32xbf16> to vector<32x32xbf16>
    %cst_65 = arith.constant dense<0.000000e+00> : vector<16x32xf32>
    %201 = tpu.matmul %198, %200, %cst_65 {dimension_numbers = #tpu.dot_dimension_numbers<[1], [0], [0], [1], [0, 0, 1, 1], [], []>} : vector<16x32xbf16>, vector<32x32xbf16>, vector<16x32xf32> -> vector<16x32xf32>
    %202 = arith.addf %6, %201 : vector<16x32xf32>
    %c0_66 = arith.constant 0 : index
    %c0_67 = arith.constant 0 : index
    %c0_68 = arith.constant 0 : index
    %203 = vector.load %arg8[%c0_66, %c0_67, %c0_68] : memref<2x1x32xf32, #tpu.memory_space<vmem>>, vector<1x1x32xf32>
    %204 = vector.shape_cast %203 : vector<1x1x32xf32> to vector<1x32xf32>
    %205 = vector.broadcast %204 : vector<1x32xf32> to vector<16x32xf32>
    %206 = arith.addf %202, %205 : vector<16x32xf32>
    %207 = vector.extract_strided_slice %8 {offsets = [2, 0], sizes = [1, 32], strides = [1, 1]} : vector<4x32xf32> to vector<1x32xf32>
    %208 = vector.extract_strided_slice %8 {offsets = [3, 0], sizes = [1, 32], strides = [1, 1]} : vector<4x32xf32> to vector<1x32xf32>
    %cst_69 = arith.constant dense<0.000000e+00> : vector<16xf32>
    %209 = vector.multi_reduction <add>, %206, %cst_69 [1] : vector<16x32xf32> to vector<16xf32>
    %210 = vector.shape_cast %209 : vector<16xf32> to vector<16x1xf32>
    %cst_70 = arith.constant 3.200000e+01 : f32
    %211 = vector.broadcast %cst_70 : f32 to vector<16x1xf32>
    %212 = arith.divf %210, %211 : vector<16x1xf32>
    %213 = vector.broadcast %212 : vector<16x1xf32> to vector<16x32xf32>
    %214 = arith.subf %206, %213 : vector<16x32xf32>
    %215 = arith.mulf %214, %214 : vector<16x32xf32>
    %cst_71 = arith.constant dense<0.000000e+00> : vector<16xf32>
    %216 = vector.multi_reduction <add>, %215, %cst_71 [1] : vector<16x32xf32> to vector<16xf32>
    %217 = vector.shape_cast %216 : vector<16xf32> to vector<16x1xf32>
    %cst_72 = arith.constant 3.200000e+01 : f32
    %218 = vector.broadcast %cst_72 : f32 to vector<16x1xf32>
    %219 = arith.divf %217, %218 : vector<16x1xf32>
    %220 = vector.broadcast %212 : vector<16x1xf32> to vector<16x32xf32>
    %221 = arith.subf %206, %220 : vector<16x32xf32>
    %cst_73 = arith.constant 9.99999996E-13 : f32
    %222 = vector.broadcast %cst_73 : f32 to vector<16x1xf32>
    %223 = arith.addf %219, %222 : vector<16x1xf32>
    %224 = math.rsqrt %223 : vector<16x1xf32>
    %225 = vector.broadcast %224 : vector<16x1xf32> to vector<16x32xf32>
    %226 = arith.mulf %221, %225 : vector<16x32xf32>
    %227 = vector.broadcast %207 : vector<1x32xf32> to vector<16x32xf32>
    %228 = arith.mulf %226, %227 : vector<16x32xf32>
    %229 = vector.broadcast %208 : vector<1x32xf32> to vector<16x32xf32>
    %230 = arith.addf %228, %229 : vector<16x32xf32>
    %231 = arith.truncf %230 : vector<16x32xf32> to vector<16x32xbf16>
    %c0_74 = arith.constant 0 : index
    %c0_75 = arith.constant 0 : index
    %c0_76 = arith.constant 0 : index
    %232 = vector.load %arg9[%c0_74, %c0_75, %c0_76] : memref<2x32x64xbf16, #tpu.memory_space<vmem>>, vector<1x32x64xbf16>
    %233 = vector.shape_cast %232 : vector<1x32x64xbf16> to vector<32x64xbf16>
    %cst_77 = arith.constant dense<0.000000e+00> : vector<16x64xf32>
    %234 = tpu.matmul %231, %233, %cst_77 {dimension_numbers = #tpu.dot_dimension_numbers<[1], [0], [0], [1], [0, 0, 1, 1], [], []>} : vector<16x32xbf16>, vector<32x64xbf16>, vector<16x64xf32> -> vector<16x64xf32>
    %c0_78 = arith.constant 0 : index
    %c0_79 = arith.constant 0 : index
    %c0_80 = arith.constant 0 : index
    %235 = vector.load %arg10[%c0_78, %c0_79, %c0_80] : memref<2x1x64xf32, #tpu.memory_space<vmem>>, vector<1x1x64xf32>
    %236 = vector.shape_cast %235 : vector<1x1x64xf32> to vector<1x64xf32>
    %237 = vector.broadcast %236 : vector<1x64xf32> to vector<16x64xf32>
    %238 = arith.addf %234, %237 : vector<16x64xf32>
    %cst_81 = arith.constant 5.000000e-01 : f32
    %239 = vector.broadcast %cst_81 : f32 to vector<16x64xf32>
    %240 = arith.mulf %239, %238 : vector<16x64xf32>
    %cst_82 = arith.constant 0.707106769 : f32
    %241 = vector.broadcast %cst_82 : f32 to vector<16x64xf32>
    %242 = arith.mulf %238, %241 : vector<16x64xf32>
    %243 = math.erf %242 : vector<16x64xf32>
    %cst_83 = arith.constant 1.000000e+00 : f32
    %244 = vector.broadcast %cst_83 : f32 to vector<16x64xf32>
    %245 = arith.addf %244, %243 : vector<16x64xf32>
    %246 = arith.mulf %240, %245 : vector<16x64xf32>
    %247 = arith.truncf %246 : vector<16x64xf32> to vector<16x64xbf16>
    %c0_84 = arith.constant 0 : index
    %c0_85 = arith.constant 0 : index
    %c0_86 = arith.constant 0 : index
    %248 = vector.load %arg11[%c0_84, %c0_85, %c0_86] : memref<2x64x32xbf16, #tpu.memory_space<vmem>>, vector<1x64x32xbf16>
    %249 = vector.shape_cast %248 : vector<1x64x32xbf16> to vector<64x32xbf16>
    %cst_87 = arith.constant dense<0.000000e+00> : vector<16x32xf32>
    %250 = tpu.matmul %247, %249, %cst_87 {dimension_numbers = #tpu.dot_dimension_numbers<[1], [0], [0], [1], [0, 0, 1, 1], [], []>} : vector<16x64xbf16>, vector<64x32xbf16>, vector<16x32xf32> -> vector<16x32xf32>
    %251 = arith.addf %206, %250 : vector<16x32xf32>
    %c0_88 = arith.constant 0 : index
    %c0_89 = arith.constant 0 : index
    %c0_90 = arith.constant 0 : index
    %252 = vector.load %arg12[%c0_88, %c0_89, %c0_90] : memref<2x1x32xf32, #tpu.memory_space<vmem>>, vector<1x1x32xf32>
    %253 = vector.shape_cast %252 : vector<1x1x32xf32> to vector<1x32xf32>
    %254 = vector.broadcast %253 : vector<1x32xf32> to vector<16x32xf32>
    %255 = arith.addf %251, %254 : vector<16x32xf32>
    %c1 = arith.constant 1 : index
    %c0_91 = arith.constant 0 : index
    %c0_92 = arith.constant 0 : index
    %256 = vector.load %arg4[%c1, %c0_91, %c0_92] : memref<2x4x32xf32, #tpu.memory_space<vmem>>, vector<1x4x32xf32>
    %257 = vector.shape_cast %256 : vector<1x4x32xf32> to vector<4x32xf32>
    %258 = vector.extract_strided_slice %257 {offsets = [0, 0], sizes = [1, 32], strides = [1, 1]} : vector<4x32xf32> to vector<1x32xf32>
    %259 = vector.extract_strided_slice %257 {offsets = [1, 0], sizes = [1, 32], strides = [1, 1]} : vector<4x32xf32> to vector<1x32xf32>
    %cst_93 = arith.constant dense<0.000000e+00> : vector<16xf32>
    %260 = vector.multi_reduction <add>, %255, %cst_93 [1] : vector<16x32xf32> to vector<16xf32>
    %261 = vector.shape_cast %260 : vector<16xf32> to vector<16x1xf32>
    %cst_94 = arith.constant 3.200000e+01 : f32
    %262 = vector.broadcast %cst_94 : f32 to vector<16x1xf32>
    %263 = arith.divf %261, %262 : vector<16x1xf32>
    %264 = vector.broadcast %263 : vector<16x1xf32> to vector<16x32xf32>
    %265 = arith.subf %255, %264 : vector<16x32xf32>
    %266 = arith.mulf %265, %265 : vector<16x32xf32>
    %cst_95 = arith.constant dense<0.000000e+00> : vector<16xf32>
    %267 = vector.multi_reduction <add>, %266, %cst_95 [1] : vector<16x32xf32> to vector<16xf32>
    %268 = vector.shape_cast %267 : vector<16xf32> to vector<16x1xf32>
    %cst_96 = arith.constant 3.200000e+01 : f32
    %269 = vector.broadcast %cst_96 : f32 to vector<16x1xf32>
    %270 = arith.divf %268, %269 : vector<16x1xf32>
    %271 = vector.broadcast %263 : vector<16x1xf32> to vector<16x32xf32>
    %272 = arith.subf %255, %271 : vector<16x32xf32>
    %cst_97 = arith.constant 9.99999996E-13 : f32
    %273 = vector.broadcast %cst_97 : f32 to vector<16x1xf32>
    %274 = arith.addf %270, %273 : vector<16x1xf32>
    %275 = math.rsqrt %274 : vector<16x1xf32>
    %276 = vector.broadcast %275 : vector<16x1xf32> to vector<16x32xf32>
    %277 = arith.mulf %272, %276 : vector<16x32xf32>
    %278 = vector.broadcast %258 : vector<1x32xf32> to vector<16x32xf32>
    %279 = arith.mulf %277, %278 : vector<16x32xf32>
    %280 = vector.broadcast %259 : vector<1x32xf32> to vector<16x32xf32>
    %281 = arith.addf %279, %280 : vector<16x32xf32>
    %282 = arith.truncf %281 : vector<16x32xf32> to vector<16x32xbf16>
    %c1_98 = arith.constant 1 : index
    %c0_99 = arith.constant 0 : index
    %c0_100 = arith.constant 0 : index
    %283 = vector.load %arg5[%c1_98, %c0_99, %c0_100] : memref<2x32x96xbf16, #tpu.memory_space<vmem>>, vector<1x32x96xbf16>
    %284 = vector.shape_cast %283 : vector<1x32x96xbf16> to vector<32x96xbf16>
    %cst_101 = arith.constant dense<0.000000e+00> : vector<16x96xf32>
    %285 = tpu.matmul %282, %284, %cst_101 {dimension_numbers = #tpu.dot_dimension_numbers<[1], [0], [0], [1], [0, 0, 1, 1], [], []>} : vector<16x32xbf16>, vector<32x96xbf16>, vector<16x96xf32> -> vector<16x96xf32>
    %c1_102 = arith.constant 1 : index
    %c0_103 = arith.constant 0 : index
    %c0_104 = arith.constant 0 : index
    %286 = vector.load %arg6[%c1_102, %c0_103, %c0_104] : memref<2x1x96xf32, #tpu.memory_space<vmem>>, vector<1x1x96xf32>
    %287 = vector.shape_cast %286 : vector<1x1x96xf32> to vector<1x96xf32>
    %288 = vector.broadcast %287 : vector<1x96xf32> to vector<16x96xf32>
    %289 = arith.addf %285, %288 : vector<16x96xf32>
    %290 = vector.extract_strided_slice %289 {offsets = [0, 0], sizes = [8, 96], strides = [1, 1]} : vector<16x96xf32> to vector<8x96xf32>
    %291 = vector.extract_strided_slice %289 {offsets = [8, 0], sizes = [8, 96], strides = [1, 1]} : vector<16x96xf32> to vector<8x96xf32>
    %292 = vector.extract_strided_slice %290 {offsets = [0, 0], sizes = [8, 8], strides = [1, 1]} : vector<8x96xf32> to vector<8x8xf32>
    %293 = vector.extract_strided_slice %290 {offsets = [0, 8], sizes = [8, 8], strides = [1, 1]} : vector<8x96xf32> to vector<8x8xf32>
    %294 = vector.extract_strided_slice %290 {offsets = [0, 16], sizes = [8, 8], strides = [1, 1]} : vector<8x96xf32> to vector<8x8xf32>
    %295 = vector.extract_strided_slice %290 {offsets = [0, 24], sizes = [8, 8], strides = [1, 1]} : vector<8x96xf32> to vector<8x8xf32>
    %296 = vector.extract_strided_slice %291 {offsets = [0, 0], sizes = [8, 8], strides = [1, 1]} : vector<8x96xf32> to vector<8x8xf32>
    %297 = vector.extract_strided_slice %291 {offsets = [0, 8], sizes = [8, 8], strides = [1, 1]} : vector<8x96xf32> to vector<8x8xf32>
    %298 = vector.extract_strided_slice %291 {offsets = [0, 16], sizes = [8, 8], strides = [1, 1]} : vector<8x96xf32> to vector<8x8xf32>
    %299 = vector.extract_strided_slice %291 {offsets = [0, 24], sizes = [8, 8], strides = [1, 1]} : vector<8x96xf32> to vector<8x8xf32>
    %300 = vector.extract_strided_slice %290 {offsets = [0, 32], sizes = [8, 8], strides = [1, 1]} : vector<8x96xf32> to vector<8x8xf32>
    %301 = vector.extract_strided_slice %290 {offsets = [0, 40], sizes = [8, 8], strides = [1, 1]} : vector<8x96xf32> to vector<8x8xf32>
    %302 = vector.extract_strided_slice %290 {offsets = [0, 48], sizes = [8, 8], strides = [1, 1]} : vector<8x96xf32> to vector<8x8xf32>
    %303 = vector.extract_strided_slice %290 {offsets = [0, 56], sizes = [8, 8], strides = [1, 1]} : vector<8x96xf32> to vector<8x8xf32>
    %304 = vector.extract_strided_slice %291 {offsets = [0, 32], sizes = [8, 8], strides = [1, 1]} : vector<8x96xf32> to vector<8x8xf32>
    %305 = vector.extract_strided_slice %291 {offsets = [0, 40], sizes = [8, 8], strides = [1, 1]} : vector<8x96xf32> to vector<8x8xf32>
    %306 = vector.extract_strided_slice %291 {offsets = [0, 48], sizes = [8, 8], strides = [1, 1]} : vector<8x96xf32> to vector<8x8xf32>
    %307 = vector.extract_strided_slice %291 {offsets = [0, 56], sizes = [8, 8], strides = [1, 1]} : vector<8x96xf32> to vector<8x8xf32>
    %308 = vector.extract_strided_slice %290 {offsets = [0, 64], sizes = [8, 8], strides = [1, 1]} : vector<8x96xf32> to vector<8x8xf32>
    %309 = vector.extract_strided_slice %290 {offsets = [0, 72], sizes = [8, 8], strides = [1, 1]} : vector<8x96xf32> to vector<8x8xf32>
    %310 = vector.extract_strided_slice %290 {offsets = [0, 80], sizes = [8, 8], strides = [1, 1]} : vector<8x96xf32> to vector<8x8xf32>
    %311 = vector.extract_strided_slice %290 {offsets = [0, 88], sizes = [8, 8], strides = [1, 1]} : vector<8x96xf32> to vector<8x8xf32>
    %312 = vector.extract_strided_slice %291 {offsets = [0, 64], sizes = [8, 8], strides = [1, 1]} : vector<8x96xf32> to vector<8x8xf32>
    %313 = vector.extract_strided_slice %291 {offsets = [0, 72], sizes = [8, 8], strides = [1, 1]} : vector<8x96xf32> to vector<8x8xf32>
    %314 = vector.extract_strided_slice %291 {offsets = [0, 80], sizes = [8, 8], strides = [1, 1]} : vector<8x96xf32> to vector<8x8xf32>
    %315 = vector.extract_strided_slice %291 {offsets = [0, 88], sizes = [8, 8], strides = [1, 1]} : vector<8x96xf32> to vector<8x8xf32>
    %cst_105 = arith.constant dense<0.000000e+00> : vector<8x8xf32>
    %316 = tpu.matmul %292, %300, %cst_105 {dimension_numbers = #tpu.dot_dimension_numbers<[1], [1], [0], [0], [0, 0, 1, 0], [], []>} : vector<8x8xf32>, vector<8x8xf32>, vector<8x8xf32> -> vector<8x8xf32>
    %cst_106 = arith.constant 0.353553385 : f32
    %317 = vector.broadcast %cst_106 : f32 to vector<8x8xf32>
    %318 = arith.mulf %316, %317 : vector<8x8xf32>
    %319 = vector.broadcast %0 : vector<1x8xf32> to vector<8x8xf32>
    %320 = arith.addf %318, %319 : vector<8x8xf32>
    %cst_107 = arith.constant dense<0.000000e+00> : vector<8x8xf32>
    %321 = tpu.matmul %293, %301, %cst_107 {dimension_numbers = #tpu.dot_dimension_numbers<[1], [1], [0], [0], [0, 0, 1, 0], [], []>} : vector<8x8xf32>, vector<8x8xf32>, vector<8x8xf32> -> vector<8x8xf32>
    %cst_108 = arith.constant 0.353553385 : f32
    %322 = vector.broadcast %cst_108 : f32 to vector<8x8xf32>
    %323 = arith.mulf %321, %322 : vector<8x8xf32>
    %324 = vector.broadcast %0 : vector<1x8xf32> to vector<8x8xf32>
    %325 = arith.addf %323, %324 : vector<8x8xf32>
    %cst_109 = arith.constant dense<0.000000e+00> : vector<8x8xf32>
    %326 = tpu.matmul %294, %302, %cst_109 {dimension_numbers = #tpu.dot_dimension_numbers<[1], [1], [0], [0], [0, 0, 1, 0], [], []>} : vector<8x8xf32>, vector<8x8xf32>, vector<8x8xf32> -> vector<8x8xf32>
    %cst_110 = arith.constant 0.353553385 : f32
    %327 = vector.broadcast %cst_110 : f32 to vector<8x8xf32>
    %328 = arith.mulf %326, %327 : vector<8x8xf32>
    %329 = vector.broadcast %0 : vector<1x8xf32> to vector<8x8xf32>
    %330 = arith.addf %328, %329 : vector<8x8xf32>
    %cst_111 = arith.constant dense<0.000000e+00> : vector<8x8xf32>
    %331 = tpu.matmul %295, %303, %cst_111 {dimension_numbers = #tpu.dot_dimension_numbers<[1], [1], [0], [0], [0, 0, 1, 0], [], []>} : vector<8x8xf32>, vector<8x8xf32>, vector<8x8xf32> -> vector<8x8xf32>
    %cst_112 = arith.constant 0.353553385 : f32
    %332 = vector.broadcast %cst_112 : f32 to vector<8x8xf32>
    %333 = arith.mulf %331, %332 : vector<8x8xf32>
    %334 = vector.broadcast %0 : vector<1x8xf32> to vector<8x8xf32>
    %335 = arith.addf %333, %334 : vector<8x8xf32>
    %cst_113 = arith.constant dense<0.000000e+00> : vector<8x8xf32>
    %336 = tpu.matmul %296, %304, %cst_113 {dimension_numbers = #tpu.dot_dimension_numbers<[1], [1], [0], [0], [0, 0, 1, 0], [], []>} : vector<8x8xf32>, vector<8x8xf32>, vector<8x8xf32> -> vector<8x8xf32>
    %cst_114 = arith.constant 0.353553385 : f32
    %337 = vector.broadcast %cst_114 : f32 to vector<8x8xf32>
    %338 = arith.mulf %336, %337 : vector<8x8xf32>
    %339 = vector.broadcast %0 : vector<1x8xf32> to vector<8x8xf32>
    %340 = arith.addf %338, %339 : vector<8x8xf32>
    %cst_115 = arith.constant dense<0.000000e+00> : vector<8x8xf32>
    %341 = tpu.matmul %297, %305, %cst_115 {dimension_numbers = #tpu.dot_dimension_numbers<[1], [1], [0], [0], [0, 0, 1, 0], [], []>} : vector<8x8xf32>, vector<8x8xf32>, vector<8x8xf32> -> vector<8x8xf32>
    %cst_116 = arith.constant 0.353553385 : f32
    %342 = vector.broadcast %cst_116 : f32 to vector<8x8xf32>
    %343 = arith.mulf %341, %342 : vector<8x8xf32>
    %344 = vector.broadcast %0 : vector<1x8xf32> to vector<8x8xf32>
    %345 = arith.addf %343, %344 : vector<8x8xf32>
    %cst_117 = arith.constant dense<0.000000e+00> : vector<8x8xf32>
    %346 = tpu.matmul %298, %306, %cst_117 {dimension_numbers = #tpu.dot_dimension_numbers<[1], [1], [0], [0], [0, 0, 1, 0], [], []>} : vector<8x8xf32>, vector<8x8xf32>, vector<8x8xf32> -> vector<8x8xf32>
    %cst_118 = arith.constant 0.353553385 : f32
    %347 = vector.broadcast %cst_118 : f32 to vector<8x8xf32>
    %348 = arith.mulf %346, %347 : vector<8x8xf32>
    %349 = vector.broadcast %0 : vector<1x8xf32> to vector<8x8xf32>
    %350 = arith.addf %348, %349 : vector<8x8xf32>
    %cst_119 = arith.constant dense<0.000000e+00> : vector<8x8xf32>
    %351 = tpu.matmul %299, %307, %cst_119 {dimension_numbers = #tpu.dot_dimension_numbers<[1], [1], [0], [0], [0, 0, 1, 0], [], []>} : vector<8x8xf32>, vector<8x8xf32>, vector<8x8xf32> -> vector<8x8xf32>
    %cst_120 = arith.constant 0.353553385 : f32
    %352 = vector.broadcast %cst_120 : f32 to vector<8x8xf32>
    %353 = arith.mulf %351, %352 : vector<8x8xf32>
    %354 = vector.broadcast %0 : vector<1x8xf32> to vector<8x8xf32>
    %355 = arith.addf %353, %354 : vector<8x8xf32>
    %cst_121 = arith.constant dense<0xFF800000> : vector<8xf32>
    %356 = vector.multi_reduction <maximumf>, %320, %cst_121 [1] : vector<8x8xf32> to vector<8xf32>
    %357 = vector.shape_cast %356 : vector<8xf32> to vector<8x1xf32>
    %358 = vector.broadcast %357 : vector<8x1xf32> to vector<8x8xf32>
    %359 = arith.subf %320, %358 : vector<8x8xf32>
    %360 = math.exp %359 : vector<8x8xf32>
    %cst_122 = arith.constant dense<0xFF800000> : vector<8xf32>
    %361 = vector.multi_reduction <maximumf>, %325, %cst_122 [1] : vector<8x8xf32> to vector<8xf32>
    %362 = vector.shape_cast %361 : vector<8xf32> to vector<8x1xf32>
    %363 = vector.broadcast %362 : vector<8x1xf32> to vector<8x8xf32>
    %364 = arith.subf %325, %363 : vector<8x8xf32>
    %365 = math.exp %364 : vector<8x8xf32>
    %cst_123 = arith.constant dense<0xFF800000> : vector<8xf32>
    %366 = vector.multi_reduction <maximumf>, %330, %cst_123 [1] : vector<8x8xf32> to vector<8xf32>
    %367 = vector.shape_cast %366 : vector<8xf32> to vector<8x1xf32>
    %368 = vector.broadcast %367 : vector<8x1xf32> to vector<8x8xf32>
    %369 = arith.subf %330, %368 : vector<8x8xf32>
    %370 = math.exp %369 : vector<8x8xf32>
    %cst_124 = arith.constant dense<0xFF800000> : vector<8xf32>
    %371 = vector.multi_reduction <maximumf>, %335, %cst_124 [1] : vector<8x8xf32> to vector<8xf32>
    %372 = vector.shape_cast %371 : vector<8xf32> to vector<8x1xf32>
    %373 = vector.broadcast %372 : vector<8x1xf32> to vector<8x8xf32>
    %374 = arith.subf %335, %373 : vector<8x8xf32>
    %375 = math.exp %374 : vector<8x8xf32>
    %cst_125 = arith.constant dense<0xFF800000> : vector<8xf32>
    %376 = vector.multi_reduction <maximumf>, %340, %cst_125 [1] : vector<8x8xf32> to vector<8xf32>
    %377 = vector.shape_cast %376 : vector<8xf32> to vector<8x1xf32>
    %378 = vector.broadcast %377 : vector<8x1xf32> to vector<8x8xf32>
    %379 = arith.subf %340, %378 : vector<8x8xf32>
    %380 = math.exp %379 : vector<8x8xf32>
    %cst_126 = arith.constant dense<0xFF800000> : vector<8xf32>
    %381 = vector.multi_reduction <maximumf>, %345, %cst_126 [1] : vector<8x8xf32> to vector<8xf32>
    %382 = vector.shape_cast %381 : vector<8xf32> to vector<8x1xf32>
    %383 = vector.broadcast %382 : vector<8x1xf32> to vector<8x8xf32>
    %384 = arith.subf %345, %383 : vector<8x8xf32>
    %385 = math.exp %384 : vector<8x8xf32>
    %cst_127 = arith.constant dense<0xFF800000> : vector<8xf32>
    %386 = vector.multi_reduction <maximumf>, %350, %cst_127 [1] : vector<8x8xf32> to vector<8xf32>
    %387 = vector.shape_cast %386 : vector<8xf32> to vector<8x1xf32>
    %388 = vector.broadcast %387 : vector<8x1xf32> to vector<8x8xf32>
    %389 = arith.subf %350, %388 : vector<8x8xf32>
    %390 = math.exp %389 : vector<8x8xf32>
    %cst_128 = arith.constant dense<0xFF800000> : vector<8xf32>
    %391 = vector.multi_reduction <maximumf>, %355, %cst_128 [1] : vector<8x8xf32> to vector<8xf32>
    %392 = vector.shape_cast %391 : vector<8xf32> to vector<8x1xf32>
    %393 = vector.broadcast %392 : vector<8x1xf32> to vector<8x8xf32>
    %394 = arith.subf %355, %393 : vector<8x8xf32>
    %395 = math.exp %394 : vector<8x8xf32>
    %cst_129 = arith.constant dense<0.000000e+00> : vector<8xf32>
    %396 = vector.multi_reduction <add>, %360, %cst_129 [1] : vector<8x8xf32> to vector<8xf32>
    %397 = vector.shape_cast %396 : vector<8xf32> to vector<8x1xf32>
    %398 = tpu.reciprocal %397 {approx = true} : vector<8x1xf32> -> vector<8x1xf32>
    %399 = vector.broadcast %398 : vector<8x1xf32> to vector<8x8xf32>
    %400 = arith.mulf %360, %399 : vector<8x8xf32>
    %cst_130 = arith.constant dense<0.000000e+00> : vector<8xf32>
    %401 = vector.multi_reduction <add>, %365, %cst_130 [1] : vector<8x8xf32> to vector<8xf32>
    %402 = vector.shape_cast %401 : vector<8xf32> to vector<8x1xf32>
    %403 = tpu.reciprocal %402 {approx = true} : vector<8x1xf32> -> vector<8x1xf32>
    %404 = vector.broadcast %403 : vector<8x1xf32> to vector<8x8xf32>
    %405 = arith.mulf %365, %404 : vector<8x8xf32>
    %cst_131 = arith.constant dense<0.000000e+00> : vector<8xf32>
    %406 = vector.multi_reduction <add>, %370, %cst_131 [1] : vector<8x8xf32> to vector<8xf32>
    %407 = vector.shape_cast %406 : vector<8xf32> to vector<8x1xf32>
    %408 = tpu.reciprocal %407 {approx = true} : vector<8x1xf32> -> vector<8x1xf32>
    %409 = vector.broadcast %408 : vector<8x1xf32> to vector<8x8xf32>
    %410 = arith.mulf %370, %409 : vector<8x8xf32>
    %cst_132 = arith.constant dense<0.000000e+00> : vector<8xf32>
    %411 = vector.multi_reduction <add>, %375, %cst_132 [1] : vector<8x8xf32> to vector<8xf32>
    %412 = vector.shape_cast %411 : vector<8xf32> to vector<8x1xf32>
    %413 = tpu.reciprocal %412 {approx = true} : vector<8x1xf32> -> vector<8x1xf32>
    %414 = vector.broadcast %413 : vector<8x1xf32> to vector<8x8xf32>
    %415 = arith.mulf %375, %414 : vector<8x8xf32>
    %cst_133 = arith.constant dense<0.000000e+00> : vector<8xf32>
    %416 = vector.multi_reduction <add>, %380, %cst_133 [1] : vector<8x8xf32> to vector<8xf32>
    %417 = vector.shape_cast %416 : vector<8xf32> to vector<8x1xf32>
    %418 = tpu.reciprocal %417 {approx = true} : vector<8x1xf32> -> vector<8x1xf32>
    %419 = vector.broadcast %418 : vector<8x1xf32> to vector<8x8xf32>
    %420 = arith.mulf %380, %419 : vector<8x8xf32>
    %cst_134 = arith.constant dense<0.000000e+00> : vector<8xf32>
    %421 = vector.multi_reduction <add>, %385, %cst_134 [1] : vector<8x8xf32> to vector<8xf32>
    %422 = vector.shape_cast %421 : vector<8xf32> to vector<8x1xf32>
    %423 = tpu.reciprocal %422 {approx = true} : vector<8x1xf32> -> vector<8x1xf32>
    %424 = vector.broadcast %423 : vector<8x1xf32> to vector<8x8xf32>
    %425 = arith.mulf %385, %424 : vector<8x8xf32>
    %cst_135 = arith.constant dense<0.000000e+00> : vector<8xf32>
    %426 = vector.multi_reduction <add>, %390, %cst_135 [1] : vector<8x8xf32> to vector<8xf32>
    %427 = vector.shape_cast %426 : vector<8xf32> to vector<8x1xf32>
    %428 = tpu.reciprocal %427 {approx = true} : vector<8x1xf32> -> vector<8x1xf32>
    %429 = vector.broadcast %428 : vector<8x1xf32> to vector<8x8xf32>
    %430 = arith.mulf %390, %429 : vector<8x8xf32>
    %cst_136 = arith.constant dense<0.000000e+00> : vector<8xf32>
    %431 = vector.multi_reduction <add>, %395, %cst_136 [1] : vector<8x8xf32> to vector<8xf32>
    %432 = vector.shape_cast %431 : vector<8xf32> to vector<8x1xf32>
    %433 = tpu.reciprocal %432 {approx = true} : vector<8x1xf32> -> vector<8x1xf32>
    %434 = vector.broadcast %433 : vector<8x1xf32> to vector<8x8xf32>
    %435 = arith.mulf %395, %434 : vector<8x8xf32>
    %cst_137 = arith.constant dense<0.000000e+00> : vector<8x8xf32>
    %436 = tpu.matmul %400, %308, %cst_137 {dimension_numbers = #tpu.dot_dimension_numbers<[1], [0], [0], [1], [0, 0, 1, 1], [], []>} : vector<8x8xf32>, vector<8x8xf32>, vector<8x8xf32> -> vector<8x8xf32>
    %cst_138 = arith.constant dense<0.000000e+00> : vector<8x8xf32>
    %437 = tpu.matmul %405, %309, %cst_138 {dimension_numbers = #tpu.dot_dimension_numbers<[1], [0], [0], [1], [0, 0, 1, 1], [], []>} : vector<8x8xf32>, vector<8x8xf32>, vector<8x8xf32> -> vector<8x8xf32>
    %cst_139 = arith.constant dense<0.000000e+00> : vector<8x8xf32>
    %438 = tpu.matmul %410, %310, %cst_139 {dimension_numbers = #tpu.dot_dimension_numbers<[1], [0], [0], [1], [0, 0, 1, 1], [], []>} : vector<8x8xf32>, vector<8x8xf32>, vector<8x8xf32> -> vector<8x8xf32>
    %cst_140 = arith.constant dense<0.000000e+00> : vector<8x8xf32>
    %439 = tpu.matmul %415, %311, %cst_140 {dimension_numbers = #tpu.dot_dimension_numbers<[1], [0], [0], [1], [0, 0, 1, 1], [], []>} : vector<8x8xf32>, vector<8x8xf32>, vector<8x8xf32> -> vector<8x8xf32>
    %cst_141 = arith.constant dense<0.000000e+00> : vector<8x8xf32>
    %440 = tpu.matmul %420, %312, %cst_141 {dimension_numbers = #tpu.dot_dimension_numbers<[1], [0], [0], [1], [0, 0, 1, 1], [], []>} : vector<8x8xf32>, vector<8x8xf32>, vector<8x8xf32> -> vector<8x8xf32>
    %cst_142 = arith.constant dense<0.000000e+00> : vector<8x8xf32>
    %441 = tpu.matmul %425, %313, %cst_142 {dimension_numbers = #tpu.dot_dimension_numbers<[1], [0], [0], [1], [0, 0, 1, 1], [], []>} : vector<8x8xf32>, vector<8x8xf32>, vector<8x8xf32> -> vector<8x8xf32>
    %cst_143 = arith.constant dense<0.000000e+00> : vector<8x8xf32>
    %442 = tpu.matmul %430, %314, %cst_143 {dimension_numbers = #tpu.dot_dimension_numbers<[1], [0], [0], [1], [0, 0, 1, 1], [], []>} : vector<8x8xf32>, vector<8x8xf32>, vector<8x8xf32> -> vector<8x8xf32>
    %cst_144 = arith.constant dense<0.000000e+00> : vector<8x8xf32>
    %443 = tpu.matmul %435, %315, %cst_144 {dimension_numbers = #tpu.dot_dimension_numbers<[1], [0], [0], [1], [0, 0, 1, 1], [], []>} : vector<8x8xf32>, vector<8x8xf32>, vector<8x8xf32> -> vector<8x8xf32>
    %444 = tpu.concatenate %436, %437, %438, %439 in 1 : vector<8x8xf32>, vector<8x8xf32>, vector<8x8xf32>, vector<8x8xf32> -> vector<8x32xf32>
    %445 = tpu.concatenate %440, %441, %442, %443 in 1 : vector<8x8xf32>, vector<8x8xf32>, vector<8x8xf32>, vector<8x8xf32> -> vector<8x32xf32>
    %446 = tpu.concatenate %444, %445 in 0 : vector<8x32xf32>, vector<8x32xf32> -> vector<16x32xf32>
    %447 = arith.truncf %446 : vector<16x32xf32> to vector<16x32xbf16>
    %c1_145 = arith.constant 1 : index
    %c0_146 = arith.constant 0 : index
    %c0_147 = arith.constant 0 : index
    %448 = vector.load %arg7[%c1_145, %c0_146, %c0_147] : memref<2x32x32xbf16, #tpu.memory_space<vmem>>, vector<1x32x32xbf16>
    %449 = vector.shape_cast %448 : vector<1x32x32xbf16> to vector<32x32xbf16>
    %cst_148 = arith.constant dense<0.000000e+00> : vector<16x32xf32>
    %450 = tpu.matmul %447, %449, %cst_148 {dimension_numbers = #tpu.dot_dimension_numbers<[1], [0], [0], [1], [0, 0, 1, 1], [], []>} : vector<16x32xbf16>, vector<32x32xbf16>, vector<16x32xf32> -> vector<16x32xf32>
    %451 = arith.addf %255, %450 : vector<16x32xf32>
    %c1_149 = arith.constant 1 : index
    %c0_150 = arith.constant 0 : index
    %c0_151 = arith.constant 0 : index
    %452 = vector.load %arg8[%c1_149, %c0_150, %c0_151] : memref<2x1x32xf32, #tpu.memory_space<vmem>>, vector<1x1x32xf32>
    %453 = vector.shape_cast %452 : vector<1x1x32xf32> to vector<1x32xf32>
    %454 = vector.broadcast %453 : vector<1x32xf32> to vector<16x32xf32>
    %455 = arith.addf %451, %454 : vector<16x32xf32>
    %456 = vector.extract_strided_slice %257 {offsets = [2, 0], sizes = [1, 32], strides = [1, 1]} : vector<4x32xf32> to vector<1x32xf32>
    %457 = vector.extract_strided_slice %257 {offsets = [3, 0], sizes = [1, 32], strides = [1, 1]} : vector<4x32xf32> to vector<1x32xf32>
    %cst_152 = arith.constant dense<0.000000e+00> : vector<16xf32>
    %458 = vector.multi_reduction <add>, %455, %cst_152 [1] : vector<16x32xf32> to vector<16xf32>
    %459 = vector.shape_cast %458 : vector<16xf32> to vector<16x1xf32>
    %cst_153 = arith.constant 3.200000e+01 : f32
    %460 = vector.broadcast %cst_153 : f32 to vector<16x1xf32>
    %461 = arith.divf %459, %460 : vector<16x1xf32>
    %462 = vector.broadcast %461 : vector<16x1xf32> to vector<16x32xf32>
    %463 = arith.subf %455, %462 : vector<16x32xf32>
    %464 = arith.mulf %463, %463 : vector<16x32xf32>
    %cst_154 = arith.constant dense<0.000000e+00> : vector<16xf32>
    %465 = vector.multi_reduction <add>, %464, %cst_154 [1] : vector<16x32xf32> to vector<16xf32>
    %466 = vector.shape_cast %465 : vector<16xf32> to vector<16x1xf32>
    %cst_155 = arith.constant 3.200000e+01 : f32
    %467 = vector.broadcast %cst_155 : f32 to vector<16x1xf32>
    %468 = arith.divf %466, %467 : vector<16x1xf32>
    %469 = vector.broadcast %461 : vector<16x1xf32> to vector<16x32xf32>
    %470 = arith.subf %455, %469 : vector<16x32xf32>
    %cst_156 = arith.constant 9.99999996E-13 : f32
    %471 = vector.broadcast %cst_156 : f32 to vector<16x1xf32>
    %472 = arith.addf %468, %471 : vector<16x1xf32>
    %473 = math.rsqrt %472 : vector<16x1xf32>
    %474 = vector.broadcast %473 : vector<16x1xf32> to vector<16x32xf32>
    %475 = arith.mulf %470, %474 : vector<16x32xf32>
    %476 = vector.broadcast %456 : vector<1x32xf32> to vector<16x32xf32>
    %477 = arith.mulf %475, %476 : vector<16x32xf32>
    %478 = vector.broadcast %457 : vector<1x32xf32> to vector<16x32xf32>
    %479 = arith.addf %477, %478 : vector<16x32xf32>
    %480 = arith.truncf %479 : vector<16x32xf32> to vector<16x32xbf16>
    %c1_157 = arith.constant 1 : index
    %c0_158 = arith.constant 0 : index
    %c0_159 = arith.constant 0 : index
    %481 = vector.load %arg9[%c1_157, %c0_158, %c0_159] : memref<2x32x64xbf16, #tpu.memory_space<vmem>>, vector<1x32x64xbf16>
    %482 = vector.shape_cast %481 : vector<1x32x64xbf16> to vector<32x64xbf16>
    %cst_160 = arith.constant dense<0.000000e+00> : vector<16x64xf32>
    %483 = tpu.matmul %480, %482, %cst_160 {dimension_numbers = #tpu.dot_dimension_numbers<[1], [0], [0], [1], [0, 0, 1, 1], [], []>} : vector<16x32xbf16>, vector<32x64xbf16>, vector<16x64xf32> -> vector<16x64xf32>
    %c1_161 = arith.constant 1 : index
    %c0_162 = arith.constant 0 : index
    %c0_163 = arith.constant 0 : index
    %484 = vector.load %arg10[%c1_161, %c0_162, %c0_163] : memref<2x1x64xf32, #tpu.memory_space<vmem>>, vector<1x1x64xf32>
    %485 = vector.shape_cast %484 : vector<1x1x64xf32> to vector<1x64xf32>
    %486 = vector.broadcast %485 : vector<1x64xf32> to vector<16x64xf32>
    %487 = arith.addf %483, %486 : vector<16x64xf32>
    %cst_164 = arith.constant 5.000000e-01 : f32
    %488 = vector.broadcast %cst_164 : f32 to vector<16x64xf32>
    %489 = arith.mulf %488, %487 : vector<16x64xf32>
    %cst_165 = arith.constant 0.707106769 : f32
    %490 = vector.broadcast %cst_165 : f32 to vector<16x64xf32>
    %491 = arith.mulf %487, %490 : vector<16x64xf32>
    %492 = math.erf %491 : vector<16x64xf32>
    %cst_166 = arith.constant 1.000000e+00 : f32
    %493 = vector.broadcast %cst_166 : f32 to vector<16x64xf32>
    %494 = arith.addf %493, %492 : vector<16x64xf32>
    %495 = arith.mulf %489, %494 : vector<16x64xf32>
    %496 = arith.truncf %495 : vector<16x64xf32> to vector<16x64xbf16>
    %c1_167 = arith.constant 1 : index
    %c0_168 = arith.constant 0 : index
    %c0_169 = arith.constant 0 : index
    %497 = vector.load %arg11[%c1_167, %c0_168, %c0_169] : memref<2x64x32xbf16, #tpu.memory_space<vmem>>, vector<1x64x32xbf16>
    %498 = vector.shape_cast %497 : vector<1x64x32xbf16> to vector<64x32xbf16>
    %cst_170 = arith.constant dense<0.000000e+00> : vector<16x32xf32>
    %499 = tpu.matmul %496, %498, %cst_170 {dimension_numbers = #tpu.dot_dimension_numbers<[1], [0], [0], [1], [0, 0, 1, 1], [], []>} : vector<16x64xbf16>, vector<64x32xbf16>, vector<16x32xf32> -> vector<16x32xf32>
    %500 = arith.addf %455, %499 : vector<16x32xf32>
    %c1_171 = arith.constant 1 : index
    %c0_172 = arith.constant 0 : index
    %c0_173 = arith.constant 0 : index
    %501 = vector.load %arg12[%c1_171, %c0_172, %c0_173] : memref<2x1x32xf32, #tpu.memory_space<vmem>>, vector<1x1x32xf32>
    %502 = vector.shape_cast %501 : vector<1x1x32xf32> to vector<1x32xf32>
    %503 = vector.broadcast %502 : vector<1x32xf32> to vector<16x32xf32>
    %504 = arith.addf %500, %503 : vector<16x32xf32>
    %c0_174 = arith.constant 0 : index
    %c0_175 = arith.constant 0 : index
    %505 = vector.load %arg13[%c0_174, %c0_175] : memref<4x32xf32, #tpu.memory_space<vmem>>, vector<4x32xf32>
    %506 = vector.extract_strided_slice %505 {offsets = [0, 0], sizes = [1, 32], strides = [1, 1]} : vector<4x32xf32> to vector<1x32xf32>
    %507 = vector.extract_strided_slice %505 {offsets = [1, 0], sizes = [1, 32], strides = [1, 1]} : vector<4x32xf32> to vector<1x32xf32>
    %cst_176 = arith.constant dense<0.000000e+00> : vector<16xf32>
    %508 = vector.multi_reduction <add>, %504, %cst_176 [1] : vector<16x32xf32> to vector<16xf32>
    %509 = vector.shape_cast %508 : vector<16xf32> to vector<16x1xf32>
    %cst_177 = arith.constant 3.200000e+01 : f32
    %510 = vector.broadcast %cst_177 : f32 to vector<16x1xf32>
    %511 = arith.divf %509, %510 : vector<16x1xf32>
    %512 = vector.broadcast %511 : vector<16x1xf32> to vector<16x32xf32>
    %513 = arith.subf %504, %512 : vector<16x32xf32>
    %514 = arith.mulf %513, %513 : vector<16x32xf32>
    %cst_178 = arith.constant dense<0.000000e+00> : vector<16xf32>
    %515 = vector.multi_reduction <add>, %514, %cst_178 [1] : vector<16x32xf32> to vector<16xf32>
    %516 = vector.shape_cast %515 : vector<16xf32> to vector<16x1xf32>
    %cst_179 = arith.constant 3.200000e+01 : f32
    %517 = vector.broadcast %cst_179 : f32 to vector<16x1xf32>
    %518 = arith.divf %516, %517 : vector<16x1xf32>
    %519 = vector.broadcast %511 : vector<16x1xf32> to vector<16x32xf32>
    %520 = arith.subf %504, %519 : vector<16x32xf32>
    %cst_180 = arith.constant 9.99999996E-13 : f32
    %521 = vector.broadcast %cst_180 : f32 to vector<16x1xf32>
    %522 = arith.addf %518, %521 : vector<16x1xf32>
    %523 = math.rsqrt %522 : vector<16x1xf32>
    %524 = vector.broadcast %523 : vector<16x1xf32> to vector<16x32xf32>
    %525 = arith.mulf %520, %524 : vector<16x32xf32>
    %526 = vector.broadcast %506 : vector<1x32xf32> to vector<16x32xf32>
    %527 = arith.mulf %525, %526 : vector<16x32xf32>
    %528 = vector.broadcast %507 : vector<1x32xf32> to vector<16x32xf32>
    %529 = arith.addf %527, %528 : vector<16x32xf32>
    %530 = vector.extract_strided_slice %505 {offsets = [2, 0], sizes = [1, 32], strides = [1, 1]} : vector<4x32xf32> to vector<1x32xf32>
    %531 = vector.extract_strided_slice %505 {offsets = [3, 0], sizes = [1, 32], strides = [1, 1]} : vector<4x32xf32> to vector<1x32xf32>
    %cst_181 = arith.constant dense<0.000000e+00> : vector<16xf32>
    %532 = vector.multi_reduction <add>, %529, %cst_181 [1] : vector<16x32xf32> to vector<16xf32>
    %533 = vector.shape_cast %532 : vector<16xf32> to vector<16x1xf32>
    %cst_182 = arith.constant 3.200000e+01 : f32
    %534 = vector.broadcast %cst_182 : f32 to vector<16x1xf32>
    %535 = arith.divf %533, %534 : vector<16x1xf32>
    %536 = vector.broadcast %535 : vector<16x1xf32> to vector<16x32xf32>
    %537 = arith.subf %529, %536 : vector<16x32xf32>
    %538 = arith.mulf %537, %537 : vector<16x32xf32>
    %cst_183 = arith.constant dense<0.000000e+00> : vector<16xf32>
    %539 = vector.multi_reduction <add>, %538, %cst_183 [1] : vector<16x32xf32> to vector<16xf32>
    %540 = vector.shape_cast %539 : vector<16xf32> to vector<16x1xf32>
    %cst_184 = arith.constant 3.200000e+01 : f32
    %541 = vector.broadcast %cst_184 : f32 to vector<16x1xf32>
    %542 = arith.divf %540, %541 : vector<16x1xf32>
    %543 = vector.broadcast %535 : vector<16x1xf32> to vector<16x32xf32>
    %544 = arith.subf %529, %543 : vector<16x32xf32>
    %cst_185 = arith.constant 9.99999974E-6 : f32
    %545 = vector.broadcast %cst_185 : f32 to vector<16x1xf32>
    %546 = arith.addf %542, %545 : vector<16x1xf32>
    %547 = math.rsqrt %546 : vector<16x1xf32>
    %548 = vector.broadcast %547 : vector<16x1xf32> to vector<16x32xf32>
    %549 = arith.mulf %544, %548 : vector<16x32xf32>
    %550 = vector.broadcast %530 : vector<1x32xf32> to vector<16x32xf32>
    %551 = arith.mulf %549, %550 : vector<16x32xf32>
    %552 = vector.broadcast %531 : vector<1x32xf32> to vector<16x32xf32>
    %553 = arith.addf %551, %552 : vector<16x32xf32>
    %c0_186 = arith.constant 0 : index
    %c0_187 = arith.constant 0 : index
    %554 = vector.load %arg14[%c0_186, %c0_187] : memref<32x5xf32, #tpu.memory_space<vmem>>, vector<32x5xf32>
    %cst_188 = arith.constant dense<0.000000e+00> : vector<16x5xf32>
    %555 = tpu.matmul %553, %554, %cst_188 {dimension_numbers = #tpu.dot_dimension_numbers<[1], [0], [0], [1], [0, 0, 1, 1], [], []>} : vector<16x32xf32>, vector<32x5xf32>, vector<16x5xf32> -> vector<16x5xf32>
    %c0_189 = arith.constant 0 : index
    %c0_190 = arith.constant 0 : index
    %556 = vector.load %arg15[%c0_189, %c0_190] : memref<1x5xf32, #tpu.memory_space<vmem>>, vector<1x5xf32>
    %557 = vector.broadcast %556 : vector<1x5xf32> to vector<16x5xf32>
    %558 = arith.addf %555, %557 : vector<16x5xf32>
    %c0_191 = arith.constant 0 : index
    %c0_192 = arith.constant 0 : index
    %559 = vector.load %arg16[%c0_191, %c0_192] : memref<16x5xf32, #tpu.memory_space<vmem>>, vector<16x5xf32>
    tpu.vector_store %arg16[%c0_191, %c0_192], %558 {strides = array<i32>} : memref<16x5xf32, #tpu.memory_space<vmem>>, vector<16x5xf32>,
    return
  }
}

</mosaic_0001>

<llo_original>
// kernel: tomato_vit_forward.1
$region0: #{tomato_vit_forward.1}
  #allocation0 [shape = 'u32[]', space=smem, size = 0x4, offset = 0x4, fixed_abs, tag = 'smem constant byte address 0x4 - core index']
  #allocation1 [shape = 'u32[144,128]{1,0:T(1,128)}', space=vmem, size = 0x12000, scoped, tag = 'internal scratch']
  %s0 = inlined_call_operand.vmem [shape: f32[16,256], index: 0, kind: input, shape index: {}]
  %s1 = inlined_call_operand.vmem [shape: bf16[256,32], index: 1, kind: input, shape index: {}]
  %s2 = inlined_call_operand.vmem [shape: f32[16,32], index: 2, kind: input, shape index: {}]
  %s3 = inlined_call_operand.vmem [shape: f32[1,8], index: 3, kind: input, shape index: {}]
  %s4 = inlined_call_operand.vmem [shape: f32[2,4,32], index: 4, kind: input, shape index: {}]
  %s5 = inlined_call_operand.vmem [shape: bf16[2,32,96], index: 5, kind: input, shape index: {}]
  %s6 = inlined_call_operand.vmem [shape: f32[2,1,96], index: 6, kind: input, shape index: {}]
  %s7 = inlined_call_operand.vmem [shape: bf16[2,32,32], index: 7, kind: input, shape index: {}]
  %s8 = inlined_call_operand.vmem [shape: f32[2,1,32], index: 8, kind: input, shape index: {}]
  %s9 = inlined_call_operand.vmem [shape: bf16[2,32,64], index: 9, kind: input, shape index: {}]
  %s10 = inlined_call_operand.vmem [shape: f32[2,1,64], index: 10, kind: input, shape index: {}]
  %s11 = inlined_call_operand.vmem [shape: bf16[2,64,32], index: 11, kind: input, shape index: {}]
  %s12 = inlined_call_operand.vmem [shape: f32[2,1,32], index: 12, kind: input, shape index: {}]
  %s13 = inlined_call_operand.vmem [shape: f32[4,32], index: 13, kind: input, shape index: {}]
  %s14 = inlined_call_operand.vmem [shape: f32[32,5], index: 14, kind: input, shape index: {}]
  %s15 = inlined_call_operand.vmem [shape: f32[1,5], index: 15, kind: input, shape index: {}]
  %s16 = inlined_call_operand.vmem [shape: f32[16,5], index: 16, kind: output, shape index: {}]
  %s17 = sld [smem:[#allocation0]]
  $region74: #{tomato_vit_forward.1} parent=0
    _
  %s19 = ssub.s32 1, %s17
  %s20 = scalar_select 0, %s19, %s17
  // Predicated region
  $region2: #{tomato_vit_forward.1} parent=0 // pred_check
    _
  $region3: #{tomato_vit_forward.1} parent=0 // pred_check_branch
    %22 = sbr.rel (0) target = $region5
  $region4: #{tomato_vit_forward.1} parent=0 // pred_region
    _
  $region5: #{tomato_vit_forward.1} parent=0 // pred_fallthru
    _
  // Predicated region
  $region6: #{tomato_vit_forward.1} parent=0 // pred_check
    _
  $region7: #{tomato_vit_forward.1} parent=0 // pred_check_branch
    %24 = sbr.rel (0) target = $region9
  $region8: #{tomato_vit_forward.1} parent=0 // pred_region
    _
  $region9: #{tomato_vit_forward.1} parent=0 // pred_fallthru
    _
  // Predicated region
  $region10: #{tomato_vit_forward.1} parent=0 // pred_check
    _
  $region11: #{tomato_vit_forward.1} parent=0 // pred_check_branch
    %26 = sbr.rel (0) target = $region13
  $region12: #{tomato_vit_forward.1} parent=0 // pred_region
    _
  $region13: #{tomato_vit_forward.1} parent=0 // pred_fallthru
    _
  // Predicated region
  $region14: #{tomato_vit_forward.1} parent=0 // pred_check
    _
  $region15: #{tomato_vit_forward.1} parent=0 // pred_check_branch
    %28 = sbr.rel (0) target = $region17
  $region16: #{tomato_vit_forward.1} parent=0 // pred_region
    _
  $region17: #{tomato_vit_forward.1} parent=0 // pred_fallthru
    _
  // Predicated region
  $region18: #{tomato_vit_forward.1} parent=0 // pred_check
    _
  $region19: #{tomato_vit_forward.1} parent=0 // pred_check_branch
    %30 = sbr.rel (0) target = $region21
  $region20: #{tomato_vit_forward.1} parent=0 // pred_region
    _
  $region21: #{tomato_vit_forward.1} parent=0 // pred_fallthru
    _
  // Predicated region
  $region22: #{tomato_vit_forward.1} parent=0 // pred_check
    _
  $region23: #{tomato_vit_forward.1} parent=0 // pred_check_branch
    %32 = sbr.rel (0) target = $region25
  $region24: #{tomato_vit_forward.1} parent=0 // pred_region
    _
  $region25: #{tomato_vit_forward.1} parent=0 // pred_fallthru
    _
  // Predicated region
  $region26: #{tomato_vit_forward.1} parent=0 // pred_check
    _
  $region27: #{tomato_vit_forward.1} parent=0 // pred_check_branch
    %34 = sbr.rel (0) target = $region29
  $region28: #{tomato_vit_forward.1} parent=0 // pred_region
    _
  $region29: #{tomato_vit_forward.1} parent=0 // pred_fallthru
    _
  // Predicated region
  $region30: #{tomato_vit_forward.1} parent=0 // pred_check
    _
  $region31: #{tomato_vit_forward.1} parent=0 // pred_check_branch
    %36 = sbr.rel (0) target = $region33
  $region32: #{tomato_vit_forward.1} parent=0 // pred_region
    _
  $region33: #{tomato_vit_forward.1} parent=0 // pred_fallthru
    _
  // Predicated region
  $region34: #{tomato_vit_forward.1} parent=0 // pred_check
    _
  $region35: #{tomato_vit_forward.1} parent=0 // pred_check_branch
    %38 = sbr.rel (0) target = $region37
  $region36: #{tomato_vit_forward.1} parent=0 // pred_region
    _
  $region37: #{tomato_vit_forward.1} parent=0 // pred_fallthru
    _
  // Predicated region
  $region38: #{tomato_vit_forward.1} parent=0 // pred_check
    _
  $region39: #{tomato_vit_forward.1} parent=0 // pred_check_branch
    %40 = sbr.rel (0) target = $region41
  $region40: #{tomato_vit_forward.1} parent=0 // pred_region
    _
  $region41: #{tomato_vit_forward.1} parent=0 // pred_fallthru
    _
  // Predicated region
  $region42: #{tomato_vit_forward.1} parent=0 // pred_check
    _
  $region43: #{tomato_vit_forward.1} parent=0 // pred_check_branch
    %42 = sbr.rel (0) target = $region45
  $region44: #{tomato_vit_forward.1} parent=0 // pred_region
    _
  $region45: #{tomato_vit_forward.1} parent=0 // pred_fallthru
    _
  // Predicated region
  $region46: #{tomato_vit_forward.1} parent=0 // pred_check
    _
  $region47: #{tomato_vit_forward.1} parent=0 // pred_check_branch
    %44 = sbr.rel (0) target = $region49
  $region48: #{tomato_vit_forward.1} parent=0 // pred_region
    _
  $region49: #{tomato_vit_forward.1} parent=0 // pred_fallthru
    _
  // Predicated region
  $region50: #{tomato_vit_forward.1} parent=0 // pred_check
    _
  $region51: #{tomato_vit_forward.1} parent=0 // pred_check_branch
    %46 = sbr.rel (0) target = $region53
  $region52: #{tomato_vit_forward.1} parent=0 // pred_region
    _
  $region53: #{tomato_vit_forward.1} parent=0 // pred_fallthru
    _
  // Predicated region
  $region54: #{tomato_vit_forward.1} parent=0 // pred_check
    _
  $region55: #{tomato_vit_forward.1} parent=0 // pred_check_branch
    %48 = sbr.rel (0) target = $region57
  $region56: #{tomato_vit_forward.1} parent=0 // pred_region
    _
  $region57: #{tomato_vit_forward.1} parent=0 // pred_fallthru
    _
  // Predicated region
  $region58: #{tomato_vit_forward.1} parent=0 // pred_check
    _
  $region59: #{tomato_vit_forward.1} parent=0 // pred_check_branch
    %50 = sbr.rel (0) target = $region61
  $region60: #{tomato_vit_forward.1} parent=0 // pred_region
    _
  $region61: #{tomato_vit_forward.1} parent=0 // pred_fallthru
    _
  // Predicated region
  $region62: #{tomato_vit_forward.1} parent=0 // pred_check
    _
  $region63: #{tomato_vit_forward.1} parent=0 // pred_check_branch
    %52 = sbr.rel (0) target = $region65
  $region64: #{tomato_vit_forward.1} parent=0 // pred_region
    _
  $region65: #{tomato_vit_forward.1} parent=0 // pred_fallthru
    _
  %v54 = vld [vmem:[%s3] sm:$0x1]
  %v55 = vld [vmem:[%s0] sm:$0xff]
  %v56 = vld [vmem:[%s0 + $0x8] sm:$0xff]
  %v57 = vld [vmem:[%s0 + $0x10] sm:$0xff]
  %v58 = vld [vmem:[%s0 + $0x18] sm:$0xff]
  %v59 = vpack.c.bf16 %v57, %v55
  %v60 = vpack.c.bf16 %v58, %v56
  %v61 = vld [vmem:[%s1] sm:$0xf]
  %v62 = vld [vmem:[%s1 + $0x4] sm:$0xf]
  %v63 = vld [vmem:[%s1 + $0x8] sm:$0xf]
  %v64 = vld [vmem:[%s1 + $0xc] sm:$0xf]
  %v65 = vld [vmem:[%s1 + $0x10] sm:$0xf]
  %v66 = vld [vmem:[%s1 + $0x14] sm:$0xf]
  %v67 = vld [vmem:[%s1 + $0x18] sm:$0xf]
  %v68 = vld [vmem:[%s1 + $0x1c] sm:$0xf]
  %v69 = vld [vmem:[%s1 + $0x20] sm:$0xf]
  %v70 = vld [vmem:[%s1 + $0x24] sm:$0xf]
  %v71 = vld [vmem:[%s1 + $0x28] sm:$0xf]
  %v72 = vld [vmem:[%s1 + $0x2c] sm:$0xf]
  %v73 = vld [vmem:[%s1 + $0x30] sm:$0xf]
  %v74 = vld [vmem:[%s1 + $0x34] sm:$0xf]
  %v75 = vld [vmem:[%s1 + $0x38] sm:$0xf]
  %v76 = vld [vmem:[%s1 + $0x3c] sm:$0xf]
  %v77 = vld [vmem:[%s1 + $0x40] sm:$0xf]
  %v78 = vld [vmem:[%s1 + $0x44] sm:$0xf]
  %v79 = vld [vmem:[%s1 + $0x48] sm:$0xf]
  %v80 = vld [vmem:[%s1 + $0x4c] sm:$0xf]
  %v81 = vld [vmem:[%s1 + $0x50] sm:$0xf]
  %v82 = vld [vmem:[%s1 + $0x54] sm:$0xf]
  %v83 = vld [vmem:[%s1 + $0x58] sm:$0xf]
  %v84 = vld [vmem:[%s1 + $0x5c] sm:$0xf]
  %v85 = vld [vmem:[%s1 + $0x60] sm:$0xf]
  %v86 = vld [vmem:[%s1 + $0x64] sm:$0xf]
  %v87 = vld [vmem:[%s1 + $0x68] sm:$0xf]
  %v88 = vld [vmem:[%s1 + $0x6c] sm:$0xf]
  %v89 = vld [vmem:[%s1 + $0x70] sm:$0xf]
  %v90 = vld [vmem:[%s1 + $0x74] sm:$0xf]
  %v91 = vld [vmem:[%s1 + $0x78] sm:$0xf]
  %v92 = vld [vmem:[%s1 + $0x7c] sm:$0xf]
  %v93 = vld [vmem:[%s2] sm:$0xff]
  %v94 = vld [vmem:[%s2 + $0x8] sm:$0xff]
  %v127 = vunpack.c.l.b16 %v61
  %v128 = vunpack.c.l.b16 %v62
  %v129 = vunpack.c.l.b16 %v63
  %v130 = vunpack.c.l.b16 %v64
  %v131 = vunpack.c.l.b16 %v65
  %v132 = vunpack.c.l.b16 %v66
  %v133 = vunpack.c.l.b16 %v67
  %v134 = vunpack.c.l.b16 %v68
  %v135 = vunpack.c.l.b16 %v69
  %v136 = vunpack.c.l.b16 %v70
  %v137 = vunpack.c.l.b16 %v71
  %v138 = vunpack.c.l.b16 %v72
  %v139 = vunpack.c.l.b16 %v73
  %v140 = vunpack.c.l.b16 %v74
  %v141 = vunpack.c.l.b16 %v75
  %v142 = vunpack.c.l.b16 %v76
  %v143 = vunpack.c.l.b16 %v77
  %v144 = vunpack.c.l.b16 %v78
  %v145 = vunpack.c.l.b16 %v79
  %v146 = vunpack.c.l.b16 %v80
  %v147 = vunpack.c.l.b16 %v81
  %v148 = vunpack.c.l.b16 %v82
  %v149 = vunpack.c.l.b16 %v83
  %v150 = vunpack.c.l.b16 %v84
  %v151 = vunpack.c.l.b16 %v85
  %v152 = vunpack.c.l.b16 %v86
  %v153 = vunpack.c.l.b16 %v87
  %v154 = vunpack.c.l.b16 %v88
  %v155 = vunpack.c.l.b16 %v89
  %v156 = vunpack.c.l.b16 %v90
  %v157 = vunpack.c.l.b16 %v91
  %v158 = vunpack.c.l.b16 %v92
  %v159 = vpack.c.b16 %v128, %v127
  %v160 = vpack.c.b16 %v130, %v129
  %v161 = vpack.c.b16 %v132, %v131
  %v162 = vpack.c.b16 %v134, %v133
  %v163 = vpack.c.b16 %v136, %v135
  %v164 = vpack.c.b16 %v138, %v137
  %v165 = vpack.c.b16 %v140, %v139
  %v166 = vpack.c.b16 %v142, %v141
  %v167 = vpack.c.b16 %v144, %v143
  %v168 = vpack.c.b16 %v146, %v145
  %v169 = vpack.c.b16 %v148, %v147
  %v170 = vpack.c.b16 %v150, %v149
  %v171 = vpack.c.b16 %v152, %v151
  %v172 = vpack.c.b16 %v154, %v153
  %v173 = vpack.c.b16 %v156, %v155
  %v174 = vpack.c.b16 %v158, %v157
  %191 = vmatprep.subr.bf16.mxu0 0
  %192 = vmatpush1.bf16.msra.mxu0 %v159
  %193 = vmatprep.subr.bf16.mxu0 0
  %194 = vmatpush1.bf16.msra.mxu0 %v160
  %195 = vmatprep.subr.bf16.mxu0 0
  %196 = vmatpush1.bf16.msra.mxu0 %v161
  %197 = vmatprep.subr.bf16.mxu0 0
  %198 = vmatpush1.bf16.msra.mxu0 %v162
  %199 = vmatprep.subr.bf16.mxu0 0
  %200 = vmatpush1.bf16.msra.mxu0 %v163
  %201 = vmatprep.subr.bf16.mxu0 0
  %202 = vmatpush1.bf16.msra.mxu0 %v164
  %203 = vmatprep.subr.bf16.mxu0 0
  %204 = vmatpush1.bf16.msra.mxu0 %v165
  %205 = vmatprep.subr.bf16.mxu0 0
  %206 = vmatpush1.bf16.msra.mxu0 %v166
  %207 = vmatprep.subr.bf16.mxu0 0
  %208 = vmatpush1.bf16.msra.mxu0 %v167
  %209 = vmatprep.subr.bf16.mxu0 0
  %210 = vmatpush1.bf16.msra.mxu0 %v168
  %211 = vmatprep.subr.bf16.mxu0 0
  %212 = vmatpush1.bf16.msra.mxu0 %v169
  %213 = vmatprep.subr.bf16.mxu0 0
  %214 = vmatpush1.bf16.msra.mxu0 %v170
  %215 = vmatprep.subr.bf16.mxu0 0
  %216 = vmatpush1.bf16.msra.mxu0 %v171
  %217 = vmatprep.subr.bf16.mxu0 0
  %218 = vmatpush1.bf16.msra.mxu0 %v172
  %219 = vmatprep.subr.bf16.mxu0 0
  %220 = vmatpush1.bf16.msra.mxu0 %v173
  %221 = vmatprep.subr.bf16.mxu0 0
  %222 = vmatpush1.bf16.msra.mxu0 %v174
  %223 = vmatprep.mubr.bf16.mxu0 %v60
  %224 = vmatmul.mubr.bf16.gmra.mrb[0].mxu0 %v59
  %v225 = vpop.f32.mrb[0].mxu0
  %v226 = vadd.f32 %v93, %v225
  %v227 = vpop.f32.mrb[0].mxu0
  %v228 = vpop.f32.mrb[0].mxu0
  %v229 = vadd.f32 %v94, %v228
  %v230 = vpop.f32.mrb[0].mxu0
  %231 = vdwg.mxu0
  %v232 = vld [vmem:[%s4] sm:$0xf]
  %vm233 = vcmask 261120
  %v234 = vsel %vm233, %v226, 0.0
  %235 = vadd.xlane.f32.xlu0 %v234
  %v236 = vpop.xlane.xlu0 %235
  %v237 = vsel %vm233, %v229, 0.0
  %238 = vadd.xlane.f32.xlu0 %v237
  %v239 = vpop.xlane.xlu0 %238
  %v240 = vrcp.pop 32.0
  %v241 = vmul.f32 %v236, %v240
  %v242 = vmul.f32 %v239, %v240
  %v243 = vsub.f32 %v226, %v241
  %v244 = vsub.f32 %v229, %v242
  %v245 = vmul.f32 %v243, %v243
  %v246 = vmul.f32 %v244, %v244
  %v247 = vsel %vm233, %v245, 0.0
  %248 = vadd.xlane.f32.xlu0 %v247
  %v249 = vpop.xlane.xlu0 %248
  %v250 = vsel %vm233, %v246, 0.0
  %251 = vadd.xlane.f32.xlu0 %v250
  %v252 = vpop.xlane.xlu0 %251
  %v253 = vmul.f32 %v249, %v240
  %v254 = vmul.f32 %v252, %v240
  %v255 = vadd.f32 %v253, 1e-12
  %v256 = vadd.f32 %v254, 1e-12
  %v257 = vrsqrt.pop %v255
  %v258 = vrsqrt.pop %v256
  %v259 = vmul.f32 %v243, %v257
  %v260 = vmul.f32 %v244, %v258
  %v261 = vlaneseq
  %v262 = vshrl.u32 %v261, 7
  %v263 = vsub.s32 0, %v262
  %v264 = vrot.slane %v232, %v263
  %v265 = vmul.f32 %v259, %v264
  %v266 = vmul.f32 %v260, %v264
  %v267 = vlaneseq
  %v268 = vshrl.u32 %v267, 7
  %v269 = vsub.s32 1, %v268
  %v270 = vrot.slane %v232, %v269
  %v271 = vadd.f32 %v265, %v270
  %v272 = vadd.f32 %v266, %v270
  %v273 = vpack.c.bf16 %v272, %v271
  %v274 = vld [vmem:[%s5] sm:$0xf]
  %v275 = vld [vmem:[%s5 + $0x4] sm:$0xf]
  %v276 = vld [vmem:[%s5 + $0x8] sm:$0xf]
  %v277 = vld [vmem:[%s5 + $0xc] sm:$0xf]
  %v278 = vld [vmem:[%s6] sm:$0x1]
  %v280 = vlaneseq
  %v281 = vshrl.u32 %v280, 7
  %v282 = vsub.s32 0, %v281
  %v283 = vrot.slane %v278, %v282
  %v289 = vunpack.c.l.b16 %v274
  %v290 = vunpack.c.l.b16 %v275
  %v291 = vunpack.c.l.b16 %v276
  %v292 = vunpack.c.l.b16 %v277
  %v293 = vpack.c.b16 %v290, %v289
  %v294 = vpack.c.b16 %v292, %v291
  %v298 = vsel %vm233, %v273, 0
  %300 = vmatprep.subr.bf16.mxu0 0
  %301 = vmatpush1.bf16.msra.mxu0 %v293
  %302 = vmatprep.subr.bf16.mxu0 0
  %303 = vmatpush1.bf16.msra.mxu0 %v294
  %304 = vmatprep.subr.bf16.mxu0 0
  %305 = vmatpush1.bf16.msra.mxu0 0
  %306 = vmatprep.subr.bf16.mxu0 0
  %307 = vmatpush1.bf16.msra.mxu0 0
  %308 = vmatprep.subr.bf16.mxu0 0
  %309 = vmatpush1.bf16.msra.mxu0 0
  %310 = vmatprep.subr.bf16.mxu0 0
  %311 = vmatpush1.bf16.msra.mxu0 0
  %312 = vmatprep.subr.bf16.mxu0 0
  %313 = vmatpush1.bf16.msra.mxu0 0
  %314 = vmatprep.subr.bf16.mxu0 0
  %315 = vmatpush1.bf16.msra.mxu0 0
  %316 = vmatprep.subr.bf16.mxu0 0
  %317 = vmatpush1.bf16.msra.mxu0 0
  %318 = vmatprep.subr.bf16.mxu0 0
  %319 = vmatpush1.bf16.msra.mxu0 0
  %320 = vmatprep.subr.bf16.mxu0 0
  %321 = vmatpush1.bf16.msra.mxu0 0
  %322 = vmatprep.subr.bf16.mxu0 0
  %323 = vmatpush1.bf16.msra.mxu0 0
  %324 = vmatprep.subr.bf16.mxu0 0
  %325 = vmatpush1.bf16.msra.mxu0 0
  %326 = vmatprep.subr.bf16.mxu0 0
  %327 = vmatpush1.bf16.msra.mxu0 0
  %328 = vmatprep.subr.bf16.mxu0 0
  %329 = vmatpush1.bf16.msra.mxu0 0
  %330 = vmatprep.subr.bf16.mxu0 0
  %331 = vmatpush1.bf16.msra.mxu0 0
  %332 = vmatprep.mubr.bf16.mxu0 0
  %333 = vmatmul.mubr.bf16.gmra.mrb[0].mxu0 %v298
  %v334 = vpop.f32.mrb[0].mxu0
  %v335 = vadd.f32 %v283, %v334
  %v336 = vpop.f32.mrb[0].mxu0
  %v337 = vpop.f32.mrb[0].mxu0
  %v338 = vadd.f32 %v283, %v337
  %v339 = vpop.f32.mrb[0].mxu0
  %340 = vdwg.mxu0
  %342 = vrot.lane.b32.xlu0 %v335, 96
  %v343 = vpop.permute.xlu0 %342
  %vm344 = vcmask 64512
  %v345 = vsel %vm344, %v335, 0
  %v347 = vsel %vm344, %v343, 0
  %349 = vmatprep.subr.mxu0 0.0
  %350 = vmatpush1.xpose.msra.mxu0 %v347
  %351 = vmatprep.subr.mxu0 0.0
  %352 = vmatpush1.xpose.msra.mxu0 0.0
  %353 = vmatprep.subr.mxu0 0.0
  %354 = vmatpush1.xpose.msra.mxu0 0.0
  %355 = vmatprep.subr.mxu0 0.0
  %356 = vmatpush1.xpose.msra.mxu0 0.0
  %357 = vmatprep.subr.mxu0 0.0
  %358 = vmatpush1.xpose.msra.mxu0 0.0
  %359 = vmatprep.subr.mxu0 0.0
  %360 = vmatpush1.xpose.msra.mxu0 0.0
  %361 = vmatprep.subr.mxu0 0.0
  %362 = vmatpush1.xpose.msra.mxu0 0.0
  %363 = vmatprep.subr.mxu0 0.0
  %364 = vmatpush1.xpose.msra.mxu0 0.0
  %365 = vmatprep.subr.mxu0 0.0
  %366 = vmatpush1.xpose.msra.mxu0 0.0
  %367 = vmatprep.subr.mxu0 0.0
  %368 = vmatpush1.xpose.msra.mxu0 0.0
  %369 = vmatprep.subr.mxu0 0.0
  %370 = vmatpush1.xpose.msra.mxu0 0.0
  %371 = vmatprep.subr.mxu0 0.0
  %372 = vmatpush1.xpose.msra.mxu0 0.0
  %373 = vmatprep.subr.mxu0 0.0
  %374 = vmatpush1.xpose.msra.mxu0 0.0
  %375 = vmatprep.subr.mxu0 0.0
  %376 = vmatpush1.xpose.msra.mxu0 0.0
  %377 = vmatprep.subr.mxu0 0.0
  %378 = vmatpush1.xpose.msra.mxu0 0.0
  %379 = vmatprep.subr.mxu0 0.0
  %380 = vmatpush1.xpose.msra.mxu0 0.0
  %381 = vmatprep.subr.mxu0 0.0
  %382 = vmatpush1.xpose.msra.mxu0 0.0
  %383 = vmatprep.subr.mxu0 0.0
  %384 = vmatpush1.xpose.msra.mxu0 0.0
  %385 = vmatprep.subr.mxu0 0.0
  %386 = vmatpush1.xpose.msra.mxu0 0.0
  %387 = vmatprep.subr.mxu0 0.0
  %388 = vmatpush1.xpose.msra.mxu0 0.0
  %389 = vmatprep.subr.mxu0 0.0
  %390 = vmatpush1.xpose.msra.mxu0 0.0
  %391 = vmatprep.subr.mxu0 0.0
  %392 = vmatpush1.xpose.msra.mxu0 0.0
  %393 = vmatprep.subr.mxu0 0.0
  %394 = vmatpush1.xpose.msra.mxu0 0.0
  %395 = vmatprep.subr.mxu0 0.0
  %396 = vmatpush1.xpose.msra.mxu0 0.0
  %397 = vmatprep.subr.mxu0 0.0
  %398 = vmatpush1.xpose.msra.mxu0 0.0
  %399 = vmatprep.subr.mxu0 0.0
  %400 = vmatpush1.xpose.msra.mxu0 0.0
  %401 = vmatprep.subr.mxu0 0.0
  %402 = vmatpush1.xpose.msra.mxu0 0.0
  %403 = vmatprep.subr.mxu0 0.0
  %404 = vmatpush1.xpose.msra.mxu0 0.0
  %405 = vmatprep.subr.mxu0 0.0
  %406 = vmatpush1.xpose.msra.mxu0 0.0
  %407 = vmatprep.subr.mxu0 0.0
  %408 = vmatpush1.xpose.msra.mxu0 0.0
  %409 = vmatprep.subr.mxu0 0.0
  %410 = vmatpush1.xpose.msra.mxu0 0.0
  %411 = vmatprep.subr.mxu0 0.0
  %412 = vmatpush1.xpose.msra.mxu0 0.0
  %413 = vmatprep.mubr.f32.mxu0 0.0
  %414 = vmatmul.mubr.f32.gmra.mrb[0].mxu0 %v345
  %v415 = vpop.f32.mrb[0].mxu0
  %v416 = vadd.f32 0.0, %v415
  %v417 = vpop.f32.mrb[0].mxu0
  %418 = vdwg.mxu0
  %v419 = vmul.f32 %v416, 0.35355338
  %v421 = vlaneseq
  %v422 = vshrl.u32 %v421, 7
  %v423 = vsub.s32 0, %v422
  %v424 = vrot.slane %v54, %v423
  %v426 = vadd.f32 %v419, %v424
  %427 = vrot.lane.b32.xlu0 %v335, 120
  %v428 = vpop.permute.xlu0 %427
  %429 = vrot.lane.b32.xlu0 %v335, 88
  %v430 = vpop.permute.xlu0 %429
  %v431 = vsel %vm344, %v428, 0
  %v433 = vsel %vm344, %v430, 0
  %435 = vmatprep.subr.mxu0 0.0
  %436 = vmatpush1.xpose.msra.mxu0 %v433
  %437 = vmatprep.subr.mxu0 0.0
  %438 = vmatpush1.xpose.msra.mxu0 0.0
  %439 = vmatprep.subr.mxu0 0.0
  %440 = vmatpush1.xpose.msra.mxu0 0.0
  %441 = vmatprep.subr.mxu0 0.0
  %442 = vmatpush1.xpose.msra.mxu0 0.0
  %443 = vmatprep.subr.mxu0 0.0
  %444 = vmatpush1.xpose.msra.mxu0 0.0
  %445 = vmatprep.subr.mxu0 0.0
  %446 = vmatpush1.xpose.msra.mxu0 0.0
  %447 = vmatprep.subr.mxu0 0.0
  %448 = vmatpush1.xpose.msra.mxu0 0.0
  %449 = vmatprep.subr.mxu0 0.0
  %450 = vmatpush1.xpose.msra.mxu0 0.0
  %451 = vmatprep.subr.mxu0 0.0
  %452 = vmatpush1.xpose.msra.mxu0 0.0
  %453 = vmatprep.subr.mxu0 0.0
  %454 = vmatpush1.xpose.msra.mxu0 0.0
  %455 = vmatprep.subr.mxu0 0.0
  %456 = vmatpush1.xpose.msra.mxu0 0.0
  %457 = vmatprep.subr.mxu0 0.0
  %458 = vmatpush1.xpose.msra.mxu0 0.0
  %459 = vmatprep.subr.mxu0 0.0
  %460 = vmatpush1.xpose.msra.mxu0 0.0
  %461 = vmatprep.subr.mxu0 0.0
  %462 = vmatpush1.xpose.msra.mxu0 0.0
  %463 = vmatprep.subr.mxu0 0.0
  %464 = vmatpush1.xpose.msra.mxu0 0.0
  %465 = vmatprep.subr.mxu0 0.0
  %466 = vmatpush1.xpose.msra.mxu0 0.0
  %467 = vmatprep.subr.mxu0 0.0
  %468 = vmatpush1.xpose.msra.mxu0 0.0
  %469 = vmatprep.subr.mxu0 0.0
  %470 = vmatpush1.xpose.msra.mxu0 0.0
  %471 = vmatprep.subr.mxu0 0.0
  %472 = vmatpush1.xpose.msra.mxu0 0.0
  %473 = vmatprep.subr.mxu0 0.0
  %474 = vmatpush1.xpose.msra.mxu0 0.0
  %475 = vmatprep.subr.mxu0 0.0
  %476 = vmatpush1.xpose.msra.mxu0 0.0
  %477 = vmatprep.subr.mxu0 0.0
  %478 = vmatpush1.xpose.msra.mxu0 0.0
  %479 = vmatprep.subr.mxu0 0.0
  %480 = vmatpush1.xpose.msra.mxu0 0.0
  %481 = vmatprep.subr.mxu0 0.0
  %482 = vmatpush1.xpose.msra.mxu0 0.0
  %483 = vmatprep.subr.mxu0 0.0
  %484 = vmatpush1.xpose.msra.mxu0 0.0
  %485 = vmatprep.subr.mxu0 0.0
  %486 = vmatpush1.xpose.msra.mxu0 0.0
  %487 = vmatprep.subr.mxu0 0.0
  %488 = vmatpush1.xpose.msra.mxu0 0.0
  %489 = vmatprep.subr.mxu0 0.0
  %490 = vmatpush1.xpose.msra.mxu0 0.0
  %491 = vmatprep.subr.mxu0 0.0
  %492 = vmatpush1.xpose.msra.mxu0 0.0
  %493 = vmatprep.subr.mxu0 0.0
  %494 = vmatpush1.xpose.msra.mxu0 0.0
  %495 = vmatprep.subr.mxu0 0.0
  %496 = vmatpush1.xpose.msra.mxu0 0.0
  %497 = vmatprep.subr.mxu0 0.0
  %498 = vmatpush1.xpose.msra.mxu0 0.0
  %499 = vmatprep.mubr.f32.mxu0 0.0
  %500 = vmatmul.mubr.f32.gmra.mrb[0].mxu0 %v431
  %v501 = vpop.f32.mrb[0].mxu0
  %v502 = vadd.f32 0.0, %v501
  %v503 = vpop.f32.mrb[0].mxu0
  %504 = vdwg.mxu0
  %v505 = vmul.f32 %v502, 0.35355338
  %v506 = vadd.f32 %v505, %v424
  %507 = vrot.lane.b32.xlu0 %v335, 112
  %v508 = vpop.permute.xlu0 %507
  %509 = vrot.lane.b32.xlu0 %v335, 80
  %v510 = vpop.permute.xlu0 %509
  %v511 = vsel %vm344, %v508, 0
  %v513 = vsel %vm344, %v510, 0
  %515 = vmatprep.subr.mxu0 0.0
  %516 = vmatpush1.xpose.msra.mxu0 %v513
  %517 = vmatprep.subr.mxu0 0.0
  %518 = vmatpush1.xpose.msra.mxu0 0.0
  %519 = vmatprep.subr.mxu0 0.0
  %520 = vmatpush1.xpose.msra.mxu0 0.0
  %521 = vmatprep.subr.mxu0 0.0
  %522 = vmatpush1.xpose.msra.mxu0 0.0
  %523 = vmatprep.subr.mxu0 0.0
  %524 = vmatpush1.xpose.msra.mxu0 0.0
  %525 = vmatprep.subr.mxu0 0.0
  %526 = vmatpush1.xpose.msra.mxu0 0.0
  %527 = vmatprep.subr.mxu0 0.0
  %528 = vmatpush1.xpose.msra.mxu0 0.0
  %529 = vmatprep.subr.mxu0 0.0
  %530 = vmatpush1.xpose.msra.mxu0 0.0
  %531 = vmatprep.subr.mxu0 0.0
  %532 = vmatpush1.xpose.msra.mxu0 0.0
  %533 = vmatprep.subr.mxu0 0.0
  %534 = vmatpush1.xpose.msra.mxu0 0.0
  %535 = vmatprep.subr.mxu0 0.0
  %536 = vmatpush1.xpose.msra.mxu0 0.0
  %537 = vmatprep.subr.mxu0 0.0
  %538 = vmatpush1.xpose.msra.mxu0 0.0
  %539 = vmatprep.subr.mxu0 0.0
  %540 = vmatpush1.xpose.msra.mxu0 0.0
  %541 = vmatprep.subr.mxu0 0.0
  %542 = vmatpush1.xpose.msra.mxu0 0.0
  %543 = vmatprep.subr.mxu0 0.0
  %544 = vmatpush1.xpose.msra.mxu0 0.0
  %545 = vmatprep.subr.mxu0 0.0
  %546 = vmatpush1.xpose.msra.mxu0 0.0
  %547 = vmatprep.subr.mxu0 0.0
  %548 = vmatpush1.xpose.msra.mxu0 0.0
  %549 = vmatprep.subr.mxu0 0.0
  %550 = vmatpush1.xpose.msra.mxu0 0.0
  %551 = vmatprep.subr.mxu0 0.0
  %552 = vmatpush1.xpose.msra.mxu0 0.0
  %553 = vmatprep.subr.mxu0 0.0
  %554 = vmatpush1.xpose.msra.mxu0 0.0
  %555 = vmatprep.subr.mxu0 0.0
  %556 = vmatpush1.xpose.msra.mxu0 0.0
  %557 = vmatprep.subr.mxu0 0.0
  %558 = vmatpush1.xpose.msra.mxu0 0.0
  %559 = vmatprep.subr.mxu0 0.0
  %560 = vmatpush1.xpose.msra.mxu0 0.0
  %561 = vmatprep.subr.mxu0 0.0
  %562 = vmatpush1.xpose.msra.mxu0 0.0
  %563 = vmatprep.subr.mxu0 0.0
  %564 = vmatpush1.xpose.msra.mxu0 0.0
  %565 = vmatprep.subr.mxu0 0.0
  %566 = vmatpush1.xpose.msra.mxu0 0.0
  %567 = vmatprep.subr.mxu0 0.0
  %568 = vmatpush1.xpose.msra.mxu0 0.0
  %569 = vmatprep.subr.mxu0 0.0
  %570 = vmatpush1.xpose.msra.mxu0 0.0
  %571 = vmatprep.subr.mxu0 0.0
  %572 = vmatpush1.xpose.msra.mxu0 0.0
  %573 = vmatprep.subr.mxu0 0.0
  %574 = vmatpush1.xpose.msra.mxu0 0.0
  %575 = vmatprep.subr.mxu0 0.0
  %576 = vmatpush1.xpose.msra.mxu0 0.0
  %577 = vmatprep.subr.mxu0 0.0
  %578 = vmatpush1.xpose.msra.mxu0 0.0
  %579 = vmatprep.mubr.f32.mxu0 0.0
  %580 = vmatmul.mubr.f32.gmra.mrb[0].mxu0 %v511
  %v581 = vpop.f32.mrb[0].mxu0
  %v582 = vadd.f32 0.0, %v581
  %v583 = vpop.f32.mrb[0].mxu0
  %584 = vdwg.mxu0
  %v585 = vmul.f32 %v582, 0.35355338
  %v586 = vadd.f32 %v585, %v424
  %587 = vrot.lane.b32.xlu0 %v335, 104
  %v588 = vpop.permute.xlu0 %587
  %589 = vrot.lane.b32.xlu0 %v335, 72
  %v590 = vpop.permute.xlu0 %589
  %v591 = vsel %vm344, %v588, 0
  %v593 = vsel %vm344, %v590, 0
  %595 = vmatprep.subr.mxu0 0.0
  %596 = vmatpush1.xpose.msra.mxu0 %v593
  %597 = vmatprep.subr.mxu0 0.0
  %598 = vmatpush1.xpose.msra.mxu0 0.0
  %599 = vmatprep.subr.mxu0 0.0
  %600 = vmatpush1.xpose.msra.mxu0 0.0
  %601 = vmatprep.subr.mxu0 0.0
  %602 = vmatpush1.xpose.msra.mxu0 0.0
  %603 = vmatprep.subr.mxu0 0.0
  %604 = vmatpush1.xpose.msra.mxu0 0.0
  %605 = vmatprep.subr.mxu0 0.0
  %606 = vmatpush1.xpose.msra.mxu0 0.0
  %607 = vmatprep.subr.mxu0 0.0
  %608 = vmatpush1.xpose.msra.mxu0 0.0
  %609 = vmatprep.subr.mxu0 0.0
  %610 = vmatpush1.xpose.msra.mxu0 0.0
  %611 = vmatprep.subr.mxu0 0.0
  %612 = vmatpush1.xpose.msra.mxu0 0.0
  %613 = vmatprep.subr.mxu0 0.0
  %614 = vmatpush1.xpose.msra.mxu0 0.0
  %615 = vmatprep.subr.mxu0 0.0
  %616 = vmatpush1.xpose.msra.mxu0 0.0
  %617 = vmatprep.subr.mxu0 0.0
  %618 = vmatpush1.xpose.msra.mxu0 0.0
  %619 = vmatprep.subr.mxu0 0.0
  %620 = vmatpush1.xpose.msra.mxu0 0.0
  %621 = vmatprep.subr.mxu0 0.0
  %622 = vmatpush1.xpose.msra.mxu0 0.0
  %623 = vmatprep.subr.mxu0 0.0
  %624 = vmatpush1.xpose.msra.mxu0 0.0
  %625 = vmatprep.subr.mxu0 0.0
  %626 = vmatpush1.xpose.msra.mxu0 0.0
  %627 = vmatprep.subr.mxu0 0.0
  %628 = vmatpush1.xpose.msra.mxu0 0.0
  %629 = vmatprep.subr.mxu0 0.0
  %630 = vmatpush1.xpose.msra.mxu0 0.0
  %631 = vmatprep.subr.mxu0 0.0
  %632 = vmatpush1.xpose.msra.mxu0 0.0
  %633 = vmatprep.subr.mxu0 0.0
  %634 = vmatpush1.xpose.msra.mxu0 0.0
  %635 = vmatprep.subr.mxu0 0.0
  %636 = vmatpush1.xpose.msra.mxu0 0.0
  %637 = vmatprep.subr.mxu0 0.0
  %638 = vmatpush1.xpose.msra.mxu0 0.0
  %639 = vmatprep.subr.mxu0 0.0
  %640 = vmatpush1.xpose.msra.mxu0 0.0
  %641 = vmatprep.subr.mxu0 0.0
  %642 = vmatpush1.xpose.msra.mxu0 0.0
  %643 = vmatprep.subr.mxu0 0.0
  %644 = vmatpush1.xpose.msra.mxu0 0.0
  %645 = vmatprep.subr.mxu0 0.0
  %646 = vmatpush1.xpose.msra.mxu0 0.0
  %647 = vmatprep.subr.mxu0 0.0
  %648 = vmatpush1.xpose.msra.mxu0 0.0
  %649 = vmatprep.subr.mxu0 0.0
  %650 = vmatpush1.xpose.msra.mxu0 0.0
  %651 = vmatprep.subr.mxu0 0.0
  %652 = vmatpush1.xpose.msra.mxu0 0.0
  %653 = vmatprep.subr.mxu0 0.0
  %654 = vmatpush1.xpose.msra.mxu0 0.0
  %655 = vmatprep.subr.mxu0 0.0
  %656 = vmatpush1.xpose.msra.mxu0 0.0
  %657 = vmatprep.subr.mxu0 0.0
  %658 = vmatpush1.xpose.msra.mxu0 0.0
  %659 = vmatprep.mubr.f32.mxu0 0.0
  %660 = vmatmul.mubr.f32.gmra.mrb[0].mxu0 %v591
  %v661 = vpop.f32.mrb[0].mxu0
  %v662 = vadd.f32 0.0, %v661
  %v663 = vpop.f32.mrb[0].mxu0
  %664 = vdwg.mxu0
  %v665 = vmul.f32 %v662, 0.35355338
  %v666 = vadd.f32 %v665, %v424
  %668 = vrot.lane.b32.xlu0 %v338, 96
  %v669 = vpop.permute.xlu0 %668
  %v670 = vsel %vm344, %v338, 0
  %v672 = vsel %vm344, %v669, 0
  %674 = vmatprep.subr.mxu0 0.0
  %675 = vmatpush1.xpose.msra.mxu0 %v672
  %676 = vmatprep.subr.mxu0 0.0
  %677 = vmatpush1.xpose.msra.mxu0 0.0
  %678 = vmatprep.subr.mxu0 0.0
  %679 = vmatpush1.xpose.msra.mxu0 0.0
  %680 = vmatprep.subr.mxu0 0.0
  %681 = vmatpush1.xpose.msra.mxu0 0.0
  %682 = vmatprep.subr.mxu0 0.0
  %683 = vmatpush1.xpose.msra.mxu0 0.0
  %684 = vmatprep.subr.mxu0 0.0
  %685 = vmatpush1.xpose.msra.mxu0 0.0
  %686 = vmatprep.subr.mxu0 0.0
  %687 = vmatpush1.xpose.msra.mxu0 0.0
  %688 = vmatprep.subr.mxu0 0.0
  %689 = vmatpush1.xpose.msra.mxu0 0.0
  %690 = vmatprep.subr.mxu0 0.0
  %691 = vmatpush1.xpose.msra.mxu0 0.0
  %692 = vmatprep.subr.mxu0 0.0
  %693 = vmatpush1.xpose.msra.mxu0 0.0
  %694 = vmatprep.subr.mxu0 0.0
  %695 = vmatpush1.xpose.msra.mxu0 0.0
  %696 = vmatprep.subr.mxu0 0.0
  %697 = vmatpush1.xpose.msra.mxu0 0.0
  %698 = vmatprep.subr.mxu0 0.0
  %699 = vmatpush1.xpose.msra.mxu0 0.0
  %700 = vmatprep.subr.mxu0 0.0
  %701 = vmatpush1.xpose.msra.mxu0 0.0
  %702 = vmatprep.subr.mxu0 0.0
  %703 = vmatpush1.xpose.msra.mxu0 0.0
  %704 = vmatprep.subr.mxu0 0.0
  %705 = vmatpush1.xpose.msra.mxu0 0.0
  %706 = vmatprep.subr.mxu0 0.0
  %707 = vmatpush1.xpose.msra.mxu0 0.0
  %708 = vmatprep.subr.mxu0 0.0
  %709 = vmatpush1.xpose.msra.mxu0 0.0
  %710 = vmatprep.subr.mxu0 0.0
  %711 = vmatpush1.xpose.msra.mxu0 0.0
  %712 = vmatprep.subr.mxu0 0.0
  %713 = vmatpush1.xpose.msra.mxu0 0.0
  %714 = vmatprep.subr.mxu0 0.0
  %715 = vmatpush1.xpose.msra.mxu0 0.0
  %716 = vmatprep.subr.mxu0 0.0
  %717 = vmatpush1.xpose.msra.mxu0 0.0
  %718 = vmatprep.subr.mxu0 0.0
  %719 = vmatpush1.xpose.msra.mxu0 0.0
  %720 = vmatprep.subr.mxu0 0.0
  %721 = vmatpush1.xpose.msra.mxu0 0.0
  %722 = vmatprep.subr.mxu0 0.0
  %723 = vmatpush1.xpose.msra.mxu0 0.0
  %724 = vmatprep.subr.mxu0 0.0
  %725 = vmatpush1.xpose.msra.mxu0 0.0
  %726 = vmatprep.subr.mxu0 0.0
  %727 = vmatpush1.xpose.msra.mxu0 0.0
  %728 = vmatprep.subr.mxu0 0.0
  %729 = vmatpush1.xpose.msra.mxu0 0.0
  %730 = vmatprep.subr.mxu0 0.0
  %731 = vmatpush1.xpose.msra.mxu0 0.0
  %732 = vmatprep.subr.mxu0 0.0
  %733 = vmatpush1.xpose.msra.mxu0 0.0
  %734 = vmatprep.subr.mxu0 0.0
  %735 = vmatpush1.xpose.msra.mxu0 0.0
  %736 = vmatprep.subr.mxu0 0.0
  %737 = vmatpush1.xpose.msra.mxu0 0.0
  %738 = vmatprep.mubr.f32.mxu0 0.0
  %739 = vmatmul.mubr.f32.gmra.mrb[0].mxu0 %v670
  %v740 = vpop.f32.mrb[0].mxu0
  %v741 = vadd.f32 0.0, %v740
  %v742 = vpop.f32.mrb[0].mxu0
  %743 = vdwg.mxu0
  %v744 = vmul.f32 %v741, 0.35355338
  %v745 = vadd.f32 %v744, %v424
  %746 = vrot.lane.b32.xlu0 %v338, 120
  %v747 = vpop.permute.xlu0 %746
  %748 = vrot.lane.b32.xlu0 %v338, 88
  %v749 = vpop.permute.xlu0 %748
  %v750 = vsel %vm344, %v747, 0
  %v752 = vsel %vm344, %v749, 0
  %754 = vmatprep.subr.mxu0 0.0
  %755 = vmatpush1.xpose.msra.mxu0 %v752
  %756 = vmatprep.subr.mxu0 0.0
  %757 = vmatpush1.xpose.msra.mxu0 0.0
  %758 = vmatprep.subr.mxu0 0.0
  %759 = vmatpush1.xpose.msra.mxu0 0.0
  %760 = vmatprep.subr.mxu0 0.0
  %761 = vmatpush1.xpose.msra.mxu0 0.0
  %762 = vmatprep.subr.mxu0 0.0
  %763 = vmatpush1.xpose.msra.mxu0 0.0
  %764 = vmatprep.subr.mxu0 0.0
  %765 = vmatpush1.xpose.msra.mxu0 0.0
  %766 = vmatprep.subr.mxu0 0.0
  %767 = vmatpush1.xpose.msra.mxu0 0.0
  %768 = vmatprep.subr.mxu0 0.0
  %769 = vmatpush1.xpose.msra.mxu0 0.0
  %770 = vmatprep.subr.mxu0 0.0
  %771 = vmatpush1.xpose.msra.mxu0 0.0
  %772 = vmatprep.subr.mxu0 0.0
  %773 = vmatpush1.xpose.msra.mxu0 0.0
  %774 = vmatprep.subr.mxu0 0.0
  %775 = vmatpush1.xpose.msra.mxu0 0.0
  %776 = vmatprep.subr.mxu0 0.0
  %777 = vmatpush1.xpose.msra.mxu0 0.0
  %778 = vmatprep.subr.mxu0 0.0
  %779 = vmatpush1.xpose.msra.mxu0 0.0
  %780 = vmatprep.subr.mxu0 0.0
  %781 = vmatpush1.xpose.msra.mxu0 0.0
  %782 = vmatprep.subr.mxu0 0.0
  %783 = vmatpush1.xpose.msra.mxu0 0.0
  %784 = vmatprep.subr.mxu0 0.0
  %785 = vmatpush1.xpose.msra.mxu0 0.0
  %786 = vmatprep.subr.mxu0 0.0
  %787 = vmatpush1.xpose.msra.mxu0 0.0
  %788 = vmatprep.subr.mxu0 0.0
  %789 = vmatpush1.xpose.msra.mxu0 0.0
  %790 = vmatprep.subr.mxu0 0.0
  %791 = vmatpush1.xpose.msra.mxu0 0.0
  %792 = vmatprep.subr.mxu0 0.0
  %793 = vmatpush1.xpose.msra.mxu0 0.0
  %794 = vmatprep.subr.mxu0 0.0
  %795 = vmatpush1.xpose.msra.mxu0 0.0
  %796 = vmatprep.subr.mxu0 0.0
  %797 = vmatpush1.xpose.msra.mxu0 0.0
  %798 = vmatprep.subr.mxu0 0.0
  %799 = vmatpush1.xpose.msra.mxu0 0.0
  %800 = vmatprep.subr.mxu0 0.0
  %801 = vmatpush1.xpose.msra.mxu0 0.0
  %802 = vmatprep.subr.mxu0 0.0
  %803 = vmatpush1.xpose.msra.mxu0 0.0
  %804 = vmatprep.subr.mxu0 0.0
  %805 = vmatpush1.xpose.msra.mxu0 0.0
  %806 = vmatprep.subr.mxu0 0.0
  %807 = vmatpush1.xpose.msra.mxu0 0.0
  %808 = vmatprep.subr.mxu0 0.0
  %809 = vmatpush1.xpose.msra.mxu0 0.0
  %810 = vmatprep.subr.mxu0 0.0
  %811 = vmatpush1.xpose.msra.mxu0 0.0
  %812 = vmatprep.subr.mxu0 0.0
  %813 = vmatpush1.xpose.msra.mxu0 0.0
  %814 = vmatprep.subr.mxu0 0.0
  %815 = vmatpush1.xpose.msra.mxu0 0.0
  %816 = vmatprep.subr.mxu0 0.0
  %817 = vmatpush1.xpose.msra.mxu0 0.0
  %818 = vmatprep.mubr.f32.mxu0 0.0
  %819 = vmatmul.mubr.f32.gmra.mrb[0].mxu0 %v750
  %v820 = vpop.f32.mrb[0].mxu0
  %v821 = vadd.f32 0.0, %v820
  %v822 = vpop.f32.mrb[0].mxu0
  %823 = vdwg.mxu0
  %v824 = vmul.f32 %v821, 0.35355338
  %v825 = vadd.f32 %v824, %v424
  %826 = vrot.lane.b32.xlu0 %v338, 112
  %v827 = vpop.permute.xlu0 %826
  %828 = vrot.lane.b32.xlu0 %v338, 80
  %v829 = vpop.permute.xlu0 %828
  %v830 = vsel %vm344, %v827, 0
  %v832 = vsel %vm344, %v829, 0
  %834 = vmatprep.subr.mxu0 0.0
  %835 = vmatpush1.xpose.msra.mxu0 %v832
  %836 = vmatprep.subr.mxu0 0.0
  %837 = vmatpush1.xpose.msra.mxu0 0.0
  %838 = vmatprep.subr.mxu0 0.0
  %839 = vmatpush1.xpose.msra.mxu0 0.0
  %840 = vmatprep.subr.mxu0 0.0
  %841 = vmatpush1.xpose.msra.mxu0 0.0
  %842 = vmatprep.subr.mxu0 0.0
  %843 = vmatpush1.xpose.msra.mxu0 0.0
  %844 = vmatprep.subr.mxu0 0.0
  %845 = vmatpush1.xpose.msra.mxu0 0.0
  %846 = vmatprep.subr.mxu0 0.0
  %847 = vmatpush1.xpose.msra.mxu0 0.0
  %848 = vmatprep.subr.mxu0 0.0
  %849 = vmatpush1.xpose.msra.mxu0 0.0
  %850 = vmatprep.subr.mxu0 0.0
  %851 = vmatpush1.xpose.msra.mxu0 0.0
  %852 = vmatprep.subr.mxu0 0.0
  %853 = vmatpush1.xpose.msra.mxu0 0.0
  %854 = vmatprep.subr.mxu0 0.0
  %855 = vmatpush1.xpose.msra.mxu0 0.0
  %856 = vmatprep.subr.mxu0 0.0
  %857 = vmatpush1.xpose.msra.mxu0 0.0
  %858 = vmatprep.subr.mxu0 0.0
  %859 = vmatpush1.xpose.msra.mxu0 0.0
  %860 = vmatprep.subr.mxu0 0.0
  %861 = vmatpush1.xpose.msra.mxu0 0.0
  %862 = vmatprep.subr.mxu0 0.0
  %863 = vmatpush1.xpose.msra.mxu0 0.0
  %864 = vmatprep.subr.mxu0 0.0
  %865 = vmatpush1.xpose.msra.mxu0 0.0
  %866 = vmatprep.subr.mxu0 0.0
  %867 = vmatpush1.xpose.msra.mxu0 0.0
  %868 = vmatprep.subr.mxu0 0.0
  %869 = vmatpush1.xpose.msra.mxu0 0.0
  %870 = vmatprep.subr.mxu0 0.0
  %871 = vmatpush1.xpose.msra.mxu0 0.0
  %872 = vmatprep.subr.mxu0 0.0
  %873 = vmatpush1.xpose.msra.mxu0 0.0
  %874 = vmatprep.subr.mxu0 0.0
  %875 = vmatpush1.xpose.msra.mxu0 0.0
  %876 = vmatprep.subr.mxu0 0.0
  %877 = vmatpush1.xpose.msra.mxu0 0.0
  %878 = vmatprep.subr.mxu0 0.0
  %879 = vmatpush1.xpose.msra.mxu0 0.0
  %880 = vmatprep.subr.mxu0 0.0
  %881 = vmatpush1.xpose.msra.mxu0 0.0
  %882 = vmatprep.subr.mxu0 0.0
  %883 = vmatpush1.xpose.msra.mxu0 0.0
  %884 = vmatprep.subr.mxu0 0.0
  %885 = vmatpush1.xpose.msra.mxu0 0.0
  %886 = vmatprep.subr.mxu0 0.0
  %887 = vmatpush1.xpose.msra.mxu0 0.0
  %888 = vmatprep.subr.mxu0 0.0
  %889 = vmatpush1.xpose.msra.mxu0 0.0
  %890 = vmatprep.subr.mxu0 0.0
  %891 = vmatpush1.xpose.msra.mxu0 0.0
  %892 = vmatprep.subr.mxu0 0.0
  %893 = vmatpush1.xpose.msra.mxu0 0.0
  %894 = vmatprep.subr.mxu0 0.0
  %895 = vmatpush1.xpose.msra.mxu0 0.0
  %896 = vmatprep.subr.mxu0 0.0
  %897 = vmatpush1.xpose.msra.mxu0 0.0
  %898 = vmatprep.mubr.f32.mxu0 0.0
  %899 = vmatmul.mubr.f32.gmra.mrb[0].mxu0 %v830
  %v900 = vpop.f32.mrb[0].mxu0
  %v901 = vadd.f32 0.0, %v900
  %v902 = vpop.f32.mrb[0].mxu0
  %903 = vdwg.mxu0
  %v904 = vmul.f32 %v901, 0.35355338
  %v905 = vadd.f32 %v904, %v424
  %906 = vrot.lane.b32.xlu0 %v338, 104
  %v907 = vpop.permute.xlu0 %906
  %908 = vrot.lane.b32.xlu0 %v338, 72
  %v909 = vpop.permute.xlu0 %908
  %v910 = vsel %vm344, %v907, 0
  %v912 = vsel %vm344, %v909, 0
  %914 = vmatprep.subr.mxu0 0.0
  %915 = vmatpush1.xpose.msra.mxu0 %v912
  %916 = vmatprep.subr.mxu0 0.0
  %917 = vmatpush1.xpose.msra.mxu0 0.0
  %918 = vmatprep.subr.mxu0 0.0
  %919 = vmatpush1.xpose.msra.mxu0 0.0
  %920 = vmatprep.subr.mxu0 0.0
  %921 = vmatpush1.xpose.msra.mxu0 0.0
  %922 = vmatprep.subr.mxu0 0.0
  %923 = vmatpush1.xpose.msra.mxu0 0.0
  %924 = vmatprep.subr.mxu0 0.0
  %925 = vmatpush1.xpose.msra.mxu0 0.0
  %926 = vmatprep.subr.mxu0 0.0
  %927 = vmatpush1.xpose.msra.mxu0 0.0
  %928 = vmatprep.subr.mxu0 0.0
  %929 = vmatpush1.xpose.msra.mxu0 0.0
  %930 = vmatprep.subr.mxu0 0.0
  %931 = vmatpush1.xpose.msra.mxu0 0.0
  %932 = vmatprep.subr.mxu0 0.0
  %933 = vmatpush1.xpose.msra.mxu0 0.0
  %934 = vmatprep.subr.mxu0 0.0
  %935 = vmatpush1.xpose.msra.mxu0 0.0
  %936 = vmatprep.subr.mxu0 0.0
  %937 = vmatpush1.xpose.msra.mxu0 0.0
  %938 = vmatprep.subr.mxu0 0.0
  %939 = vmatpush1.xpose.msra.mxu0 0.0
  %940 = vmatprep.subr.mxu0 0.0
  %941 = vmatpush1.xpose.msra.mxu0 0.0
  %942 = vmatprep.subr.mxu0 0.0
  %943 = vmatpush1.xpose.msra.mxu0 0.0
  %944 = vmatprep.subr.mxu0 0.0
  %945 = vmatpush1.xpose.msra.mxu0 0.0
  %946 = vmatprep.subr.mxu0 0.0
  %947 = vmatpush1.xpose.msra.mxu0 0.0
  %948 = vmatprep.subr.mxu0 0.0
  %949 = vmatpush1.xpose.msra.mxu0 0.0
  %950 = vmatprep.subr.mxu0 0.0
  %951 = vmatpush1.xpose.msra.mxu0 0.0
  %952 = vmatprep.subr.mxu0 0.0
  %953 = vmatpush1.xpose.msra.mxu0 0.0
  %954 = vmatprep.subr.mxu0 0.0
  %955 = vmatpush1.xpose.msra.mxu0 0.0
  %956 = vmatprep.subr.mxu0 0.0
  %957 = vmatpush1.xpose.msra.mxu0 0.0
  %958 = vmatprep.subr.mxu0 0.0
  %959 = vmatpush1.xpose.msra.mxu0 0.0
  %960 = vmatprep.subr.mxu0 0.0
  %961 = vmatpush1.xpose.msra.mxu0 0.0
  %962 = vmatprep.subr.mxu0 0.0
  %963 = vmatpush1.xpose.msra.mxu0 0.0
  %964 = vmatprep.subr.mxu0 0.0
  %965 = vmatpush1.xpose.msra.mxu0 0.0
  %966 = vmatprep.subr.mxu0 0.0
  %967 = vmatpush1.xpose.msra.mxu0 0.0
  %968 = vmatprep.subr.mxu0 0.0
  %969 = vmatpush1.xpose.msra.mxu0 0.0
  %970 = vmatprep.subr.mxu0 0.0
  %971 = vmatpush1.xpose.msra.mxu0 0.0
  %972 = vmatprep.subr.mxu0 0.0
  %973 = vmatpush1.xpose.msra.mxu0 0.0
  %974 = vmatprep.subr.mxu0 0.0
  %975 = vmatpush1.xpose.msra.mxu0 0.0
  %976 = vmatprep.subr.mxu0 0.0
  %977 = vmatpush1.xpose.msra.mxu0 0.0
  %978 = vmatprep.mubr.f32.mxu0 0.0
  %979 = vmatmul.mubr.f32.gmra.mrb[0].mxu0 %v910
  %v980 = vpop.f32.mrb[0].mxu0
  %v981 = vadd.f32 0.0, %v980
  %v982 = vpop.f32.mrb[0].mxu0
  %983 = vdwg.mxu0
  %v984 = vmul.f32 %v981, 0.35355338
  %v985 = vadd.f32 %v984, %v424
  %v986 = vsel %vm344, %v426, -inf
  %987 = vmax.xlane.f32.xlu0 %v986
  %v988 = vpop.xlane.xlu0 %987
  %v989 = vsub.f32 %v426, %v988
  %v990 = vmul.f32 %v989, 1.442695
  %v991 = vpow.pop %v990
  %v992 = vsel %vm344, %v506, -inf
  %993 = vmax.xlane.f32.xlu0 %v992
  %v994 = vpop.xlane.xlu0 %993
  %v995 = vsub.f32 %v506, %v994
  %v996 = vmul.f32 %v995, 1.442695
  %v997 = vpow.pop %v996
  %v998 = vsel %vm344, %v586, -inf
  %999 = vmax.xlane.f32.xlu0 %v998
  %v1000 = vpop.xlane.xlu0 %999
  %v1001 = vsub.f32 %v586, %v1000
  %v1002 = vmul.f32 %v1001, 1.442695
  %v1003 = vpow.pop %v1002
  %v1004 = vsel %vm344, %v666, -inf
  %1005 = vmax.xlane.f32.xlu0 %v1004
  %v1006 = vpop.xlane.xlu0 %1005
  %v1007 = vsub.f32 %v666, %v1006
  %v1008 = vmul.f32 %v1007, 1.442695
  %v1009 = vpow.pop %v1008
  %v1010 = vsel %vm344, %v745, -inf
  %1011 = vmax.xlane.f32.xlu0 %v1010
  %v1012 = vpop.xlane.xlu0 %1011
  %v1013 = vsub.f32 %v745, %v1012
  %v1014 = vmul.f32 %v1013, 1.442695
  %v1015 = vpow.pop %v1014
  %v1016 = vsel %vm344, %v825, -inf
  %1017 = vmax.xlane.f32.xlu0 %v1016
  %v1018 = vpop.xlane.xlu0 %1017
  %v1019 = vsub.f32 %v825, %v1018
  %v1020 = vmul.f32 %v1019, 1.442695
  %v1021 = vpow.pop %v1020
  %v1022 = vsel %vm344, %v905, -inf
  %1023 = vmax.xlane.f32.xlu0 %v1022
  %v1024 = vpop.xlane.xlu0 %1023
  %v1025 = vsub.f32 %v905, %v1024
  %v1026 = vmul.f32 %v1025, 1.442695
  %v1027 = vpow.pop %v1026
  %v1028 = vsel %vm344, %v985, -inf
  %1029 = vmax.xlane.f32.xlu0 %v1028
  %v1030 = vpop.xlane.xlu0 %1029
  %v1031 = vsub.f32 %v985, %v1030
  %v1032 = vmul.f32 %v1031, 1.442695
  %v1033 = vpow.pop %v1032
  %v1034 = vsel %vm344, %v991, 0.0
  %1035 = vadd.xlane.f32.xlu0 %v1034
  %v1036 = vpop.xlane.xlu0 %1035
  %v1037 = vrcp.pop %v1036
  %v1038 = vmul.f32 %v991, %v1037
  %v1039 = vsel %vm344, %v997, 0.0
  %1040 = vadd.xlane.f32.xlu0 %v1039
  %v1041 = vpop.xlane.xlu0 %1040
  %v1042 = vrcp.pop %v1041
  %v1043 = vmul.f32 %v997, %v1042
  %v1044 = vsel %vm344, %v1003, 0.0
  %1045 = vadd.xlane.f32.xlu0 %v1044
  %v1046 = vpop.xlane.xlu0 %1045
  %v1047 = vrcp.pop %v1046
  %v1048 = vmul.f32 %v1003, %v1047
  %v1049 = vsel %vm344, %v1009, 0.0
  %1050 = vadd.xlane.f32.xlu0 %v1049
  %v1051 = vpop.xlane.xlu0 %1050
  %v1052 = vrcp.pop %v1051
  %v1053 = vmul.f32 %v1009, %v1052
  %v1054 = vsel %vm344, %v1015, 0.0
  %1055 = vadd.xlane.f32.xlu0 %v1054
  %v1056 = vpop.xlane.xlu0 %1055
  %v1057 = vrcp.pop %v1056
  %v1058 = vmul.f32 %v1015, %v1057
  %v1059 = vsel %vm344, %v1021, 0.0
  %1060 = vadd.xlane.f32.xlu0 %v1059
  %v1061 = vpop.xlane.xlu0 %1060
  %v1062 = vrcp.pop %v1061
  %v1063 = vmul.f32 %v1021, %v1062
  %v1064 = vsel %vm344, %v1027, 0.0
  %1065 = vadd.xlane.f32.xlu0 %v1064
  %v1066 = vpop.xlane.xlu0 %1065
  %v1067 = vrcp.pop %v1066
  %v1068 = vmul.f32 %v1027, %v1067
  %v1069 = vsel %vm344, %v1033, 0.0
  %1070 = vadd.xlane.f32.xlu0 %v1069
  %v1071 = vpop.xlane.xlu0 %1070
  %v1072 = vrcp.pop %v1071
  %v1073 = vmul.f32 %v1033, %v1072
  %1074 = vrot.lane.b32.xlu0 %v335, 64
  %v1075 = vpop.permute.xlu0 %1074
  %v1078 = vsel %vm344, %v1038, 0
  %1080 = vmatprep.subr.mxu0 0.0
  %1081 = vmatpush1.msra.mxu0 %v1075
  %1082 = vmatprep.subr.mxu0 0.0
  %1083 = vmatpush1.msra.mxu0 0.0
  %1084 = vmatprep.subr.mxu0 0.0
  %1085 = vmatpush1.msra.mxu0 0.0
  %1086 = vmatprep.subr.mxu0 0.0
  %1087 = vmatpush1.msra.mxu0 0.0
  %1088 = vmatprep.subr.mxu0 0.0
  %1089 = vmatpush1.msra.mxu0 0.0
  %1090 = vmatprep.subr.mxu0 0.0
  %1091 = vmatpush1.msra.mxu0 0.0
  %1092 = vmatprep.subr.mxu0 0.0
  %1093 = vmatpush1.msra.mxu0 0.0
  %1094 = vmatprep.subr.mxu0 0.0
  %1095 = vmatpush1.msra.mxu0 0.0
  %1096 = vmatprep.subr.mxu0 0.0
  %1097 = vmatpush1.msra.mxu0 0.0
  %1098 = vmatprep.subr.mxu0 0.0
  %1099 = vmatpush1.msra.mxu0 0.0
  %1100 = vmatprep.subr.mxu0 0.0
  %1101 = vmatpush1.msra.mxu0 0.0
  %1102 = vmatprep.subr.mxu0 0.0
  %1103 = vmatpush1.msra.mxu0 0.0
  %1104 = vmatprep.subr.mxu0 0.0
  %1105 = vmatpush1.msra.mxu0 0.0
  %1106 = vmatprep.subr.mxu0 0.0
  %1107 = vmatpush1.msra.mxu0 0.0
  %1108 = vmatprep.subr.mxu0 0.0
  %1109 = vmatpush1.msra.mxu0 0.0
  %1110 = vmatprep.subr.mxu0 0.0
  %1111 = vmatpush1.msra.mxu0 0.0
  %1112 = vmatprep.subr.mxu0 0.0
  %1113 = vmatpush1.msra.mxu0 0.0
  %1114 = vmatprep.subr.mxu0 0.0
  %1115 = vmatpush1.msra.mxu0 0.0
  %1116 = vmatprep.subr.mxu0 0.0
  %1117 = vmatpush1.msra.mxu0 0.0
  %1118 = vmatprep.subr.mxu0 0.0
  %1119 = vmatpush1.msra.mxu0 0.0
  %1120 = vmatprep.subr.mxu0 0.0
  %1121 = vmatpush1.msra.mxu0 0.0
  %1122 = vmatprep.subr.mxu0 0.0
  %1123 = vmatpush1.msra.mxu0 0.0
  %1124 = vmatprep.subr.mxu0 0.0
  %1125 = vmatpush1.msra.mxu0 0.0
  %1126 = vmatprep.subr.mxu0 0.0
  %1127 = vmatpush1.msra.mxu0 0.0
  %1128 = vmatprep.subr.mxu0 0.0
  %1129 = vmatpush1.msra.mxu0 0.0
  %1130 = vmatprep.subr.mxu0 0.0
  %1131 = vmatpush1.msra.mxu0 0.0
  %1132 = vmatprep.subr.mxu0 0.0
  %1133 = vmatpush1.msra.mxu0 0.0
  %1134 = vmatprep.subr.mxu0 0.0
  %1135 = vmatpush1.msra.mxu0 0.0
  %1136 = vmatprep.subr.mxu0 0.0
  %1137 = vmatpush1.msra.mxu0 0.0
  %1138 = vmatprep.subr.mxu0 0.0
  %1139 = vmatpush1.msra.mxu0 0.0
  %1140 = vmatprep.subr.mxu0 0.0
  %1141 = vmatpush1.msra.mxu0 0.0
  %1142 = vmatprep.subr.mxu0 0.0
  %1143 = vmatpush1.msra.mxu0 0.0
  %1144 = vmatprep.mubr.f32.mxu0 0.0
  %1145 = vmatmul.mubr.f32.gmra.mrb[0].mxu0 %v1078
  %v1146 = vpop.f32.mrb[0].mxu0
  %v1147 = vadd.f32 0.0, %v1146
  %v1148 = vpop.f32.mrb[0].mxu0
  %1149 = vdwg.mxu0
  %1150 = vrot.lane.b32.xlu0 %v335, 56
  %v1151 = vpop.permute.xlu0 %1150
  %v1154 = vsel %vm344, %v1043, 0
  %1156 = vmatprep.subr.mxu0 0.0
  %1157 = vmatpush1.msra.mxu0 %v1151
  %1158 = vmatprep.subr.mxu0 0.0
  %1159 = vmatpush1.msra.mxu0 0.0
  %1160 = vmatprep.subr.mxu0 0.0
  %1161 = vmatpush1.msra.mxu0 0.0
  %1162 = vmatprep.subr.mxu0 0.0
  %1163 = vmatpush1.msra.mxu0 0.0
  %1164 = vmatprep.subr.mxu0 0.0
  %1165 = vmatpush1.msra.mxu0 0.0
  %1166 = vmatprep.subr.mxu0 0.0
  %1167 = vmatpush1.msra.mxu0 0.0
  %1168 = vmatprep.subr.mxu0 0.0
  %1169 = vmatpush1.msra.mxu0 0.0
  %1170 = vmatprep.subr.mxu0 0.0
  %1171 = vmatpush1.msra.mxu0 0.0
  %1172 = vmatprep.subr.mxu0 0.0
  %1173 = vmatpush1.msra.mxu0 0.0
  %1174 = vmatprep.subr.mxu0 0.0
  %1175 = vmatpush1.msra.mxu0 0.0
  %1176 = vmatprep.subr.mxu0 0.0
  %1177 = vmatpush1.msra.mxu0 0.0
  %1178 = vmatprep.subr.mxu0 0.0
  %1179 = vmatpush1.msra.mxu0 0.0
  %1180 = vmatprep.subr.mxu0 0.0
  %1181 = vmatpush1.msra.mxu0 0.0
  %1182 = vmatprep.subr.mxu0 0.0
  %1183 = vmatpush1.msra.mxu0 0.0
  %1184 = vmatprep.subr.mxu0 0.0
  %1185 = vmatpush1.msra.mxu0 0.0
  %1186 = vmatprep.subr.mxu0 0.0
  %1187 = vmatpush1.msra.mxu0 0.0
  %1188 = vmatprep.subr.mxu0 0.0
  %1189 = vmatpush1.msra.mxu0 0.0
  %1190 = vmatprep.subr.mxu0 0.0
  %1191 = vmatpush1.msra.mxu0 0.0
  %1192 = vmatprep.subr.mxu0 0.0
  %1193 = vmatpush1.msra.mxu0 0.0
  %1194 = vmatprep.subr.mxu0 0.0
  %1195 = vmatpush1.msra.mxu0 0.0
  %1196 = vmatprep.subr.mxu0 0.0
  %1197 = vmatpush1.msra.mxu0 0.0
  %1198 = vmatprep.subr.mxu0 0.0
  %1199 = vmatpush1.msra.mxu0 0.0
  %1200 = vmatprep.subr.mxu0 0.0
  %1201 = vmatpush1.msra.mxu0 0.0
  %1202 = vmatprep.subr.mxu0 0.0
  %1203 = vmatpush1.msra.mxu0 0.0
  %1204 = vmatprep.subr.mxu0 0.0
  %1205 = vmatpush1.msra.mxu0 0.0
  %1206 = vmatprep.subr.mxu0 0.0
  %1207 = vmatpush1.msra.mxu0 0.0
  %1208 = vmatprep.subr.mxu0 0.0
  %1209 = vmatpush1.msra.mxu0 0.0
  %1210 = vmatprep.subr.mxu0 0.0
  %1211 = vmatpush1.msra.mxu0 0.0
  %1212 = vmatprep.subr.mxu0 0.0
  %1213 = vmatpush1.msra.mxu0 0.0
  %1214 = vmatprep.subr.mxu0 0.0
  %1215 = vmatpush1.msra.mxu0 0.0
  %1216 = vmatprep.subr.mxu0 0.0
  %1217 = vmatpush1.msra.mxu0 0.0
  %1218 = vmatprep.subr.mxu0 0.0
  %1219 = vmatpush1.msra.mxu0 0.0
  %1220 = vmatprep.mubr.f32.mxu0 0.0
  %1221 = vmatmul.mubr.f32.gmra.mrb[0].mxu0 %v1154
  %v1222 = vpop.f32.mrb[0].mxu0
  %v1223 = vadd.f32 0.0, %v1222
  %v1224 = vpop.f32.mrb[0].mxu0
  %1225 = vdwg.mxu0
  %1226 = vrot.lane.b32.xlu0 %v335, 48
  %v1227 = vpop.permute.xlu0 %1226
  %v1230 = vsel %vm344, %v1048, 0
  %1232 = vmatprep.subr.mxu0 0.0
  %1233 = vmatpush1.msra.mxu0 %v1227
  %1234 = vmatprep.subr.mxu0 0.0
  %1235 = vmatpush1.msra.mxu0 0.0
  %1236 = vmatprep.subr.mxu0 0.0
  %1237 = vmatpush1.msra.mxu0 0.0
  %1238 = vmatprep.subr.mxu0 0.0
  %1239 = vmatpush1.msra.mxu0 0.0
  %1240 = vmatprep.subr.mxu0 0.0
  %1241 = vmatpush1.msra.mxu0 0.0
  %1242 = vmatprep.subr.mxu0 0.0
  %1243 = vmatpush1.msra.mxu0 0.0
  %1244 = vmatprep.subr.mxu0 0.0
  %1245 = vmatpush1.msra.mxu0 0.0
  %1246 = vmatprep.subr.mxu0 0.0
  %1247 = vmatpush1.msra.mxu0 0.0
  %1248 = vmatprep.subr.mxu0 0.0
  %1249 = vmatpush1.msra.mxu0 0.0
  %1250 = vmatprep.subr.mxu0 0.0
  %1251 = vmatpush1.msra.mxu0 0.0
  %1252 = vmatprep.subr.mxu0 0.0
  %1253 = vmatpush1.msra.mxu0 0.0
  %1254 = vmatprep.subr.mxu0 0.0
  %1255 = vmatpush1.msra.mxu0 0.0
  %1256 = vmatprep.subr.mxu0 0.0
  %1257 = vmatpush1.msra.mxu0 0.0
  %1258 = vmatprep.subr.mxu0 0.0
  %1259 = vmatpush1.msra.mxu0 0.0
  %1260 = vmatprep.subr.mxu0 0.0
  %1261 = vmatpush1.msra.mxu0 0.0
  %1262 = vmatprep.subr.mxu0 0.0
  %1263 = vmatpush1.msra.mxu0 0.0
  %1264 = vmatprep.subr.mxu0 0.0
  %1265 = vmatpush1.msra.mxu0 0.0
  %1266 = vmatprep.subr.mxu0 0.0
  %1267 = vmatpush1.msra.mxu0 0.0
  %1268 = vmatprep.subr.mxu0 0.0
  %1269 = vmatpush1.msra.mxu0 0.0
  %1270 = vmatprep.subr.mxu0 0.0
  %1271 = vmatpush1.msra.mxu0 0.0
  %1272 = vmatprep.subr.mxu0 0.0
  %1273 = vmatpush1.msra.mxu0 0.0
  %1274 = vmatprep.subr.mxu0 0.0
  %1275 = vmatpush1.msra.mxu0 0.0
  %1276 = vmatprep.subr.mxu0 0.0
  %1277 = vmatpush1.msra.mxu0 0.0
  %1278 = vmatprep.subr.mxu0 0.0
  %1279 = vmatpush1.msra.mxu0 0.0
  %1280 = vmatprep.subr.mxu0 0.0
  %1281 = vmatpush1.msra.mxu0 0.0
  %1282 = vmatprep.subr.mxu0 0.0
  %1283 = vmatpush1.msra.mxu0 0.0
  %1284 = vmatprep.subr.mxu0 0.0
  %1285 = vmatpush1.msra.mxu0 0.0
  %1286 = vmatprep.subr.mxu0 0.0
  %1287 = vmatpush1.msra.mxu0 0.0
  %1288 = vmatprep.subr.mxu0 0.0
  %1289 = vmatpush1.msra.mxu0 0.0
  %1290 = vmatprep.subr.mxu0 0.0
  %1291 = vmatpush1.msra.mxu0 0.0
  %1292 = vmatprep.subr.mxu0 0.0
  %1293 = vmatpush1.msra.mxu0 0.0
  %1294 = vmatprep.subr.mxu0 0.0
  %1295 = vmatpush1.msra.mxu0 0.0
  %1296 = vmatprep.mubr.f32.mxu0 0.0
  %1297 = vmatmul.mubr.f32.gmra.mrb[0].mxu0 %v1230
  %v1298 = vpop.f32.mrb[0].mxu0
  %v1299 = vadd.f32 0.0, %v1298
  %v1300 = vpop.f32.mrb[0].mxu0
  %1301 = vdwg.mxu0
  %1302 = vrot.lane.b32.xlu0 %v335, 40
  %v1303 = vpop.permute.xlu0 %1302
  %v1306 = vsel %vm344, %v1053, 0
  %1308 = vmatprep.subr.mxu0 0.0
  %1309 = vmatpush1.msra.mxu0 %v1303
  %1310 = vmatprep.subr.mxu0 0.0
  %1311 = vmatpush1.msra.mxu0 0.0
  %1312 = vmatprep.subr.mxu0 0.0
  %1313 = vmatpush1.msra.mxu0 0.0
  %1314 = vmatprep.subr.mxu0 0.0
  %1315 = vmatpush1.msra.mxu0 0.0
  %1316 = vmatprep.subr.mxu0 0.0
  %1317 = vmatpush1.msra.mxu0 0.0
  %1318 = vmatprep.subr.mxu0 0.0
  %1319 = vmatpush1.msra.mxu0 0.0
  %1320 = vmatprep.subr.mxu0 0.0
  %1321 = vmatpush1.msra.mxu0 0.0
  %1322 = vmatprep.subr.mxu0 0.0
  %1323 = vmatpush1.msra.mxu0 0.0
  %1324 = vmatprep.subr.mxu0 0.0
  %1325 = vmatpush1.msra.mxu0 0.0
  %1326 = vmatprep.subr.mxu0 0.0
  %1327 = vmatpush1.msra.mxu0 0.0
  %1328 = vmatprep.subr.mxu0 0.0
  %1329 = vmatpush1.msra.mxu0 0.0
  %1330 = vmatprep.subr.mxu0 0.0
  %1331 = vmatpush1.msra.mxu0 0.0
  %1332 = vmatprep.subr.mxu0 0.0
  %1333 = vmatpush1.msra.mxu0 0.0
  %1334 = vmatprep.subr.mxu0 0.0
  %1335 = vmatpush1.msra.mxu0 0.0
  %1336 = vmatprep.subr.mxu0 0.0
  %1337 = vmatpush1.msra.mxu0 0.0
  %1338 = vmatprep.subr.mxu0 0.0
  %1339 = vmatpush1.msra.mxu0 0.0
  %1340 = vmatprep.subr.mxu0 0.0
  %1341 = vmatpush1.msra.mxu0 0.0
  %1342 = vmatprep.subr.mxu0 0.0
  %1343 = vmatpush1.msra.mxu0 0.0
  %1344 = vmatprep.subr.mxu0 0.0
  %1345 = vmatpush1.msra.mxu0 0.0
  %1346 = vmatprep.subr.mxu0 0.0
  %1347 = vmatpush1.msra.mxu0 0.0
  %1348 = vmatprep.subr.mxu0 0.0
  %1349 = vmatpush1.msra.mxu0 0.0
  %1350 = vmatprep.subr.mxu0 0.0
  %1351 = vmatpush1.msra.mxu0 0.0
  %1352 = vmatprep.subr.mxu0 0.0
  %1353 = vmatpush1.msra.mxu0 0.0
  %1354 = vmatprep.subr.mxu0 0.0
  %1355 = vmatpush1.msra.mxu0 0.0
  %1356 = vmatprep.subr.mxu0 0.0
  %1357 = vmatpush1.msra.mxu0 0.0
  %1358 = vmatprep.subr.mxu0 0.0
  %1359 = vmatpush1.msra.mxu0 0.0
  %1360 = vmatprep.subr.mxu0 0.0
  %1361 = vmatpush1.msra.mxu0 0.0
  %1362 = vmatprep.subr.mxu0 0.0
  %1363 = vmatpush1.msra.mxu0 0.0
  %1364 = vmatprep.subr.mxu0 0.0
  %1365 = vmatpush1.msra.mxu0 0.0
  %1366 = vmatprep.subr.mxu0 0.0
  %1367 = vmatpush1.msra.mxu0 0.0
  %1368 = vmatprep.subr.mxu0 0.0
  %1369 = vmatpush1.msra.mxu0 0.0
  %1370 = vmatprep.subr.mxu0 0.0
  %1371 = vmatpush1.msra.mxu0 0.0
  %1372 = vmatprep.mubr.f32.mxu0 0.0
  %1373 = vmatmul.mubr.f32.gmra.mrb[0].mxu0 %v1306
  %v1374 = vpop.f32.mrb[0].mxu0
  %v1375 = vadd.f32 0.0, %v1374
  %v1376 = vpop.f32.mrb[0].mxu0
  %1377 = vdwg.mxu0
  %1378 = vrot.lane.b32.xlu0 %v338, 64
  %v1379 = vpop.permute.xlu0 %1378
  %v1382 = vsel %vm344, %v1058, 0
  %1384 = vmatprep.subr.mxu0 0.0
  %1385 = vmatpush1.msra.mxu0 %v1379
  %1386 = vmatprep.subr.mxu0 0.0
  %1387 = vmatpush1.msra.mxu0 0.0
  %1388 = vmatprep.subr.mxu0 0.0
  %1389 = vmatpush1.msra.mxu0 0.0
  %1390 = vmatprep.subr.mxu0 0.0
  %1391 = vmatpush1.msra.mxu0 0.0
  %1392 = vmatprep.subr.mxu0 0.0
  %1393 = vmatpush1.msra.mxu0 0.0
  %1394 = vmatprep.subr.mxu0 0.0
  %1395 = vmatpush1.msra.mxu0 0.0
  %1396 = vmatprep.subr.mxu0 0.0
  %1397 = vmatpush1.msra.mxu0 0.0
  %1398 = vmatprep.subr.mxu0 0.0
  %1399 = vmatpush1.msra.mxu0 0.0
  %1400 = vmatprep.subr.mxu0 0.0
  %1401 = vmatpush1.msra.mxu0 0.0
  %1402 = vmatprep.subr.mxu0 0.0
  %1403 = vmatpush1.msra.mxu0 0.0
  %1404 = vmatprep.subr.mxu0 0.0
  %1405 = vmatpush1.msra.mxu0 0.0
  %1406 = vmatprep.subr.mxu0 0.0
  %1407 = vmatpush1.msra.mxu0 0.0
  %1408 = vmatprep.subr.mxu0 0.0
  %1409 = vmatpush1.msra.mxu0 0.0
  %1410 = vmatprep.subr.mxu0 0.0
  %1411 = vmatpush1.msra.mxu0 0.0
  %1412 = vmatprep.subr.mxu0 0.0
  %1413 = vmatpush1.msra.mxu0 0.0
  %1414 = vmatprep.subr.mxu0 0.0
  %1415 = vmatpush1.msra.mxu0 0.0
  %1416 = vmatprep.subr.mxu0 0.0
  %1417 = vmatpush1.msra.mxu0 0.0
  %1418 = vmatprep.subr.mxu0 0.0
  %1419 = vmatpush1.msra.mxu0 0.0
  %1420 = vmatprep.subr.mxu0 0.0
  %1421 = vmatpush1.msra.mxu0 0.0
  %1422 = vmatprep.subr.mxu0 0.0
  %1423 = vmatpush1.msra.mxu0 0.0
  %1424 = vmatprep.subr.mxu0 0.0
  %1425 = vmatpush1.msra.mxu0 0.0
  %1426 = vmatprep.subr.mxu0 0.0
  %1427 = vmatpush1.msra.mxu0 0.0
  %1428 = vmatprep.subr.mxu0 0.0
  %1429 = vmatpush1.msra.mxu0 0.0
  %1430 = vmatprep.subr.mxu0 0.0
  %1431 = vmatpush1.msra.mxu0 0.0
  %1432 = vmatprep.subr.mxu0 0.0
  %1433 = vmatpush1.msra.mxu0 0.0
  %1434 = vmatprep.subr.mxu0 0.0
  %1435 = vmatpush1.msra.mxu0 0.0
  %1436 = vmatprep.subr.mxu0 0.0
  %1437 = vmatpush1.msra.mxu0 0.0
  %1438 = vmatprep.subr.mxu0 0.0
  %1439 = vmatpush1.msra.mxu0 0.0
  %1440 = vmatprep.subr.mxu0 0.0
  %1441 = vmatpush1.msra.mxu0 0.0
  %1442 = vmatprep.subr.mxu0 0.0
  %1443 = vmatpush1.msra.mxu0 0.0
  %1444 = vmatprep.subr.mxu0 0.0
  %1445 = vmatpush1.msra.mxu0 0.0
  %1446 = vmatprep.subr.mxu0 0.0
  %1447 = vmatpush1.msra.mxu0 0.0
  %1448 = vmatprep.mubr.f32.mxu0 0.0
  %1449 = vmatmul.mubr.f32.gmra.mrb[0].mxu0 %v1382
  %v1450 = vpop.f32.mrb[0].mxu0
  %v1451 = vadd.f32 0.0, %v1450
  %v1452 = vpop.f32.mrb[0].mxu0
  %1453 = vdwg.mxu0
  %1454 = vrot.lane.b32.xlu0 %v338, 56
  %v1455 = vpop.permute.xlu0 %1454
  %v1458 = vsel %vm344, %v1063, 0
  %1460 = vmatprep.subr.mxu0 0.0
  %1461 = vmatpush1.msra.mxu0 %v1455
  %1462 = vmatprep.subr.mxu0 0.0
  %1463 = vmatpush1.msra.mxu0 0.0
  %1464 = vmatprep.subr.mxu0 0.0
  %1465 = vmatpush1.msra.mxu0 0.0
  %1466 = vmatprep.subr.mxu0 0.0
  %1467 = vmatpush1.msra.mxu0 0.0
  %1468 = vmatprep.subr.mxu0 0.0
  %1469 = vmatpush1.msra.mxu0 0.0
  %1470 = vmatprep.subr.mxu0 0.0
  %1471 = vmatpush1.msra.mxu0 0.0
  %1472 = vmatprep.subr.mxu0 0.0
  %1473 = vmatpush1.msra.mxu0 0.0
  %1474 = vmatprep.subr.mxu0 0.0
  %1475 = vmatpush1.msra.mxu0 0.0
  %1476 = vmatprep.subr.mxu0 0.0
  %1477 = vmatpush1.msra.mxu0 0.0
  %1478 = vmatprep.subr.mxu0 0.0
  %1479 = vmatpush1.msra.mxu0 0.0
  %1480 = vmatprep.subr.mxu0 0.0
  %1481 = vmatpush1.msra.mxu0 0.0
  %1482 = vmatprep.subr.mxu0 0.0
  %1483 = vmatpush1.msra.mxu0 0.0
  %1484 = vmatprep.subr.mxu0 0.0
  %1485 = vmatpush1.msra.mxu0 0.0
  %1486 = vmatprep.subr.mxu0 0.0
  %1487 = vmatpush1.msra.mxu0 0.0
  %1488 = vmatprep.subr.mxu0 0.0
  %1489 = vmatpush1.msra.mxu0 0.0
  %1490 = vmatprep.subr.mxu0 0.0
  %1491 = vmatpush1.msra.mxu0 0.0
  %1492 = vmatprep.subr.mxu0 0.0
  %1493 = vmatpush1.msra.mxu0 0.0
  %1494 = vmatprep.subr.mxu0 0.0
  %1495 = vmatpush1.msra.mxu0 0.0
  %1496 = vmatprep.subr.mxu0 0.0
  %1497 = vmatpush1.msra.mxu0 0.0
  %1498 = vmatprep.subr.mxu0 0.0
  %1499 = vmatpush1.msra.mxu0 0.0
  %1500 = vmatprep.subr.mxu0 0.0
  %1501 = vmatpush1.msra.mxu0 0.0
  %1502 = vmatprep.subr.mxu0 0.0
  %1503 = vmatpush1.msra.mxu0 0.0
  %1504 = vmatprep.subr.mxu0 0.0
  %1505 = vmatpush1.msra.mxu0 0.0
  %1506 = vmatprep.subr.mxu0 0.0
  %1507 = vmatpush1.msra.mxu0 0.0
  %1508 = vmatprep.subr.mxu0 0.0
  %1509 = vmatpush1.msra.mxu0 0.0
  %1510 = vmatprep.subr.mxu0 0.0
  %1511 = vmatpush1.msra.mxu0 0.0
  %1512 = vmatprep.subr.mxu0 0.0
  %1513 = vmatpush1.msra.mxu0 0.0
  %1514 = vmatprep.subr.mxu0 0.0
  %1515 = vmatpush1.msra.mxu0 0.0
  %1516 = vmatprep.subr.mxu0 0.0
  %1517 = vmatpush1.msra.mxu0 0.0
  %1518 = vmatprep.subr.mxu0 0.0
  %1519 = vmatpush1.msra.mxu0 0.0
  %1520 = vmatprep.subr.mxu0 0.0
  %1521 = vmatpush1.msra.mxu0 0.0
  %1522 = vmatprep.subr.mxu0 0.0
  %1523 = vmatpush1.msra.mxu0 0.0
  %1524 = vmatprep.mubr.f32.mxu0 0.0
  %1525 = vmatmul.mubr.f32.gmra.mrb[0].mxu0 %v1458
  %v1526 = vpop.f32.mrb[0].mxu0
  %v1527 = vadd.f32 0.0, %v1526
  %v1528 = vpop.f32.mrb[0].mxu0
  %1529 = vdwg.mxu0
  %1530 = vrot.lane.b32.xlu0 %v338, 48
  %v1531 = vpop.permute.xlu0 %1530
  %v1534 = vsel %vm344, %v1068, 0
  %1536 = vmatprep.subr.mxu0 0.0
  %1537 = vmatpush1.msra.mxu0 %v1531
  %1538 = vmatprep.subr.mxu0 0.0
  %1539 = vmatpush1.msra.mxu0 0.0
  %1540 = vmatprep.subr.mxu0 0.0
  %1541 = vmatpush1.msra.mxu0 0.0
  %1542 = vmatprep.subr.mxu0 0.0
  %1543 = vmatpush1.msra.mxu0 0.0
  %1544 = vmatprep.subr.mxu0 0.0
  %1545 = vmatpush1.msra.mxu0 0.0
  %1546 = vmatprep.subr.mxu0 0.0
  %1547 = vmatpush1.msra.mxu0 0.0
  %1548 = vmatprep.subr.mxu0 0.0
  %1549 = vmatpush1.msra.mxu0 0.0
  %1550 = vmatprep.subr.mxu0 0.0
  %1551 = vmatpush1.msra.mxu0 0.0
  %1552 = vmatprep.subr.mxu0 0.0
  %1553 = vmatpush1.msra.mxu0 0.0
  %1554 = vmatprep.subr.mxu0 0.0
  %1555 = vmatpush1.msra.mxu0 0.0
  %1556 = vmatprep.subr.mxu0 0.0
  %1557 = vmatpush1.msra.mxu0 0.0
  %1558 = vmatprep.subr.mxu0 0.0
  %1559 = vmatpush1.msra.mxu0 0.0
  %1560 = vmatprep.subr.mxu0 0.0
  %1561 = vmatpush1.msra.mxu0 0.0
  %1562 = vmatprep.subr.mxu0 0.0
  %1563 = vmatpush1.msra.mxu0 0.0
  %1564 = vmatprep.subr.mxu0 0.0
  %1565 = vmatpush1.msra.mxu0 0.0
  %1566 = vmatprep.subr.mxu0 0.0
  %1567 = vmatpush1.msra.mxu0 0.0
  %1568 = vmatprep.subr.mxu0 0.0
  %1569 = vmatpush1.msra.mxu0 0.0
  %1570 = vmatprep.subr.mxu0 0.0
  %1571 = vmatpush1.msra.mxu0 0.0
  %1572 = vmatprep.subr.mxu0 0.0
  %1573 = vmatpush1.msra.mxu0 0.0
  %1574 = vmatprep.subr.mxu0 0.0
  %1575 = vmatpush1.msra.mxu0 0.0
  %1576 = vmatprep.subr.mxu0 0.0
  %1577 = vmatpush1.msra.mxu0 0.0
  %1578 = vmatprep.subr.mxu0 0.0
  %1579 = vmatpush1.msra.mxu0 0.0
  %1580 = vmatprep.subr.mxu0 0.0
  %1581 = vmatpush1.msra.mxu0 0.0
  %1582 = vmatprep.subr.mxu0 0.0
  %1583 = vmatpush1.msra.mxu0 0.0
  %1584 = vmatprep.subr.mxu0 0.0
  %1585 = vmatpush1.msra.mxu0 0.0
  %1586 = vmatprep.subr.mxu0 0.0
  %1587 = vmatpush1.msra.mxu0 0.0
  %1588 = vmatprep.subr.mxu0 0.0
  %1589 = vmatpush1.msra.mxu0 0.0
  %1590 = vmatprep.subr.mxu0 0.0
  %1591 = vmatpush1.msra.mxu0 0.0
  %1592 = vmatprep.subr.mxu0 0.0
  %1593 = vmatpush1.msra.mxu0 0.0
  %1594 = vmatprep.subr.mxu0 0.0
  %1595 = vmatpush1.msra.mxu0 0.0
  %1596 = vmatprep.subr.mxu0 0.0
  %1597 = vmatpush1.msra.mxu0 0.0
  %1598 = vmatprep.subr.mxu0 0.0
  %1599 = vmatpush1.msra.mxu0 0.0
  %1600 = vmatprep.mubr.f32.mxu0 0.0
  %1601 = vmatmul.mubr.f32.gmra.mrb[0].mxu0 %v1534
  %v1602 = vpop.f32.mrb[0].mxu0
  %v1603 = vadd.f32 0.0, %v1602
  %v1604 = vpop.f32.mrb[0].mxu0
  %1605 = vdwg.mxu0
  %1606 = vrot.lane.b32.xlu0 %v338, 40
  %v1607 = vpop.permute.xlu0 %1606
  %v1610 = vsel %vm344, %v1073, 0
  %1612 = vmatprep.subr.mxu0 0.0
  %1613 = vmatpush1.msra.mxu0 %v1607
  %1614 = vmatprep.subr.mxu0 0.0
  %1615 = vmatpush1.msra.mxu0 0.0
  %1616 = vmatprep.subr.mxu0 0.0
  %1617 = vmatpush1.msra.mxu0 0.0
  %1618 = vmatprep.subr.mxu0 0.0
  %1619 = vmatpush1.msra.mxu0 0.0
  %1620 = vmatprep.subr.mxu0 0.0
  %1621 = vmatpush1.msra.mxu0 0.0
  %1622 = vmatprep.subr.mxu0 0.0
  %1623 = vmatpush1.msra.mxu0 0.0
  %1624 = vmatprep.subr.mxu0 0.0
  %1625 = vmatpush1.msra.mxu0 0.0
  %1626 = vmatprep.subr.mxu0 0.0
  %1627 = vmatpush1.msra.mxu0 0.0
  %1628 = vmatprep.subr.mxu0 0.0
  %1629 = vmatpush1.msra.mxu0 0.0
  %1630 = vmatprep.subr.mxu0 0.0
  %1631 = vmatpush1.msra.mxu0 0.0
  %1632 = vmatprep.subr.mxu0 0.0
  %1633 = vmatpush1.msra.mxu0 0.0
  %1634 = vmatprep.subr.mxu0 0.0
  %1635 = vmatpush1.msra.mxu0 0.0
  %1636 = vmatprep.subr.mxu0 0.0
  %1637 = vmatpush1.msra.mxu0 0.0
  %1638 = vmatprep.subr.mxu0 0.0
  %1639 = vmatpush1.msra.mxu0 0.0
  %1640 = vmatprep.subr.mxu0 0.0
  %1641 = vmatpush1.msra.mxu0 0.0
  %1642 = vmatprep.subr.mxu0 0.0
  %1643 = vmatpush1.msra.mxu0 0.0
  %1644 = vmatprep.subr.mxu0 0.0
  %1645 = vmatpush1.msra.mxu0 0.0
  %1646 = vmatprep.subr.mxu0 0.0
  %1647 = vmatpush1.msra.mxu0 0.0
  %1648 = vmatprep.subr.mxu0 0.0
  %1649 = vmatpush1.msra.mxu0 0.0
  %1650 = vmatprep.subr.mxu0 0.0
  %1651 = vmatpush1.msra.mxu0 0.0
  %1652 = vmatprep.subr.mxu0 0.0
  %1653 = vmatpush1.msra.mxu0 0.0
  %1654 = vmatprep.subr.mxu0 0.0
  %1655 = vmatpush1.msra.mxu0 0.0
  %1656 = vmatprep.subr.mxu0 0.0
  %1657 = vmatpush1.msra.mxu0 0.0
  %1658 = vmatprep.subr.mxu0 0.0
  %1659 = vmatpush1.msra.mxu0 0.0
  %1660 = vmatprep.subr.mxu0 0.0
  %1661 = vmatpush1.msra.mxu0 0.0
  %1662 = vmatprep.subr.mxu0 0.0
  %1663 = vmatpush1.msra.mxu0 0.0
  %1664 = vmatprep.subr.mxu0 0.0
  %1665 = vmatpush1.msra.mxu0 0.0
  %1666 = vmatprep.subr.mxu0 0.0
  %1667 = vmatpush1.msra.mxu0 0.0
  %1668 = vmatprep.subr.mxu0 0.0
  %1669 = vmatpush1.msra.mxu0 0.0
  %1670 = vmatprep.subr.mxu0 0.0
  %1671 = vmatpush1.msra.mxu0 0.0
  %1672 = vmatprep.subr.mxu0 0.0
  %1673 = vmatpush1.msra.mxu0 0.0
  %1674 = vmatprep.subr.mxu0 0.0
  %1675 = vmatpush1.msra.mxu0 0.0
  %1676 = vmatprep.mubr.f32.mxu0 0.0
  %1677 = vmatmul.mubr.f32.gmra.mrb[0].mxu0 %v1610
  %v1678 = vpop.f32.mrb[0].mxu0
  %v1679 = vadd.f32 0.0, %v1678
  %v1680 = vpop.f32.mrb[0].mxu0
  %1681 = vdwg.mxu0
  %1683 = vrot.lane.b32.xlu0 %v1223, 8
  %v1684 = vpop.permute.xlu0 %1683
  %1687 = vrot.lane.b32.xlu0 %v1299, 16
  %v1688 = vpop.permute.xlu0 %1687
  %1691 = vrot.lane.b32.xlu0 %v1375, 24
  %v1692 = vpop.permute.xlu0 %1691
  %v1694 = vsel %vm344, %v1147, %v1684
  %vm1695 = vcmask 130048
  %v1696 = vsel %vm1695, %v1694, %v1688
  %vm1697 = vcmask 195584
  %v1698 = vsel %vm1697, %v1696, %v1692
  %1700 = vrot.lane.b32.xlu0 %v1527, 8
  %v1701 = vpop.permute.xlu0 %1700
  %1704 = vrot.lane.b32.xlu0 %v1603, 16
  %v1705 = vpop.permute.xlu0 %1704
  %1708 = vrot.lane.b32.xlu0 %v1679, 24
  %v1709 = vpop.permute.xlu0 %1708
  %v1711 = vsel %vm344, %v1451, %v1701
  %v1712 = vsel %vm1695, %v1711, %v1705
  %v1713 = vsel %vm1697, %v1712, %v1709
  %v1714 = vpack.c.bf16 %v1713, %v1698
  %v1715 = vld [vmem:[%s7] sm:$0xf]
  %v1716 = vld [vmem:[%s7 + $0x4] sm:$0xf]
  %v1717 = vld [vmem:[%s7 + $0x8] sm:$0xf]
  %v1718 = vld [vmem:[%s7 + $0xc] sm:$0xf]
  %v1723 = vunpack.c.l.b16 %v1715
  %v1724 = vunpack.c.l.b16 %v1716
  %v1725 = vunpack.c.l.b16 %v1717
  %v1726 = vunpack.c.l.b16 %v1718
  %v1727 = vpack.c.b16 %v1724, %v1723
  %v1728 = vpack.c.b16 %v1726, %v1725
  %v1732 = vsel %vm233, %v1714, 0
  %1734 = vmatprep.subr.bf16.mxu0 0
  %1735 = vmatpush1.bf16.msra.mxu0 %v1727
  %1736 = vmatprep.subr.bf16.mxu0 0
  %1737 = vmatpush1.bf16.msra.mxu0 %v1728
  %1738 = vmatprep.subr.bf16.mxu0 0
  %1739 = vmatpush1.bf16.msra.mxu0 0
  %1740 = vmatprep.subr.bf16.mxu0 0
  %1741 = vmatpush1.bf16.msra.mxu0 0
  %1742 = vmatprep.subr.bf16.mxu0 0
  %1743 = vmatpush1.bf16.msra.mxu0 0
  %1744 = vmatprep.subr.bf16.mxu0 0
  %1745 = vmatpush1.bf16.msra.mxu0 0
  %1746 = vmatprep.subr.bf16.mxu0 0
  %1747 = vmatpush1.bf16.msra.mxu0 0
  %1748 = vmatprep.subr.bf16.mxu0 0
  %1749 = vmatpush1.bf16.msra.mxu0 0
  %1750 = vmatprep.subr.bf16.mxu0 0
  %1751 = vmatpush1.bf16.msra.mxu0 0
  %1752 = vmatprep.subr.bf16.mxu0 0
  %1753 = vmatpush1.bf16.msra.mxu0 0
  %1754 = vmatprep.subr.bf16.mxu0 0
  %1755 = vmatpush1.bf16.msra.mxu0 0
  %1756 = vmatprep.subr.bf16.mxu0 0
  %1757 = vmatpush1.bf16.msra.mxu0 0
  %1758 = vmatprep.subr.bf16.mxu0 0
  %1759 = vmatpush1.bf16.msra.mxu0 0
  %1760 = vmatprep.subr.bf16.mxu0 0
  %1761 = vmatpush1.bf16.msra.mxu0 0
  %1762 = vmatprep.subr.bf16.mxu0 0
  %1763 = vmatpush1.bf16.msra.mxu0 0
  %1764 = vmatprep.subr.bf16.mxu0 0
  %1765 = vmatpush1.bf16.msra.mxu0 0
  %1766 = vmatprep.mubr.bf16.mxu0 0
  %1767 = vmatmul.mubr.bf16.gmra.mrb[0].mxu0 %v1732
  %v1768 = vpop.f32.mrb[0].mxu0
  %v1769 = vadd.f32 0.0, %v1768
  %v1770 = vpop.f32.mrb[0].mxu0
  %v1771 = vpop.f32.mrb[0].mxu0
  %v1772 = vadd.f32 0.0, %v1771
  %v1773 = vpop.f32.mrb[0].mxu0
  %1774 = vdwg.mxu0
  %v1775 = vadd.f32 %v226, %v1769
  %v1776 = vadd.f32 %v229, %v1772
  %v1777 = vld [vmem:[%s8] sm:$0x1]
  %v1779 = vlaneseq
  %v1780 = vshrl.u32 %v1779, 7
  %v1781 = vsub.s32 0, %v1780
  %v1782 = vrot.slane %v1777, %v1781
  %v1784 = vadd.f32 %v1775, %v1782
  %v1785 = vadd.f32 %v1776, %v1782
  %v1786 = vsel %vm233, %v1784, 0.0
  %1787 = vadd.xlane.f32.xlu0 %v1786
  %v1788 = vpop.xlane.xlu0 %1787
  %v1789 = vsel %vm233, %v1785, 0.0
  %1790 = vadd.xlane.f32.xlu0 %v1789
  %v1791 = vpop.xlane.xlu0 %1790
  %v1792 = vmul.f32 %v1788, %v240
  %v1793 = vmul.f32 %v1791, %v240
  %v1794 = vsub.f32 %v1784, %v1792
  %v1795 = vsub.f32 %v1785, %v1793
  %v1796 = vmul.f32 %v1794, %v1794
  %v1797 = vmul.f32 %v1795, %v1795
  %v1798 = vsel %vm233, %v1796, 0.0
  %1799 = vadd.xlane.f32.xlu0 %v1798
  %v1800 = vpop.xlane.xlu0 %1799
  %v1801 = vsel %vm233, %v1797, 0.0
  %1802 = vadd.xlane.f32.xlu0 %v1801
  %v1803 = vpop.xlane.xlu0 %1802
  %v1804 = vmul.f32 %v1800, %v240
  %v1805 = vmul.f32 %v1803, %v240
  %v1806 = vadd.f32 %v1804, 1e-12
  %v1807 = vadd.f32 %v1805, 1e-12
  %v1808 = vrsqrt.pop %v1806
  %v1809 = vrsqrt.pop %v1807
  %v1810 = vmul.f32 %v1794, %v1808
  %v1811 = vmul.f32 %v1795, %v1809
  %v1812 = vlaneseq
  %v1813 = vshrl.u32 %v1812, 7
  %v1814 = vsub.s32 2, %v1813
  %v1815 = vrot.slane %v232, %v1814
  %v1816 = vmul.f32 %v1810, %v1815
  %v1817 = vmul.f32 %v1811, %v1815
  %v1818 = vlaneseq
  %v1819 = vshrl.u32 %v1818, 7
  %v1820 = vsub.s32 3, %v1819
  %v1821 = vrot.slane %v232, %v1820
  %v1822 = vadd.f32 %v1816, %v1821
  %v1823 = vadd.f32 %v1817, %v1821
  %v1824 = vpack.c.bf16 %v1823, %v1822
  %v1825 = vld [vmem:[%s9] sm:$0xf]
  %v1826 = vld [vmem:[%s9 + $0x4] sm:$0xf]
  %v1827 = vld [vmem:[%s9 + $0x8] sm:$0xf]
  %v1828 = vld [vmem:[%s9 + $0xc] sm:$0xf]
  %v1829 = vld [vmem:[%s10] sm:$0x1]
  %v1831 = vlaneseq
  %v1832 = vshrl.u32 %v1831, 7
  %v1833 = vsub.s32 0, %v1832
  %v1834 = vrot.slane %v1829, %v1833
  %v1840 = vunpack.c.l.b16 %v1825
  %v1841 = vunpack.c.l.b16 %v1826
  %v1842 = vunpack.c.l.b16 %v1827
  %v1843 = vunpack.c.l.b16 %v1828
  %v1844 = vpack.c.b16 %v1841, %v1840
  %v1845 = vpack.c.b16 %v1843, %v1842
  %v1849 = vsel %vm233, %v1824, 0
  %1851 = vmatprep.subr.bf16.mxu0 0
  %1852 = vmatpush1.bf16.msra.mxu0 %v1844
  %1853 = vmatprep.subr.bf16.mxu0 0
  %1854 = vmatpush1.bf16.msra.mxu0 %v1845
  %1855 = vmatprep.subr.bf16.mxu0 0
  %1856 = vmatpush1.bf16.msra.mxu0 0
  %1857 = vmatprep.subr.bf16.mxu0 0
  %1858 = vmatpush1.bf16.msra.mxu0 0
  %1859 = vmatprep.subr.bf16.mxu0 0
  %1860 = vmatpush1.bf16.msra.mxu0 0
  %1861 = vmatprep.subr.bf16.mxu0 0
  %1862 = vmatpush1.bf16.msra.mxu0 0
  %1863 = vmatprep.subr.bf16.mxu0 0
  %1864 = vmatpush1.bf16.msra.mxu0 0
  %1865 = vmatprep.subr.bf16.mxu0 0
  %1866 = vmatpush1.bf16.msra.mxu0 0
  %1867 = vmatprep.subr.bf16.mxu0 0
  %1868 = vmatpush1.bf16.msra.mxu0 0
  %1869 = vmatprep.subr.bf16.mxu0 0
  %1870 = vmatpush1.bf16.msra.mxu0 0
  %1871 = vmatprep.subr.bf16.mxu0 0
  %1872 = vmatpush1.bf16.msra.mxu0 0
  %1873 = vmatprep.subr.bf16.mxu0 0
  %1874 = vmatpush1.bf16.msra.mxu0 0
  %1875 = vmatprep.subr.bf16.mxu0 0
  %1876 = vmatpush1.bf16.msra.mxu0 0
  %1877 = vmatprep.subr.bf16.mxu0 0
  %1878 = vmatpush1.bf16.msra.mxu0 0
  %1879 = vmatprep.subr.bf16.mxu0 0
  %1880 = vmatpush1.bf16.msra.mxu0 0
  %1881 = vmatprep.subr.bf16.mxu0 0
  %1882 = vmatpush1.bf16.msra.mxu0 0
  %1883 = vmatprep.mubr.bf16.mxu0 0
  %1884 = vmatmul.mubr.bf16.gmra.mrb[0].mxu0 %v1849
  %v1885 = vpop.f32.mrb[0].mxu0
  %v1886 = vadd.f32 %v1834, %v1885
  %v1887 = vpop.f32.mrb[0].mxu0
  %v1888 = vpop.f32.mrb[0].mxu0
  %v1889 = vadd.f32 %v1834, %v1888
  %v1890 = vpop.f32.mrb[0].mxu0
  %1891 = vdwg.mxu0
  %v1892 = vmul.f32 %v1886, 0.5
  %v1893 = vmul.f32 %v1889, 0.5
  %v1894 = vmul.f32 %v1886, 0.70710677
  %v1895 = vmul.f32 %v1889, 0.70710677
  %v1896 = verf.f32.pop %v1894
  %v1897 = verf.f32.pop %v1895
  %v1898 = vadd.f32 %v1896, 1.0
  %v1899 = vadd.f32 %v1897, 1.0
  %v1900 = vmul.f32 %v1892, %v1898
  %v1901 = vmul.f32 %v1893, %v1899
  %v1902 = vpack.c.bf16 %v1901, %v1900
  %v1903 = vld [vmem:[%s11] sm:$0xf]
  %v1904 = vld [vmem:[%s11 + $0x4] sm:$0xf]
  %v1905 = vld [vmem:[%s11 + $0x8] sm:$0xf]
  %v1906 = vld [vmem:[%s11 + $0xc] sm:$0xf]
  %v1907 = vld [vmem:[%s11 + $0x10] sm:$0xf]
  %v1908 = vld [vmem:[%s11 + $0x14] sm:$0xf]
  %v1909 = vld [vmem:[%s11 + $0x18] sm:$0xf]
  %v1910 = vld [vmem:[%s11 + $0x1c] sm:$0xf]
  %v1919 = vunpack.c.l.b16 %v1903
  %v1920 = vunpack.c.l.b16 %v1904
  %v1921 = vunpack.c.l.b16 %v1905
  %v1922 = vunpack.c.l.b16 %v1906
  %v1923 = vunpack.c.l.b16 %v1907
  %v1924 = vunpack.c.l.b16 %v1908
  %v1925 = vunpack.c.l.b16 %v1909
  %v1926 = vunpack.c.l.b16 %v1910
  %v1927 = vpack.c.b16 %v1920, %v1919
  %v1928 = vpack.c.b16 %v1922, %v1921
  %v1929 = vpack.c.b16 %v1924, %v1923
  %v1930 = vpack.c.b16 %v1926, %v1925
  %vm1935 = vcmask 523264
  %v1937 = vsel %vm1935, %v1902, 0
  %1939 = vmatprep.subr.bf16.mxu0 0
  %1940 = vmatpush1.bf16.msra.mxu0 %v1927
  %1941 = vmatprep.subr.bf16.mxu0 0
  %1942 = vmatpush1.bf16.msra.mxu0 %v1928
  %1943 = vmatprep.subr.bf16.mxu0 0
  %1944 = vmatpush1.bf16.msra.mxu0 %v1929
  %1945 = vmatprep.subr.bf16.mxu0 0
  %1946 = vmatpush1.bf16.msra.mxu0 %v1930
  %1947 = vmatprep.subr.bf16.mxu0 0
  %1948 = vmatpush1.bf16.msra.mxu0 0
  %1949 = vmatprep.subr.bf16.mxu0 0
  %1950 = vmatpush1.bf16.msra.mxu0 0
  %1951 = vmatprep.subr.bf16.mxu0 0
  %1952 = vmatpush1.bf16.msra.mxu0 0
  %1953 = vmatprep.subr.bf16.mxu0 0
  %1954 = vmatpush1.bf16.msra.mxu0 0
  %1955 = vmatprep.subr.bf16.mxu0 0
  %1956 = vmatpush1.bf16.msra.mxu0 0
  %1957 = vmatprep.subr.bf16.mxu0 0
  %1958 = vmatpush1.bf16.msra.mxu0 0
  %1959 = vmatprep.subr.bf16.mxu0 0
  %1960 = vmatpush1.bf16.msra.mxu0 0
  %1961 = vmatprep.subr.bf16.mxu0 0
  %1962 = vmatpush1.bf16.msra.mxu0 0
  %1963 = vmatprep.subr.bf16.mxu0 0
  %1964 = vmatpush1.bf16.msra.mxu0 0
  %1965 = vmatprep.subr.bf16.mxu0 0
  %1966 = vmatpush1.bf16.msra.mxu0 0
  %1967 = vmatprep.subr.bf16.mxu0 0
  %1968 = vmatpush1.bf16.msra.mxu0 0
  %1969 = vmatprep.subr.bf16.mxu0 0
  %1970 = vmatpush1.bf16.msra.mxu0 0
  %1971 = vmatprep.mubr.bf16.mxu0 0
  %1972 = vmatmul.mubr.bf16.gmra.mrb[0].mxu0 %v1937
  %v1973 = vpop.f32.mrb[0].mxu0
  %v1974 = vadd.f32 0.0, %v1973
  %v1975 = vpop.f32.mrb[0].mxu0
  %v1976 = vpop.f32.mrb[0].mxu0
  %v1977 = vadd.f32 0.0, %v1976
  %v1978 = vpop.f32.mrb[0].mxu0
  %1979 = vdwg.mxu0
  %v1980 = vadd.f32 %v1784, %v1974
  %v1981 = vadd.f32 %v1785, %v1977
  %v1982 = vld [vmem:[%s12] sm:$0x1]
  %v1984 = vlaneseq
  %v1985 = vshrl.u32 %v1984, 7
  %v1986 = vsub.s32 0, %v1985
  %v1987 = vrot.slane %v1982, %v1986
  %v1989 = vadd.f32 %v1980, %v1987
  %v1990 = vadd.f32 %v1981, %v1987
  %s1991 = scalar_lea.vmem %s4, 4
  %v1992 = vld [vmem:[%s1991] sm:$0xf]
  %v1993 = vsel %vm233, %v1989, 0.0
  %1994 = vadd.xlane.f32.xlu0 %v1993
  %v1995 = vpop.xlane.xlu0 %1994
  %v1996 = vsel %vm233, %v1990, 0.0
  %1997 = vadd.xlane.f32.xlu0 %v1996
  %v1998 = vpop.xlane.xlu0 %1997
  %v1999 = vmul.f32 %v1995, %v240
  %v2000 = vmul.f32 %v1998, %v240
  %v2001 = vsub.f32 %v1989, %v1999
  %v2002 = vsub.f32 %v1990, %v2000
  %v2003 = vmul.f32 %v2001, %v2001
  %v2004 = vmul.f32 %v2002, %v2002
  %v2005 = vsel %vm233, %v2003, 0.0
  %2006 = vadd.xlane.f32.xlu0 %v2005
  %v2007 = vpop.xlane.xlu0 %2006
  %v2008 = vsel %vm233, %v2004, 0.0
  %2009 = vadd.xlane.f32.xlu0 %v2008
  %v2010 = vpop.xlane.xlu0 %2009
  %v2011 = vmul.f32 %v2007, %v240
  %v2012 = vmul.f32 %v2010, %v240
  %v2013 = vadd.f32 %v2011, 1e-12
  %v2014 = vadd.f32 %v2012, 1e-12
  %v2015 = vrsqrt.pop %v2013
  %v2016 = vrsqrt.pop %v2014
  %v2017 = vmul.f32 %v2001, %v2015
  %v2018 = vmul.f32 %v2002, %v2016
  %v2019 = vlaneseq
  %v2020 = vshrl.u32 %v2019, 7
  %v2021 = vsub.s32 0, %v2020
  %v2022 = vrot.slane %v1992, %v2021
  %v2023 = vmul.f32 %v2017, %v2022
  %v2024 = vmul.f32 %v2018, %v2022
  %v2025 = vlaneseq
  %v2026 = vshrl.u32 %v2025, 7
  %v2027 = vsub.s32 1, %v2026
  %v2028 = vrot.slane %v1992, %v2027
  %v2029 = vadd.f32 %v2023, %v2028
  %v2030 = vadd.f32 %v2024, %v2028
  %v2031 = vpack.c.bf16 %v2030, %v2029
  %s2032 = scalar_lea.vmem %s5, 16
  %v2033 = vld [vmem:[%s2032] sm:$0xf]
  %v2034 = vld [vmem:[%s2032 + $0x4] sm:$0xf]
  %v2035 = vld [vmem:[%s2032 + $0x8] sm:$0xf]
  %v2036 = vld [vmem:[%s2032 + $0xc] sm:$0xf]
  %s2037 = scalar_lea.vmem %s6, 1
  %v2038 = vld [vmem:[%s2037] sm:$0x1]
  %v2040 = vlaneseq
  %v2041 = vshrl.u32 %v2040, 7
  %v2042 = vsub.s32 0, %v2041
  %v2043 = vrot.slane %v2038, %v2042
  %v2049 = vunpack.c.l.b16 %v2033
  %v2050 = vunpack.c.l.b16 %v2034
  %v2051 = vunpack.c.l.b16 %v2035
  %v2052 = vunpack.c.l.b16 %v2036
  %v2053 = vpack.c.b16 %v2050, %v2049
  %v2054 = vpack.c.b16 %v2052, %v2051
  %v2058 = vsel %vm233, %v2031, 0
  %2060 = vmatprep.subr.bf16.mxu0 0
  %2061 = vmatpush1.bf16.msra.mxu0 %v2053
  %2062 = vmatprep.subr.bf16.mxu0 0
  %2063 = vmatpush1.bf16.msra.mxu0 %v2054
  %2064 = vmatprep.subr.bf16.mxu0 0
  %2065 = vmatpush1.bf16.msra.mxu0 0
  %2066 = vmatprep.subr.bf16.mxu0 0
  %2067 = vmatpush1.bf16.msra.mxu0 0
  %2068 = vmatprep.subr.bf16.mxu0 0
  %2069 = vmatpush1.bf16.msra.mxu0 0
  %2070 = vmatprep.subr.bf16.mxu0 0
  %2071 = vmatpush1.bf16.msra.mxu0 0
  %2072 = vmatprep.subr.bf16.mxu0 0
  %2073 = vmatpush1.bf16.msra.mxu0 0
  %2074 = vmatprep.subr.bf16.mxu0 0
  %2075 = vmatpush1.bf16.msra.mxu0 0
  %2076 = vmatprep.subr.bf16.mxu0 0
  %2077 = vmatpush1.bf16.msra.mxu0 0
  %2078 = vmatprep.subr.bf16.mxu0 0
  %2079 = vmatpush1.bf16.msra.mxu0 0
  %2080 = vmatprep.subr.bf16.mxu0 0
  %2081 = vmatpush1.bf16.msra.mxu0 0
  %2082 = vmatprep.subr.bf16.mxu0 0
  %2083 = vmatpush1.bf16.msra.mxu0 0
  %2084 = vmatprep.subr.bf16.mxu0 0
  %2085 = vmatpush1.bf16.msra.mxu0 0
  %2086 = vmatprep.subr.bf16.mxu0 0
  %2087 = vmatpush1.bf16.msra.mxu0 0
  %2088 = vmatprep.subr.bf16.mxu0 0
  %2089 = vmatpush1.bf16.msra.mxu0 0
  %2090 = vmatprep.subr.bf16.mxu0 0
  %2091 = vmatpush1.bf16.msra.mxu0 0
  %2092 = vmatprep.mubr.bf16.mxu0 0
  %2093 = vmatmul.mubr.bf16.gmra.mrb[0].mxu0 %v2058
  %v2094 = vpop.f32.mrb[0].mxu0
  %v2095 = vadd.f32 %v2043, %v2094
  %v2096 = vpop.f32.mrb[0].mxu0
  %v2097 = vpop.f32.mrb[0].mxu0
  %v2098 = vadd.f32 %v2043, %v2097
  %v2099 = vpop.f32.mrb[0].mxu0
  %2100 = vdwg.mxu0
  %2102 = vrot.lane.b32.xlu0 %v2095, 96
  %v2103 = vpop.permute.xlu0 %2102
  %v2104 = vsel %vm344, %v2095, 0
  %v2106 = vsel %vm344, %v2103, 0
  %2108 = vmatprep.subr.mxu0 0.0
  %2109 = vmatpush1.xpose.msra.mxu0 %v2106
  %2110 = vmatprep.subr.mxu0 0.0
  %2111 = vmatpush1.xpose.msra.mxu0 0.0
  %2112 = vmatprep.subr.mxu0 0.0
  %2113 = vmatpush1.xpose.msra.mxu0 0.0
  %2114 = vmatprep.subr.mxu0 0.0
  %2115 = vmatpush1.xpose.msra.mxu0 0.0
  %2116 = vmatprep.subr.mxu0 0.0
  %2117 = vmatpush1.xpose.msra.mxu0 0.0
  %2118 = vmatprep.subr.mxu0 0.0
  %2119 = vmatpush1.xpose.msra.mxu0 0.0
  %2120 = vmatprep.subr.mxu0 0.0
  %2121 = vmatpush1.xpose.msra.mxu0 0.0
  %2122 = vmatprep.subr.mxu0 0.0
  %2123 = vmatpush1.xpose.msra.mxu0 0.0
  %2124 = vmatprep.subr.mxu0 0.0
  %2125 = vmatpush1.xpose.msra.mxu0 0.0
  %2126 = vmatprep.subr.mxu0 0.0
  %2127 = vmatpush1.xpose.msra.mxu0 0.0
  %2128 = vmatprep.subr.mxu0 0.0
  %2129 = vmatpush1.xpose.msra.mxu0 0.0
  %2130 = vmatprep.subr.mxu0 0.0
  %2131 = vmatpush1.xpose.msra.mxu0 0.0
  %2132 = vmatprep.subr.mxu0 0.0
  %2133 = vmatpush1.xpose.msra.mxu0 0.0
  %2134 = vmatprep.subr.mxu0 0.0
  %2135 = vmatpush1.xpose.msra.mxu0 0.0
  %2136 = vmatprep.subr.mxu0 0.0
  %2137 = vmatpush1.xpose.msra.mxu0 0.0
  %2138 = vmatprep.subr.mxu0 0.0
  %2139 = vmatpush1.xpose.msra.mxu0 0.0
  %2140 = vmatprep.subr.mxu0 0.0
  %2141 = vmatpush1.xpose.msra.mxu0 0.0
  %2142 = vmatprep.subr.mxu0 0.0
  %2143 = vmatpush1.xpose.msra.mxu0 0.0
  %2144 = vmatprep.subr.mxu0 0.0
  %2145 = vmatpush1.xpose.msra.mxu0 0.0
  %2146 = vmatprep.subr.mxu0 0.0
  %2147 = vmatpush1.xpose.msra.mxu0 0.0
  %2148 = vmatprep.subr.mxu0 0.0
  %2149 = vmatpush1.xpose.msra.mxu0 0.0
  %2150 = vmatprep.subr.mxu0 0.0
  %2151 = vmatpush1.xpose.msra.mxu0 0.0
  %2152 = vmatprep.subr.mxu0 0.0
  %2153 = vmatpush1.xpose.msra.mxu0 0.0
  %2154 = vmatprep.subr.mxu0 0.0
  %2155 = vmatpush1.xpose.msra.mxu0 0.0
  %2156 = vmatprep.subr.mxu0 0.0
  %2157 = vmatpush1.xpose.msra.mxu0 0.0
  %2158 = vmatprep.subr.mxu0 0.0
  %2159 = vmatpush1.xpose.msra.mxu0 0.0
  %2160 = vmatprep.subr.mxu0 0.0
  %2161 = vmatpush1.xpose.msra.mxu0 0.0
  %2162 = vmatprep.subr.mxu0 0.0
  %2163 = vmatpush1.xpose.msra.mxu0 0.0
  %2164 = vmatprep.subr.mxu0 0.0
  %2165 = vmatpush1.xpose.msra.mxu0 0.0
  %2166 = vmatprep.subr.mxu0 0.0
  %2167 = vmatpush1.xpose.msra.mxu0 0.0
  %2168 = vmatprep.subr.mxu0 0.0
  %2169 = vmatpush1.xpose.msra.mxu0 0.0
  %2170 = vmatprep.subr.mxu0 0.0
  %2171 = vmatpush1.xpose.msra.mxu0 0.0
  %2172 = vmatprep.mubr.f32.mxu0 0.0
  %2173 = vmatmul.mubr.f32.gmra.mrb[0].mxu0 %v2104
  %v2174 = vpop.f32.mrb[0].mxu0
  %v2175 = vadd.f32 0.0, %v2174
  %v2176 = vpop.f32.mrb[0].mxu0
  %2177 = vdwg.mxu0
  %v2178 = vmul.f32 %v2175, 0.35355338
  %v2179 = vadd.f32 %v2178, %v424
  %2180 = vrot.lane.b32.xlu0 %v2095, 120
  %v2181 = vpop.permute.xlu0 %2180
  %2182 = vrot.lane.b32.xlu0 %v2095, 88
  %v2183 = vpop.permute.xlu0 %2182
  %v2184 = vsel %vm344, %v2181, 0
  %v2186 = vsel %vm344, %v2183, 0
  %2188 = vmatprep.subr.mxu0 0.0
  %2189 = vmatpush1.xpose.msra.mxu0 %v2186
  %2190 = vmatprep.subr.mxu0 0.0
  %2191 = vmatpush1.xpose.msra.mxu0 0.0
  %2192 = vmatprep.subr.mxu0 0.0
  %2193 = vmatpush1.xpose.msra.mxu0 0.0
  %2194 = vmatprep.subr.mxu0 0.0
  %2195 = vmatpush1.xpose.msra.mxu0 0.0
  %2196 = vmatprep.subr.mxu0 0.0
  %2197 = vmatpush1.xpose.msra.mxu0 0.0
  %2198 = vmatprep.subr.mxu0 0.0
  %2199 = vmatpush1.xpose.msra.mxu0 0.0
  %2200 = vmatprep.subr.mxu0 0.0
  %2201 = vmatpush1.xpose.msra.mxu0 0.0
  %2202 = vmatprep.subr.mxu0 0.0
  %2203 = vmatpush1.xpose.msra.mxu0 0.0
  %2204 = vmatprep.subr.mxu0 0.0
  %2205 = vmatpush1.xpose.msra.mxu0 0.0
  %2206 = vmatprep.subr.mxu0 0.0
  %2207 = vmatpush1.xpose.msra.mxu0 0.0
  %2208 = vmatprep.subr.mxu0 0.0
  %2209 = vmatpush1.xpose.msra.mxu0 0.0
  %2210 = vmatprep.subr.mxu0 0.0
  %2211 = vmatpush1.xpose.msra.mxu0 0.0
  %2212 = vmatprep.subr.mxu0 0.0
  %2213 = vmatpush1.xpose.msra.mxu0 0.0
  %2214 = vmatprep.subr.mxu0 0.0
  %2215 = vmatpush1.xpose.msra.mxu0 0.0
  %2216 = vmatprep.subr.mxu0 0.0
  %2217 = vmatpush1.xpose.msra.mxu0 0.0
  %2218 = vmatprep.subr.mxu0 0.0
  %2219 = vmatpush1.xpose.msra.mxu0 0.0
  %2220 = vmatprep.subr.mxu0 0.0
  %2221 = vmatpush1.xpose.msra.mxu0 0.0
  %2222 = vmatprep.subr.mxu0 0.0
  %2223 = vmatpush1.xpose.msra.mxu0 0.0
  %2224 = vmatprep.subr.mxu0 0.0
  %2225 = vmatpush1.xpose.msra.mxu0 0.0
  %2226 = vmatprep.subr.mxu0 0.0
  %2227 = vmatpush1.xpose.msra.mxu0 0.0
  %2228 = vmatprep.subr.mxu0 0.0
  %2229 = vmatpush1.xpose.msra.mxu0 0.0
  %2230 = vmatprep.subr.mxu0 0.0
  %2231 = vmatpush1.xpose.msra.mxu0 0.0
  %2232 = vmatprep.subr.mxu0 0.0
  %2233 = vmatpush1.xpose.msra.mxu0 0.0
  %2234 = vmatprep.subr.mxu0 0.0
  %2235 = vmatpush1.xpose.msra.mxu0 0.0
  %2236 = vmatprep.subr.mxu0 0.0
  %2237 = vmatpush1.xpose.msra.mxu0 0.0
  %2238 = vmatprep.subr.mxu0 0.0
  %2239 = vmatpush1.xpose.msra.mxu0 0.0
  %2240 = vmatprep.subr.mxu0 0.0
  %2241 = vmatpush1.xpose.msra.mxu0 0.0
  %2242 = vmatprep.subr.mxu0 0.0
  %2243 = vmatpush1.xpose.msra.mxu0 0.0
  %2244 = vmatprep.subr.mxu0 0.0
  %2245 = vmatpush1.xpose.msra.mxu0 0.0
  %2246 = vmatprep.subr.mxu0 0.0
  %2247 = vmatpush1.xpose.msra.mxu0 0.0
  %2248 = vmatprep.subr.mxu0 0.0
  %2249 = vmatpush1.xpose.msra.mxu0 0.0
  %2250 = vmatprep.subr.mxu0 0.0
  %2251 = vmatpush1.xpose.msra.mxu0 0.0
  %2252 = vmatprep.mubr.f32.mxu0 0.0
  %2253 = vmatmul.mubr.f32.gmra.mrb[0].mxu0 %v2184
  %v2254 = vpop.f32.mrb[0].mxu0
  %v2255 = vadd.f32 0.0, %v2254
  %v2256 = vpop.f32.mrb[0].mxu0
  %2257 = vdwg.mxu0
  %v2258 = vmul.f32 %v2255, 0.35355338
  %v2259 = vadd.f32 %v2258, %v424
  %2260 = vrot.lane.b32.xlu0 %v2095, 112
  %v2261 = vpop.permute.xlu0 %2260
  %2262 = vrot.lane.b32.xlu0 %v2095, 80
  %v2263 = vpop.permute.xlu0 %2262
  %v2264 = vsel %vm344, %v2261, 0
  %v2266 = vsel %vm344, %v2263, 0
  %2268 = vmatprep.subr.mxu0 0.0
  %2269 = vmatpush1.xpose.msra.mxu0 %v2266
  %2270 = vmatprep.subr.mxu0 0.0
  %2271 = vmatpush1.xpose.msra.mxu0 0.0
  %2272 = vmatprep.subr.mxu0 0.0
  %2273 = vmatpush1.xpose.msra.mxu0 0.0
  %2274 = vmatprep.subr.mxu0 0.0
  %2275 = vmatpush1.xpose.msra.mxu0 0.0
  %2276 = vmatprep.subr.mxu0 0.0
  %2277 = vmatpush1.xpose.msra.mxu0 0.0
  %2278 = vmatprep.subr.mxu0 0.0
  %2279 = vmatpush1.xpose.msra.mxu0 0.0
  %2280 = vmatprep.subr.mxu0 0.0
  %2281 = vmatpush1.xpose.msra.mxu0 0.0
  %2282 = vmatprep.subr.mxu0 0.0
  %2283 = vmatpush1.xpose.msra.mxu0 0.0
  %2284 = vmatprep.subr.mxu0 0.0
  %2285 = vmatpush1.xpose.msra.mxu0 0.0
  %2286 = vmatprep.subr.mxu0 0.0
  %2287 = vmatpush1.xpose.msra.mxu0 0.0
  %2288 = vmatprep.subr.mxu0 0.0
  %2289 = vmatpush1.xpose.msra.mxu0 0.0
  %2290 = vmatprep.subr.mxu0 0.0
  %2291 = vmatpush1.xpose.msra.mxu0 0.0
  %2292 = vmatprep.subr.mxu0 0.0
  %2293 = vmatpush1.xpose.msra.mxu0 0.0
  %2294 = vmatprep.subr.mxu0 0.0
  %2295 = vmatpush1.xpose.msra.mxu0 0.0
  %2296 = vmatprep.subr.mxu0 0.0
  %2297 = vmatpush1.xpose.msra.mxu0 0.0
  %2298 = vmatprep.subr.mxu0 0.0
  %2299 = vmatpush1.xpose.msra.mxu0 0.0
  %2300 = vmatprep.subr.mxu0 0.0
  %2301 = vmatpush1.xpose.msra.mxu0 0.0
  %2302 = vmatprep.subr.mxu0 0.0
  %2303 = vmatpush1.xpose.msra.mxu0 0.0
  %2304 = vmatprep.subr.mxu0 0.0
  %2305 = vmatpush1.xpose.msra.mxu0 0.0
  %2306 = vmatprep.subr.mxu0 0.0
  %2307 = vmatpush1.xpose.msra.mxu0 0.0
  %2308 = vmatprep.subr.mxu0 0.0
  %2309 = vmatpush1.xpose.msra.mxu0 0.0
  %2310 = vmatprep.subr.mxu0 0.0
  %2311 = vmatpush1.xpose.msra.mxu0 0.0
  %2312 = vmatprep.subr.mxu0 0.0
  %2313 = vmatpush1.xpose.msra.mxu0 0.0
  %2314 = vmatprep.subr.mxu0 0.0
  %2315 = vmatpush1.xpose.msra.mxu0 0.0
  %2316 = vmatprep.subr.mxu0 0.0
  %2317 = vmatpush1.xpose.msra.mxu0 0.0
  %2318 = vmatprep.subr.mxu0 0.0
  %2319 = vmatpush1.xpose.msra.mxu0 0.0
  %2320 = vmatprep.subr.mxu0 0.0
  %2321 = vmatpush1.xpose.msra.mxu0 0.0
  %2322 = vmatprep.subr.mxu0 0.0
  %2323 = vmatpush1.xpose.msra.mxu0 0.0
  %2324 = vmatprep.subr.mxu0 0.0
  %2325 = vmatpush1.xpose.msra.mxu0 0.0
  %2326 = vmatprep.subr.mxu0 0.0
  %2327 = vmatpush1.xpose.msra.mxu0 0.0
  %2328 = vmatprep.subr.mxu0 0.0
  %2329 = vmatpush1.xpose.msra.mxu0 0.0
  %2330 = vmatprep.subr.mxu0 0.0
  %2331 = vmatpush1.xpose.msra.mxu0 0.0
  %2332 = vmatprep.mubr.f32.mxu0 0.0
  %2333 = vmatmul.mubr.f32.gmra.mrb[0].mxu0 %v2264
  %v2334 = vpop.f32.mrb[0].mxu0
  %v2335 = vadd.f32 0.0, %v2334
  %v2336 = vpop.f32.mrb[0].mxu0
  %2337 = vdwg.mxu0
  %v2338 = vmul.f32 %v2335, 0.35355338
  %v2339 = vadd.f32 %v2338, %v424
  %2340 = vrot.lane.b32.xlu0 %v2095, 104
  %v2341 = vpop.permute.xlu0 %2340
  %2342 = vrot.lane.b32.xlu0 %v2095, 72
  %v2343 = vpop.permute.xlu0 %2342
  %v2344 = vsel %vm344, %v2341, 0
  %v2346 = vsel %vm344, %v2343, 0
  %2348 = vmatprep.subr.mxu0 0.0
  %2349 = vmatpush1.xpose.msra.mxu0 %v2346
  %2350 = vmatprep.subr.mxu0 0.0
  %2351 = vmatpush1.xpose.msra.mxu0 0.0
  %2352 = vmatprep.subr.mxu0 0.0
  %2353 = vmatpush1.xpose.msra.mxu0 0.0
  %2354 = vmatprep.subr.mxu0 0.0
  %2355 = vmatpush1.xpose.msra.mxu0 0.0
  %2356 = vmatprep.subr.mxu0 0.0
  %2357 = vmatpush1.xpose.msra.mxu0 0.0
  %2358 = vmatprep.subr.mxu0 0.0
  %2359 = vmatpush1.xpose.msra.mxu0 0.0
  %2360 = vmatprep.subr.mxu0 0.0
  %2361 = vmatpush1.xpose.msra.mxu0 0.0
  %2362 = vmatprep.subr.mxu0 0.0
  %2363 = vmatpush1.xpose.msra.mxu0 0.0
  %2364 = vmatprep.subr.mxu0 0.0
  %2365 = vmatpush1.xpose.msra.mxu0 0.0
  %2366 = vmatprep.subr.mxu0 0.0
  %2367 = vmatpush1.xpose.msra.mxu0 0.0
  %2368 = vmatprep.subr.mxu0 0.0
  %2369 = vmatpush1.xpose.msra.mxu0 0.0
  %2370 = vmatprep.subr.mxu0 0.0
  %2371 = vmatpush1.xpose.msra.mxu0 0.0
  %2372 = vmatprep.subr.mxu0 0.0
  %2373 = vmatpush1.xpose.msra.mxu0 0.0
  %2374 = vmatprep.subr.mxu0 0.0
  %2375 = vmatpush1.xpose.msra.mxu0 0.0
  %2376 = vmatprep.subr.mxu0 0.0
  %2377 = vmatpush1.xpose.msra.mxu0 0.0
  %2378 = vmatprep.subr.mxu0 0.0
  %2379 = vmatpush1.xpose.msra.mxu0 0.0
  %2380 = vmatprep.subr.mxu0 0.0
  %2381 = vmatpush1.xpose.msra.mxu0 0.0
  %2382 = vmatprep.subr.mxu0 0.0
  %2383 = vmatpush1.xpose.msra.mxu0 0.0
  %2384 = vmatprep.subr.mxu0 0.0
  %2385 = vmatpush1.xpose.msra.mxu0 0.0
  %2386 = vmatprep.subr.mxu0 0.0
  %2387 = vmatpush1.xpose.msra.mxu0 0.0
  %2388 = vmatprep.subr.mxu0 0.0
  %2389 = vmatpush1.xpose.msra.mxu0 0.0
  %2390 = vmatprep.subr.mxu0 0.0
  %2391 = vmatpush1.xpose.msra.mxu0 0.0
  %2392 = vmatprep.subr.mxu0 0.0
  %2393 = vmatpush1.xpose.msra.mxu0 0.0
  %2394 = vmatprep.subr.mxu0 0.0
  %2395 = vmatpush1.xpose.msra.mxu0 0.0
  %2396 = vmatprep.subr.mxu0 0.0
  %2397 = vmatpush1.xpose.msra.mxu0 0.0
  %2398 = vmatprep.subr.mxu0 0.0
  %2399 = vmatpush1.xpose.msra.mxu0 0.0
  %2400 = vmatprep.subr.mxu0 0.0
  %2401 = vmatpush1.xpose.msra.mxu0 0.0
  %2402 = vmatprep.subr.mxu0 0.0
  %2403 = vmatpush1.xpose.msra.mxu0 0.0
  %2404 = vmatprep.subr.mxu0 0.0
  %2405 = vmatpush1.xpose.msra.mxu0 0.0
  %2406 = vmatprep.subr.mxu0 0.0
  %2407 = vmatpush1.xpose.msra.mxu0 0.0
  %2408 = vmatprep.subr.mxu0 0.0
  %2409 = vmatpush1.xpose.msra.mxu0 0.0
  %2410 = vmatprep.subr.mxu0 0.0
  %2411 = vmatpush1.xpose.msra.mxu0 0.0
  %2412 = vmatprep.mubr.f32.mxu0 0.0
  %2413 = vmatmul.mubr.f32.gmra.mrb[0].mxu0 %v2344
  %v2414 = vpop.f32.mrb[0].mxu0
  %v2415 = vadd.f32 0.0, %v2414
  %v2416 = vpop.f32.mrb[0].mxu0
  %2417 = vdwg.mxu0
  %v2418 = vmul.f32 %v2415, 0.35355338
  %v2419 = vadd.f32 %v2418, %v424
  %2421 = vrot.lane.b32.xlu0 %v2098, 96
  %v2422 = vpop.permute.xlu0 %2421
  %v2423 = vsel %vm344, %v2098, 0
  %v2425 = vsel %vm344, %v2422, 0
  %2427 = vmatprep.subr.mxu0 0.0
  %2428 = vmatpush1.xpose.msra.mxu0 %v2425
  %2429 = vmatprep.subr.mxu0 0.0
  %2430 = vmatpush1.xpose.msra.mxu0 0.0
  %2431 = vmatprep.subr.mxu0 0.0
  %2432 = vmatpush1.xpose.msra.mxu0 0.0
  %2433 = vmatprep.subr.mxu0 0.0
  %2434 = vmatpush1.xpose.msra.mxu0 0.0
  %2435 = vmatprep.subr.mxu0 0.0
  %2436 = vmatpush1.xpose.msra.mxu0 0.0
  %2437 = vmatprep.subr.mxu0 0.0
  %2438 = vmatpush1.xpose.msra.mxu0 0.0
  %2439 = vmatprep.subr.mxu0 0.0
  %2440 = vmatpush1.xpose.msra.mxu0 0.0
  %2441 = vmatprep.subr.mxu0 0.0
  %2442 = vmatpush1.xpose.msra.mxu0 0.0
  %2443 = vmatprep.subr.mxu0 0.0
  %2444 = vmatpush1.xpose.msra.mxu0 0.0
  %2445 = vmatprep.subr.mxu0 0.0
  %2446 = vmatpush1.xpose.msra.mxu0 0.0
  %2447 = vmatprep.subr.mxu0 0.0
  %2448 = vmatpush1.xpose.msra.mxu0 0.0
  %2449 = vmatprep.subr.mxu0 0.0
  %2450 = vmatpush1.xpose.msra.mxu0 0.0
  %2451 = vmatprep.subr.mxu0 0.0
  %2452 = vmatpush1.xpose.msra.mxu0 0.0
  %2453 = vmatprep.subr.mxu0 0.0
  %2454 = vmatpush1.xpose.msra.mxu0 0.0
  %2455 = vmatprep.subr.mxu0 0.0
  %2456 = vmatpush1.xpose.msra.mxu0 0.0
  %2457 = vmatprep.subr.mxu0 0.0
  %2458 = vmatpush1.xpose.msra.mxu0 0.0
  %2459 = vmatprep.subr.mxu0 0.0
  %2460 = vmatpush1.xpose.msra.mxu0 0.0
  %2461 = vmatprep.subr.mxu0 0.0
  %2462 = vmatpush1.xpose.msra.mxu0 0.0
  %2463 = vmatprep.subr.mxu0 0.0
  %2464 = vmatpush1.xpose.msra.mxu0 0.0
  %2465 = vmatprep.subr.mxu0 0.0
  %2466 = vmatpush1.xpose.msra.mxu0 0.0
  %2467 = vmatprep.subr.mxu0 0.0
  %2468 = vmatpush1.xpose.msra.mxu0 0.0
  %2469 = vmatprep.subr.mxu0 0.0
  %2470 = vmatpush1.xpose.msra.mxu0 0.0
  %2471 = vmatprep.subr.mxu0 0.0
  %2472 = vmatpush1.xpose.msra.mxu0 0.0
  %2473 = vmatprep.subr.mxu0 0.0
  %2474 = vmatpush1.xpose.msra.mxu0 0.0
  %2475 = vmatprep.subr.mxu0 0.0
  %2476 = vmatpush1.xpose.msra.mxu0 0.0
  %2477 = vmatprep.subr.mxu0 0.0
  %2478 = vmatpush1.xpose.msra.mxu0 0.0
  %2479 = vmatprep.subr.mxu0 0.0
  %2480 = vmatpush1.xpose.msra.mxu0 0.0
  %2481 = vmatprep.subr.mxu0 0.0
  %2482 = vmatpush1.xpose.msra.mxu0 0.0
  %2483 = vmatprep.subr.mxu0 0.0
  %2484 = vmatpush1.xpose.msra.mxu0 0.0
  %2485 = vmatprep.subr.mxu0 0.0
  %2486 = vmatpush1.xpose.msra.mxu0 0.0
  %2487 = vmatprep.subr.mxu0 0.0
  %2488 = vmatpush1.xpose.msra.mxu0 0.0
  %2489 = vmatprep.subr.mxu0 0.0
  %2490 = vmatpush1.xpose.msra.mxu0 0.0
  %2491 = vmatprep.mubr.f32.mxu0 0.0
  %2492 = vmatmul.mubr.f32.gmra.mrb[0].mxu0 %v2423
  %v2493 = vpop.f32.mrb[0].mxu0
  %v2494 = vadd.f32 0.0, %v2493
  %v2495 = vpop.f32.mrb[0].mxu0
  %2496 = vdwg.mxu0
  %v2497 = vmul.f32 %v2494, 0.35355338
  %v2498 = vadd.f32 %v2497, %v424
  %2499 = vrot.lane.b32.xlu0 %v2098, 120
  %v2500 = vpop.permute.xlu0 %2499
  %2501 = vrot.lane.b32.xlu0 %v2098, 88
  %v2502 = vpop.permute.xlu0 %2501
  %v2503 = vsel %vm344, %v2500, 0
  %v2505 = vsel %vm344, %v2502, 0
  %2507 = vmatprep.subr.mxu0 0.0
  %2508 = vmatpush1.xpose.msra.mxu0 %v2505
  %2509 = vmatprep.subr.mxu0 0.0
  %2510 = vmatpush1.xpose.msra.mxu0 0.0
  %2511 = vmatprep.subr.mxu0 0.0
  %2512 = vmatpush1.xpose.msra.mxu0 0.0
  %2513 = vmatprep.subr.mxu0 0.0
  %2514 = vmatpush1.xpose.msra.mxu0 0.0
  %2515 = vmatprep.subr.mxu0 0.0
  %2516 = vmatpush1.xpose.msra.mxu0 0.0
  %2517 = vmatprep.subr.mxu0 0.0
  %2518 = vmatpush1.xpose.msra.mxu0 0.0
  %2519 = vmatprep.subr.mxu0 0.0
  %2520 = vmatpush1.xpose.msra.mxu0 0.0
  %2521 = vmatprep.subr.mxu0 0.0
  %2522 = vmatpush1.xpose.msra.mxu0 0.0
  %2523 = vmatprep.subr.mxu0 0.0
  %2524 = vmatpush1.xpose.msra.mxu0 0.0
  %2525 = vmatprep.subr.mxu0 0.0
  %2526 = vmatpush1.xpose.msra.mxu0 0.0
  %2527 = vmatprep.subr.mxu0 0.0
  %2528 = vmatpush1.xpose.msra.mxu0 0.0
  %2529 = vmatprep.subr.mxu0 0.0
  %2530 = vmatpush1.xpose.msra.mxu0 0.0
  %2531 = vmatprep.subr.mxu0 0.0
  %2532 = vmatpush1.xpose.msra.mxu0 0.0
  %2533 = vmatprep.subr.mxu0 0.0
  %2534 = vmatpush1.xpose.msra.mxu0 0.0
  %2535 = vmatprep.subr.mxu0 0.0
  %2536 = vmatpush1.xpose.msra.mxu0 0.0
  %2537 = vmatprep.subr.mxu0 0.0
  %2538 = vmatpush1.xpose.msra.mxu0 0.0
  %2539 = vmatprep.subr.mxu0 0.0
  %2540 = vmatpush1.xpose.msra.mxu0 0.0
  %2541 = vmatprep.subr.mxu0 0.0
  %2542 = vmatpush1.xpose.msra.mxu0 0.0
  %2543 = vmatprep.subr.mxu0 0.0
  %2544 = vmatpush1.xpose.msra.mxu0 0.0
  %2545 = vmatprep.subr.mxu0 0.0
  %2546 = vmatpush1.xpose.msra.mxu0 0.0
  %2547 = vmatprep.subr.mxu0 0.0
  %2548 = vmatpush1.xpose.msra.mxu0 0.0
  %2549 = vmatprep.subr.mxu0 0.0
  %2550 = vmatpush1.xpose.msra.mxu0 0.0
  %2551 = vmatprep.subr.mxu0 0.0
  %2552 = vmatpush1.xpose.msra.mxu0 0.0
  %2553 = vmatprep.subr.mxu0 0.0
  %2554 = vmatpush1.xpose.msra.mxu0 0.0
  %2555 = vmatprep.subr.mxu0 0.0
  %2556 = vmatpush1.xpose.msra.mxu0 0.0
  %2557 = vmatprep.subr.mxu0 0.0
  %2558 = vmatpush1.xpose.msra.mxu0 0.0
  %2559 = vmatprep.subr.mxu0 0.0
  %2560 = vmatpush1.xpose.msra.mxu0 0.0
  %2561 = vmatprep.subr.mxu0 0.0
  %2562 = vmatpush1.xpose.msra.mxu0 0.0
  %2563 = vmatprep.subr.mxu0 0.0
  %2564 = vmatpush1.xpose.msra.mxu0 0.0
  %2565 = vmatprep.subr.mxu0 0.0
  %2566 = vmatpush1.xpose.msra.mxu0 0.0
  %2567 = vmatprep.subr.mxu0 0.0
  %2568 = vmatpush1.xpose.msra.mxu0 0.0
  %2569 = vmatprep.subr.mxu0 0.0
  %2570 = vmatpush1.xpose.msra.mxu0 0.0
  %2571 = vmatprep.mubr.f32.mxu0 0.0
  %2572 = vmatmul.mubr.f32.gmra.mrb[0].mxu0 %v2503
  %v2573 = vpop.f32.mrb[0].mxu0
  %v2574 = vadd.f32 0.0, %v2573
  %v2575 = vpop.f32.mrb[0].mxu0
  %2576 = vdwg.mxu0
  %v2577 = vmul.f32 %v2574, 0.35355338
  %v2578 = vadd.f32 %v2577, %v424
  %2579 = vrot.lane.b32.xlu0 %v2098, 112
  %v2580 = vpop.permute.xlu0 %2579
  %2581 = vrot.lane.b32.xlu0 %v2098, 80
  %v2582 = vpop.permute.xlu0 %2581
  %v2583 = vsel %vm344, %v2580, 0
  %v2585 = vsel %vm344, %v2582, 0
  %2587 = vmatprep.subr.mxu0 0.0
  %2588 = vmatpush1.xpose.msra.mxu0 %v2585
  %2589 = vmatprep.subr.mxu0 0.0
  %2590 = vmatpush1.xpose.msra.mxu0 0.0
  %2591 = vmatprep.subr.mxu0 0.0
  %2592 = vmatpush1.xpose.msra.mxu0 0.0
  %2593 = vmatprep.subr.mxu0 0.0
  %2594 = vmatpush1.xpose.msra.mxu0 0.0
  %2595 = vmatprep.subr.mxu0 0.0
  %2596 = vmatpush1.xpose.msra.mxu0 0.0
  %2597 = vmatprep.subr.mxu0 0.0
  %2598 = vmatpush1.xpose.msra.mxu0 0.0
  %2599 = vmatprep.subr.mxu0 0.0
  %2600 = vmatpush1.xpose.msra.mxu0 0.0
  %2601 = vmatprep.subr.mxu0 0.0
  %2602 = vmatpush1.xpose.msra.mxu0 0.0
  %2603 = vmatprep.subr.mxu0 0.0
  %2604 = vmatpush1.xpose.msra.mxu0 0.0
  %2605 = vmatprep.subr.mxu0 0.0
  %2606 = vmatpush1.xpose.msra.mxu0 0.0
  %2607 = vmatprep.subr.mxu0 0.0
  %2608 = vmatpush1.xpose.msra.mxu0 0.0
  %2609 = vmatprep.subr.mxu0 0.0
  %2610 = vmatpush1.xpose.msra.mxu0 0.0
  %2611 = vmatprep.subr.mxu0 0.0
  %2612 = vmatpush1.xpose.msra.mxu0 0.0
  %2613 = vmatprep.subr.mxu0 0.0
  %2614 = vmatpush1.xpose.msra.mxu0 0.0
  %2615 = vmatprep.subr.mxu0 0.0
  %2616 = vmatpush1.xpose.msra.mxu0 0.0
  %2617 = vmatprep.subr.mxu0 0.0
  %2618 = vmatpush1.xpose.msra.mxu0 0.0
  %2619 = vmatprep.subr.mxu0 0.0
  %2620 = vmatpush1.xpose.msra.mxu0 0.0
  %2621 = vmatprep.subr.mxu0 0.0
  %2622 = vmatpush1.xpose.msra.mxu0 0.0
  %2623 = vmatprep.subr.mxu0 0.0
  %2624 = vmatpush1.xpose.msra.mxu0 0.0
  %2625 = vmatprep.subr.mxu0 0.0
  %2626 = vmatpush1.xpose.msra.mxu0 0.0
  %2627 = vmatprep.subr.mxu0 0.0
  %2628 = vmatpush1.xpose.msra.mxu0 0.0
  %2629 = vmatprep.subr.mxu0 0.0
  %2630 = vmatpush1.xpose.msra.mxu0 0.0
  %2631 = vmatprep.subr.mxu0 0.0
  %2632 = vmatpush1.xpose.msra.mxu0 0.0
  %2633 = vmatprep.subr.mxu0 0.0
  %2634 = vmatpush1.xpose.msra.mxu0 0.0
  %2635 = vmatprep.subr.mxu0 0.0
  %2636 = vmatpush1.xpose.msra.mxu0 0.0
  %2637 = vmatprep.subr.mxu0 0.0
  %2638 = vmatpush1.xpose.msra.mxu0 0.0
  %2639 = vmatprep.subr.mxu0 0.0
  %2640 = vmatpush1.xpose.msra.mxu0 0.0
  %2641 = vmatprep.subr.mxu0 0.0
  %2642 = vmatpush1.xpose.msra.mxu0 0.0
  %2643 = vmatprep.subr.mxu0 0.0
  %2644 = vmatpush1.xpose.msra.mxu0 0.0
  %2645 = vmatprep.subr.mxu0 0.0
  %2646 = vmatpush1.xpose.msra.mxu0 0.0
  %2647 = vmatprep.subr.mxu0 0.0
  %2648 = vmatpush1.xpose.msra.mxu0 0.0
  %2649 = vmatprep.subr.mxu0 0.0
  %2650 = vmatpush1.xpose.msra.mxu0 0.0
  %2651 = vmatprep.mubr.f32.mxu0 0.0
  %2652 = vmatmul.mubr.f32.gmra.mrb[0].mxu0 %v2583
  %v2653 = vpop.f32.mrb[0].mxu0
  %v2654 = vadd.f32 0.0, %v2653
  %v2655 = vpop.f32.mrb[0].mxu0
  %2656 = vdwg.mxu0
  %v2657 = vmul.f32 %v2654, 0.35355338
  %v2658 = vadd.f32 %v2657, %v424
  %2659 = vrot.lane.b32.xlu0 %v2098, 104
  %v2660 = vpop.permute.xlu0 %2659
  %2661 = vrot.lane.b32.xlu0 %v2098, 72
  %v2662 = vpop.permute.xlu0 %2661
  %v2663 = vsel %vm344, %v2660, 0
  %v2665 = vsel %vm344, %v2662, 0
  %2667 = vmatprep.subr.mxu0 0.0
  %2668 = vmatpush1.xpose.msra.mxu0 %v2665
  %2669 = vmatprep.subr.mxu0 0.0
  %2670 = vmatpush1.xpose.msra.mxu0 0.0
  %2671 = vmatprep.subr.mxu0 0.0
  %2672 = vmatpush1.xpose.msra.mxu0 0.0
  %2673 = vmatprep.subr.mxu0 0.0
  %2674 = vmatpush1.xpose.msra.mxu0 0.0
  %2675 = vmatprep.subr.mxu0 0.0
  %2676 = vmatpush1.xpose.msra.mxu0 0.0
  %2677 = vmatprep.subr.mxu0 0.0
  %2678 = vmatpush1.xpose.msra.mxu0 0.0
  %2679 = vmatprep.subr.mxu0 0.0
  %2680 = vmatpush1.xpose.msra.mxu0 0.0
  %2681 = vmatprep.subr.mxu0 0.0
  %2682 = vmatpush1.xpose.msra.mxu0 0.0
  %2683 = vmatprep.subr.mxu0 0.0
  %2684 = vmatpush1.xpose.msra.mxu0 0.0
  %2685 = vmatprep.subr.mxu0 0.0
  %2686 = vmatpush1.xpose.msra.mxu0 0.0
  %2687 = vmatprep.subr.mxu0 0.0
  %2688 = vmatpush1.xpose.msra.mxu0 0.0
  %2689 = vmatprep.subr.mxu0 0.0
  %2690 = vmatpush1.xpose.msra.mxu0 0.0
  %2691 = vmatprep.subr.mxu0 0.0
  %2692 = vmatpush1.xpose.msra.mxu0 0.0
  %2693 = vmatprep.subr.mxu0 0.0
  %2694 = vmatpush1.xpose.msra.mxu0 0.0
  %2695 = vmatprep.subr.mxu0 0.0
  %2696 = vmatpush1.xpose.msra.mxu0 0.0
  %2697 = vmatprep.subr.mxu0 0.0
  %2698 = vmatpush1.xpose.msra.mxu0 0.0
  %2699 = vmatprep.subr.mxu0 0.0
  %2700 = vmatpush1.xpose.msra.mxu0 0.0
  %2701 = vmatprep.subr.mxu0 0.0
  %2702 = vmatpush1.xpose.msra.mxu0 0.0
  %2703 = vmatprep.subr.mxu0 0.0
  %2704 = vmatpush1.xpose.msra.mxu0 0.0
  %2705 = vmatprep.subr.mxu0 0.0
  %2706 = vmatpush1.xpose.msra.mxu0 0.0
  %2707 = vmatprep.subr.mxu0 0.0
  %2708 = vmatpush1.xpose.msra.mxu0 0.0
  %2709 = vmatprep.subr.mxu0 0.0
  %2710 = vmatpush1.xpose.msra.mxu0 0.0
  %2711 = vmatprep.subr.mxu0 0.0
  %2712 = vmatpush1.xpose.msra.mxu0 0.0
  %2713 = vmatprep.subr.mxu0 0.0
  %2714 = vmatpush1.xpose.msra.mxu0 0.0
  %2715 = vmatprep.subr.mxu0 0.0
  %2716 = vmatpush1.xpose.msra.mxu0 0.0
  %2717 = vmatprep.subr.mxu0 0.0
  %2718 = vmatpush1.xpose.msra.mxu0 0.0
  %2719 = vmatprep.subr.mxu0 0.0
  %2720 = vmatpush1.xpose.msra.mxu0 0.0
  %2721 = vmatprep.subr.mxu0 0.0
  %2722 = vmatpush1.xpose.msra.mxu0 0.0
  %2723 = vmatprep.subr.mxu0 0.0
  %2724 = vmatpush1.xpose.msra.mxu0 0.0
  %2725 = vmatprep.subr.mxu0 0.0
  %2726 = vmatpush1.xpose.msra.mxu0 0.0
  %2727 = vmatprep.subr.mxu0 0.0
  %2728 = vmatpush1.xpose.msra.mxu0 0.0
  %2729 = vmatprep.subr.mxu0 0.0
  %2730 = vmatpush1.xpose.msra.mxu0 0.0
  %2731 = vmatprep.mubr.f32.mxu0 0.0
  %2732 = vmatmul.mubr.f32.gmra.mrb[0].mxu0 %v2663
  %v2733 = vpop.f32.mrb[0].mxu0
  %v2734 = vadd.f32 0.0, %v2733
  %v2735 = vpop.f32.mrb[0].mxu0
  %2736 = vdwg.mxu0
  %v2737 = vmul.f32 %v2734, 0.35355338
  %v2738 = vadd.f32 %v2737, %v424
  %v2739 = vsel %vm344, %v2179, -inf
  %2740 = vmax.xlane.f32.xlu0 %v2739
  %v2741 = vpop.xlane.xlu0 %2740
  %v2742 = vsub.f32 %v2179, %v2741
  %v2743 = vmul.f32 %v2742, 1.442695
  %v2744 = vpow.pop %v2743
  %v2745 = vsel %vm344, %v2259, -inf
  %2746 = vmax.xlane.f32.xlu0 %v2745
  %v2747 = vpop.xlane.xlu0 %2746
  %v2748 = vsub.f32 %v2259, %v2747
  %v2749 = vmul.f32 %v2748, 1.442695
  %v2750 = vpow.pop %v2749
  %v2751 = vsel %vm344, %v2339, -inf
  %2752 = vmax.xlane.f32.xlu0 %v2751
  %v2753 = vpop.xlane.xlu0 %2752
  %v2754 = vsub.f32 %v2339, %v2753
  %v2755 = vmul.f32 %v2754, 1.442695
  %v2756 = vpow.pop %v2755
  %v2757 = vsel %vm344, %v2419, -inf
  %2758 = vmax.xlane.f32.xlu0 %v2757
  %v2759 = vpop.xlane.xlu0 %2758
  %v2760 = vsub.f32 %v2419, %v2759
  %v2761 = vmul.f32 %v2760, 1.442695
  %v2762 = vpow.pop %v2761
  %v2763 = vsel %vm344, %v2498, -inf
  %2764 = vmax.xlane.f32.xlu0 %v2763
  %v2765 = vpop.xlane.xlu0 %2764
  %v2766 = vsub.f32 %v2498, %v2765
  %v2767 = vmul.f32 %v2766, 1.442695
  %v2768 = vpow.pop %v2767
  %v2769 = vsel %vm344, %v2578, -inf
  %2770 = vmax.xlane.f32.xlu0 %v2769
  %v2771 = vpop.xlane.xlu0 %2770
  %v2772 = vsub.f32 %v2578, %v2771
  %v2773 = vmul.f32 %v2772, 1.442695
  %v2774 = vpow.pop %v2773
  %v2775 = vsel %vm344, %v2658, -inf
  %2776 = vmax.xlane.f32.xlu0 %v2775
  %v2777 = vpop.xlane.xlu0 %2776
  %v2778 = vsub.f32 %v2658, %v2777
  %v2779 = vmul.f32 %v2778, 1.442695
  %v2780 = vpow.pop %v2779
  %v2781 = vsel %vm344, %v2738, -inf
  %2782 = vmax.xlane.f32.xlu0 %v2781
  %v2783 = vpop.xlane.xlu0 %2782
  %v2784 = vsub.f32 %v2738, %v2783
  %v2785 = vmul.f32 %v2784, 1.442695
  %v2786 = vpow.pop %v2785
  %v2787 = vsel %vm344, %v2744, 0.0
  %2788 = vadd.xlane.f32.xlu0 %v2787
  %v2789 = vpop.xlane.xlu0 %2788
  %v2790 = vrcp.pop %v2789
  %v2791 = vmul.f32 %v2744, %v2790
  %v2792 = vsel %vm344, %v2750, 0.0
  %2793 = vadd.xlane.f32.xlu0 %v2792
  %v2794 = vpop.xlane.xlu0 %2793
  %v2795 = vrcp.pop %v2794
  %v2796 = vmul.f32 %v2750, %v2795
  %v2797 = vsel %vm344, %v2756, 0.0
  %2798 = vadd.xlane.f32.xlu0 %v2797
  %v2799 = vpop.xlane.xlu0 %2798
  %v2800 = vrcp.pop %v2799
  %v2801 = vmul.f32 %v2756, %v2800
  %v2802 = vsel %vm344, %v2762, 0.0
  %2803 = vadd.xlane.f32.xlu0 %v2802
  %v2804 = vpop.xlane.xlu0 %2803
  %v2805 = vrcp.pop %v2804
  %v2806 = vmul.f32 %v2762, %v2805
  %v2807 = vsel %vm344, %v2768, 0.0
  %2808 = vadd.xlane.f32.xlu0 %v2807
  %v2809 = vpop.xlane.xlu0 %2808
  %v2810 = vrcp.pop %v2809
  %v2811 = vmul.f32 %v2768, %v2810
  %v2812 = vsel %vm344, %v2774, 0.0
  %2813 = vadd.xlane.f32.xlu0 %v2812
  %v2814 = vpop.xlane.xlu0 %2813
  %v2815 = vrcp.pop %v2814
  %v2816 = vmul.f32 %v2774, %v2815
  %v2817 = vsel %vm344, %v2780, 0.0
  %2818 = vadd.xlane.f32.xlu0 %v2817
  %v2819 = vpop.xlane.xlu0 %2818
  %v2820 = vrcp.pop %v2819
  %v2821 = vmul.f32 %v2780, %v2820
  %v2822 = vsel %vm344, %v2786, 0.0
  %2823 = vadd.xlane.f32.xlu0 %v2822
  %v2824 = vpop.xlane.xlu0 %2823
  %v2825 = vrcp.pop %v2824
  %v2826 = vmul.f32 %v2786, %v2825
  %2827 = vrot.lane.b32.xlu0 %v2095, 64
  %v2828 = vpop.permute.xlu0 %2827
  %v2831 = vsel %vm344, %v2791, 0
  %2833 = vmatprep.subr.mxu0 0.0
  %2834 = vmatpush1.msra.mxu0 %v2828
  %2835 = vmatprep.subr.mxu0 0.0
  %2836 = vmatpush1.msra.mxu0 0.0
  %2837 = vmatprep.subr.mxu0 0.0
  %2838 = vmatpush1.msra.mxu0 0.0
  %2839 = vmatprep.subr.mxu0 0.0
  %2840 = vmatpush1.msra.mxu0 0.0
  %2841 = vmatprep.subr.mxu0 0.0
  %2842 = vmatpush1.msra.mxu0 0.0
  %2843 = vmatprep.subr.mxu0 0.0
  %2844 = vmatpush1.msra.mxu0 0.0
  %2845 = vmatprep.subr.mxu0 0.0
  %2846 = vmatpush1.msra.mxu0 0.0
  %2847 = vmatprep.subr.mxu0 0.0
  %2848 = vmatpush1.msra.mxu0 0.0
  %2849 = vmatprep.subr.mxu0 0.0
  %2850 = vmatpush1.msra.mxu0 0.0
  %2851 = vmatprep.subr.mxu0 0.0
  %2852 = vmatpush1.msra.mxu0 0.0
  %2853 = vmatprep.subr.mxu0 0.0
  %2854 = vmatpush1.msra.mxu0 0.0
  %2855 = vmatprep.subr.mxu0 0.0
  %2856 = vmatpush1.msra.mxu0 0.0
  %2857 = vmatprep.subr.mxu0 0.0
  %2858 = vmatpush1.msra.mxu0 0.0
  %2859 = vmatprep.subr.mxu0 0.0
  %2860 = vmatpush1.msra.mxu0 0.0
  %2861 = vmatprep.subr.mxu0 0.0
  %2862 = vmatpush1.msra.mxu0 0.0
  %2863 = vmatprep.subr.mxu0 0.0
  %2864 = vmatpush1.msra.mxu0 0.0
  %2865 = vmatprep.subr.mxu0 0.0
  %2866 = vmatpush1.msra.mxu0 0.0
  %2867 = vmatprep.subr.mxu0 0.0
  %2868 = vmatpush1.msra.mxu0 0.0
  %2869 = vmatprep.subr.mxu0 0.0
  %2870 = vmatpush1.msra.mxu0 0.0
  %2871 = vmatprep.subr.mxu0 0.0
  %2872 = vmatpush1.msra.mxu0 0.0
  %2873 = vmatprep.subr.mxu0 0.0
  %2874 = vmatpush1.msra.mxu0 0.0
  %2875 = vmatprep.subr.mxu0 0.0
  %2876 = vmatpush1.msra.mxu0 0.0
  %2877 = vmatprep.subr.mxu0 0.0
  %2878 = vmatpush1.msra.mxu0 0.0
  %2879 = vmatprep.subr.mxu0 0.0
  %2880 = vmatpush1.msra.mxu0 0.0
  %2881 = vmatprep.subr.mxu0 0.0
  %2882 = vmatpush1.msra.mxu0 0.0
  %2883 = vmatprep.subr.mxu0 0.0
  %2884 = vmatpush1.msra.mxu0 0.0
  %2885 = vmatprep.subr.mxu0 0.0
  %2886 = vmatpush1.msra.mxu0 0.0
  %2887 = vmatprep.subr.mxu0 0.0
  %2888 = vmatpush1.msra.mxu0 0.0
  %2889 = vmatprep.subr.mxu0 0.0
  %2890 = vmatpush1.msra.mxu0 0.0
  %2891 = vmatprep.subr.mxu0 0.0
  %2892 = vmatpush1.msra.mxu0 0.0
  %2893 = vmatprep.subr.mxu0 0.0
  %2894 = vmatpush1.msra.mxu0 0.0
  %2895 = vmatprep.subr.mxu0 0.0
  %2896 = vmatpush1.msra.mxu0 0.0
  %2897 = vmatprep.mubr.f32.mxu0 0.0
  %2898 = vmatmul.mubr.f32.gmra.mrb[0].mxu0 %v2831
  %v2899 = vpop.f32.mrb[0].mxu0
  %v2900 = vadd.f32 0.0, %v2899
  %v2901 = vpop.f32.mrb[0].mxu0
  %2902 = vdwg.mxu0
  %2903 = vrot.lane.b32.xlu0 %v2095, 56
  %v2904 = vpop.permute.xlu0 %2903
  %v2907 = vsel %vm344, %v2796, 0
  %2909 = vmatprep.subr.mxu0 0.0
  %2910 = vmatpush1.msra.mxu0 %v2904
  %2911 = vmatprep.subr.mxu0 0.0
  %2912 = vmatpush1.msra.mxu0 0.0
  %2913 = vmatprep.subr.mxu0 0.0
  %2914 = vmatpush1.msra.mxu0 0.0
  %2915 = vmatprep.subr.mxu0 0.0
  %2916 = vmatpush1.msra.mxu0 0.0
  %2917 = vmatprep.subr.mxu0 0.0
  %2918 = vmatpush1.msra.mxu0 0.0
  %2919 = vmatprep.subr.mxu0 0.0
  %2920 = vmatpush1.msra.mxu0 0.0
  %2921 = vmatprep.subr.mxu0 0.0
  %2922 = vmatpush1.msra.mxu0 0.0
  %2923 = vmatprep.subr.mxu0 0.0
  %2924 = vmatpush1.msra.mxu0 0.0
  %2925 = vmatprep.subr.mxu0 0.0
  %2926 = vmatpush1.msra.mxu0 0.0
  %2927 = vmatprep.subr.mxu0 0.0
  %2928 = vmatpush1.msra.mxu0 0.0
  %2929 = vmatprep.subr.mxu0 0.0
  %2930 = vmatpush1.msra.mxu0 0.0
  %2931 = vmatprep.subr.mxu0 0.0
  %2932 = vmatpush1.msra.mxu0 0.0
  %2933 = vmatprep.subr.mxu0 0.0
  %2934 = vmatpush1.msra.mxu0 0.0
  %2935 = vmatprep.subr.mxu0 0.0
  %2936 = vmatpush1.msra.mxu0 0.0
  %2937 = vmatprep.subr.mxu0 0.0
  %2938 = vmatpush1.msra.mxu0 0.0
  %2939 = vmatprep.subr.mxu0 0.0
  %2940 = vmatpush1.msra.mxu0 0.0
  %2941 = vmatprep.subr.mxu0 0.0
  %2942 = vmatpush1.msra.mxu0 0.0
  %2943 = vmatprep.subr.mxu0 0.0
  %2944 = vmatpush1.msra.mxu0 0.0
  %2945 = vmatprep.subr.mxu0 0.0
  %2946 = vmatpush1.msra.mxu0 0.0
  %2947 = vmatprep.subr.mxu0 0.0
  %2948 = vmatpush1.msra.mxu0 0.0
  %2949 = vmatprep.subr.mxu0 0.0
  %2950 = vmatpush1.msra.mxu0 0.0
  %2951 = vmatprep.subr.mxu0 0.0
  %2952 = vmatpush1.msra.mxu0 0.0
  %2953 = vmatprep.subr.mxu0 0.0
  %2954 = vmatpush1.msra.mxu0 0.0
  %2955 = vmatprep.subr.mxu0 0.0
  %2956 = vmatpush1.msra.mxu0 0.0
  %2957 = vmatprep.subr.mxu0 0.0
  %2958 = vmatpush1.msra.mxu0 0.0
  %2959 = vmatprep.subr.mxu0 0.0
  %2960 = vmatpush1.msra.mxu0 0.0
  %2961 = vmatprep.subr.mxu0 0.0
  %2962 = vmatpush1.msra.mxu0 0.0
  %2963 = vmatprep.subr.mxu0 0.0
  %2964 = vmatpush1.msra.mxu0 0.0
  %2965 = vmatprep.subr.mxu0 0.0
  %2966 = vmatpush1.msra.mxu0 0.0
  %2967 = vmatprep.subr.mxu0 0.0
  %2968 = vmatpush1.msra.mxu0 0.0
  %2969 = vmatprep.subr.mxu0 0.0
  %2970 = vmatpush1.msra.mxu0 0.0
  %2971 = vmatprep.subr.mxu0 0.0
  %2972 = vmatpush1.msra.mxu0 0.0
  %2973 = vmatprep.mubr.f32.mxu0 0.0
  %2974 = vmatmul.mubr.f32.gmra.mrb[0].mxu0 %v2907
  %v2975 = vpop.f32.mrb[0].mxu0
  %v2976 = vadd.f32 0.0, %v2975
  %v2977 = vpop.f32.mrb[0].mxu0
  %2978 = vdwg.mxu0
  %2979 = vrot.lane.b32.xlu0 %v2095, 48
  %v2980 = vpop.permute.xlu0 %2979
  %v2983 = vsel %vm344, %v2801, 0
  %2985 = vmatprep.subr.mxu0 0.0
  %2986 = vmatpush1.msra.mxu0 %v2980
  %2987 = vmatprep.subr.mxu0 0.0
  %2988 = vmatpush1.msra.mxu0 0.0
  %2989 = vmatprep.subr.mxu0 0.0
  %2990 = vmatpush1.msra.mxu0 0.0
  %2991 = vmatprep.subr.mxu0 0.0
  %2992 = vmatpush1.msra.mxu0 0.0
  %2993 = vmatprep.subr.mxu0 0.0
  %2994 = vmatpush1.msra.mxu0 0.0
  %2995 = vmatprep.subr.mxu0 0.0
  %2996 = vmatpush1.msra.mxu0 0.0
  %2997 = vmatprep.subr.mxu0 0.0
  %2998 = vmatpush1.msra.mxu0 0.0
  %2999 = vmatprep.subr.mxu0 0.0
  %3000 = vmatpush1.msra.mxu0 0.0
  %3001 = vmatprep.subr.mxu0 0.0
  %3002 = vmatpush1.msra.mxu0 0.0
  %3003 = vmatprep.subr.mxu0 0.0
  %3004 = vmatpush1.msra.mxu0 0.0
  %3005 = vmatprep.subr.mxu0 0.0
  %3006 = vmatpush1.msra.mxu0 0.0
  %3007 = vmatprep.subr.mxu0 0.0
  %3008 = vmatpush1.msra.mxu0 0.0
  %3009 = vmatprep.subr.mxu0 0.0
  %3010 = vmatpush1.msra.mxu0 0.0
  %3011 = vmatprep.subr.mxu0 0.0
  %3012 = vmatpush1.msra.mxu0 0.0
  %3013 = vmatprep.subr.mxu0 0.0
  %3014 = vmatpush1.msra.mxu0 0.0
  %3015 = vmatprep.subr.mxu0 0.0
  %3016 = vmatpush1.msra.mxu0 0.0
  %3017 = vmatprep.subr.mxu0 0.0
  %3018 = vmatpush1.msra.mxu0 0.0
  %3019 = vmatprep.subr.mxu0 0.0
  %3020 = vmatpush1.msra.mxu0 0.0
  %3021 = vmatprep.subr.mxu0 0.0
  %3022 = vmatpush1.msra.mxu0 0.0
  %3023 = vmatprep.subr.mxu0 0.0
  %3024 = vmatpush1.msra.mxu0 0.0
  %3025 = vmatprep.subr.mxu0 0.0
  %3026 = vmatpush1.msra.mxu0 0.0
  %3027 = vmatprep.subr.mxu0 0.0
  %3028 = vmatpush1.msra.mxu0 0.0
  %3029 = vmatprep.subr.mxu0 0.0
  %3030 = vmatpush1.msra.mxu0 0.0
  %3031 = vmatprep.subr.mxu0 0.0
  %3032 = vmatpush1.msra.mxu0 0.0
  %3033 = vmatprep.subr.mxu0 0.0
  %3034 = vmatpush1.msra.mxu0 0.0
  %3035 = vmatprep.subr.mxu0 0.0
  %3036 = vmatpush1.msra.mxu0 0.0
  %3037 = vmatprep.subr.mxu0 0.0
  %3038 = vmatpush1.msra.mxu0 0.0
  %3039 = vmatprep.subr.mxu0 0.0
  %3040 = vmatpush1.msra.mxu0 0.0
  %3041 = vmatprep.subr.mxu0 0.0
  %3042 = vmatpush1.msra.mxu0 0.0
  %3043 = vmatprep.subr.mxu0 0.0
  %3044 = vmatpush1.msra.mxu0 0.0
  %3045 = vmatprep.subr.mxu0 0.0
  %3046 = vmatpush1.msra.mxu0 0.0
  %3047 = vmatprep.subr.mxu0 0.0
  %3048 = vmatpush1.msra.mxu0 0.0
  %3049 = vmatprep.mubr.f32.mxu0 0.0
  %3050 = vmatmul.mubr.f32.gmra.mrb[0].mxu0 %v2983
  %v3051 = vpop.f32.mrb[0].mxu0
  %v3052 = vadd.f32 0.0, %v3051
  %v3053 = vpop.f32.mrb[0].mxu0
  %3054 = vdwg.mxu0
  %3055 = vrot.lane.b32.xlu0 %v2095, 40
  %v3056 = vpop.permute.xlu0 %3055
  %v3059 = vsel %vm344, %v2806, 0
  %3061 = vmatprep.subr.mxu0 0.0
  %3062 = vmatpush1.msra.mxu0 %v3056
  %3063 = vmatprep.subr.mxu0 0.0
  %3064 = vmatpush1.msra.mxu0 0.0
  %3065 = vmatprep.subr.mxu0 0.0
  %3066 = vmatpush1.msra.mxu0 0.0
  %3067 = vmatprep.subr.mxu0 0.0
  %3068 = vmatpush1.msra.mxu0 0.0
  %3069 = vmatprep.subr.mxu0 0.0
  %3070 = vmatpush1.msra.mxu0 0.0
  %3071 = vmatprep.subr.mxu0 0.0
  %3072 = vmatpush1.msra.mxu0 0.0
  %3073 = vmatprep.subr.mxu0 0.0
  %3074 = vmatpush1.msra.mxu0 0.0
  %3075 = vmatprep.subr.mxu0 0.0
  %3076 = vmatpush1.msra.mxu0 0.0
  %3077 = vmatprep.subr.mxu0 0.0
  %3078 = vmatpush1.msra.mxu0 0.0
  %3079 = vmatprep.subr.mxu0 0.0
  %3080 = vmatpush1.msra.mxu0 0.0
  %3081 = vmatprep.subr.mxu0 0.0
  %3082 = vmatpush1.msra.mxu0 0.0
  %3083 = vmatprep.subr.mxu0 0.0
  %3084 = vmatpush1.msra.mxu0 0.0
  %3085 = vmatprep.subr.mxu0 0.0
  %3086 = vmatpush1.msra.mxu0 0.0
  %3087 = vmatprep.subr.mxu0 0.0
  %3088 = vmatpush1.msra.mxu0 0.0
  %3089 = vmatprep.subr.mxu0 0.0
  %3090 = vmatpush1.msra.mxu0 0.0
  %3091 = vmatprep.subr.mxu0 0.0
  %3092 = vmatpush1.msra.mxu0 0.0
  %3093 = vmatprep.subr.mxu0 0.0
  %3094 = vmatpush1.msra.mxu0 0.0
  %3095 = vmatprep.subr.mxu0 0.0
  %3096 = vmatpush1.msra.mxu0 0.0
  %3097 = vmatprep.subr.mxu0 0.0
  %3098 = vmatpush1.msra.mxu0 0.0
  %3099 = vmatprep.subr.mxu0 0.0
  %3100 = vmatpush1.msra.mxu0 0.0
  %3101 = vmatprep.subr.mxu0 0.0
  %3102 = vmatpush1.msra.mxu0 0.0
  %3103 = vmatprep.subr.mxu0 0.0
  %3104 = vmatpush1.msra.mxu0 0.0
  %3105 = vmatprep.subr.mxu0 0.0
  %3106 = vmatpush1.msra.mxu0 0.0
  %3107 = vmatprep.subr.mxu0 0.0
  %3108 = vmatpush1.msra.mxu0 0.0
  %3109 = vmatprep.subr.mxu0 0.0
  %3110 = vmatpush1.msra.mxu0 0.0
  %3111 = vmatprep.subr.mxu0 0.0
  %3112 = vmatpush1.msra.mxu0 0.0
  %3113 = vmatprep.subr.mxu0 0.0
  %3114 = vmatpush1.msra.mxu0 0.0
  %3115 = vmatprep.subr.mxu0 0.0
  %3116 = vmatpush1.msra.mxu0 0.0
  %3117 = vmatprep.subr.mxu0 0.0
  %3118 = vmatpush1.msra.mxu0 0.0
  %3119 = vmatprep.subr.mxu0 0.0
  %3120 = vmatpush1.msra.mxu0 0.0
  %3121 = vmatprep.subr.mxu0 0.0
  %3122 = vmatpush1.msra.mxu0 0.0
  %3123 = vmatprep.subr.mxu0 0.0
  %3124 = vmatpush1.msra.mxu0 0.0
  %3125 = vmatprep.mubr.f32.mxu0 0.0
  %3126 = vmatmul.mubr.f32.gmra.mrb[0].mxu0 %v3059
  %v3127 = vpop.f32.mrb[0].mxu0
  %v3128 = vadd.f32 0.0, %v3127
  %v3129 = vpop.f32.mrb[0].mxu0
  %3130 = vdwg.mxu0
  %3131 = vrot.lane.b32.xlu0 %v2098, 64
  %v3132 = vpop.permute.xlu0 %3131
  %v3135 = vsel %vm344, %v2811, 0
  %3137 = vmatprep.subr.mxu0 0.0
  %3138 = vmatpush1.msra.mxu0 %v3132
  %3139 = vmatprep.subr.mxu0 0.0
  %3140 = vmatpush1.msra.mxu0 0.0
  %3141 = vmatprep.subr.mxu0 0.0
  %3142 = vmatpush1.msra.mxu0 0.0
  %3143 = vmatprep.subr.mxu0 0.0
  %3144 = vmatpush1.msra.mxu0 0.0
  %3145 = vmatprep.subr.mxu0 0.0
  %3146 = vmatpush1.msra.mxu0 0.0
  %3147 = vmatprep.subr.mxu0 0.0
  %3148 = vmatpush1.msra.mxu0 0.0
  %3149 = vmatprep.subr.mxu0 0.0
  %3150 = vmatpush1.msra.mxu0 0.0
  %3151 = vmatprep.subr.mxu0 0.0
  %3152 = vmatpush1.msra.mxu0 0.0
  %3153 = vmatprep.subr.mxu0 0.0
  %3154 = vmatpush1.msra.mxu0 0.0
  %3155 = vmatprep.subr.mxu0 0.0
  %3156 = vmatpush1.msra.mxu0 0.0
  %3157 = vmatprep.subr.mxu0 0.0
  %3158 = vmatpush1.msra.mxu0 0.0
  %3159 = vmatprep.subr.mxu0 0.0
  %3160 = vmatpush1.msra.mxu0 0.0
  %3161 = vmatprep.subr.mxu0 0.0
  %3162 = vmatpush1.msra.mxu0 0.0
  %3163 = vmatprep.subr.mxu0 0.0
  %3164 = vmatpush1.msra.mxu0 0.0
  %3165 = vmatprep.subr.mxu0 0.0
  %3166 = vmatpush1.msra.mxu0 0.0
  %3167 = vmatprep.subr.mxu0 0.0
  %3168 = vmatpush1.msra.mxu0 0.0
  %3169 = vmatprep.subr.mxu0 0.0
  %3170 = vmatpush1.msra.mxu0 0.0
  %3171 = vmatprep.subr.mxu0 0.0
  %3172 = vmatpush1.msra.mxu0 0.0
  %3173 = vmatprep.subr.mxu0 0.0
  %3174 = vmatpush1.msra.mxu0 0.0
  %3175 = vmatprep.subr.mxu0 0.0
  %3176 = vmatpush1.msra.mxu0 0.0
  %3177 = vmatprep.subr.mxu0 0.0
  %3178 = vmatpush1.msra.mxu0 0.0
  %3179 = vmatprep.subr.mxu0 0.0
  %3180 = vmatpush1.msra.mxu0 0.0
  %3181 = vmatprep.subr.mxu0 0.0
  %3182 = vmatpush1.msra.mxu0 0.0
  %3183 = vmatprep.subr.mxu0 0.0
  %3184 = vmatpush1.msra.mxu0 0.0
  %3185 = vmatprep.subr.mxu0 0.0
  %3186 = vmatpush1.msra.mxu0 0.0
  %3187 = vmatprep.subr.mxu0 0.0
  %3188 = vmatpush1.msra.mxu0 0.0
  %3189 = vmatprep.subr.mxu0 0.0
  %3190 = vmatpush1.msra.mxu0 0.0
  %3191 = vmatprep.subr.mxu0 0.0
  %3192 = vmatpush1.msra.mxu0 0.0
  %3193 = vmatprep.subr.mxu0 0.0
  %3194 = vmatpush1.msra.mxu0 0.0
  %3195 = vmatprep.subr.mxu0 0.0
  %3196 = vmatpush1.msra.mxu0 0.0
  %3197 = vmatprep.subr.mxu0 0.0
  %3198 = vmatpush1.msra.mxu0 0.0
  %3199 = vmatprep.subr.mxu0 0.0
  %3200 = vmatpush1.msra.mxu0 0.0
  %3201 = vmatprep.mubr.f32.mxu0 0.0
  %3202 = vmatmul.mubr.f32.gmra.mrb[0].mxu0 %v3135
  %v3203 = vpop.f32.mrb[0].mxu0
  %v3204 = vadd.f32 0.0, %v3203
  %v3205 = vpop.f32.mrb[0].mxu0
  %3206 = vdwg.mxu0
  %3207 = vrot.lane.b32.xlu0 %v2098, 56
  %v3208 = vpop.permute.xlu0 %3207
  %v3211 = vsel %vm344, %v2816, 0
  %3213 = vmatprep.subr.mxu0 0.0
  %3214 = vmatpush1.msra.mxu0 %v3208
  %3215 = vmatprep.subr.mxu0 0.0
  %3216 = vmatpush1.msra.mxu0 0.0
  %3217 = vmatprep.subr.mxu0 0.0
  %3218 = vmatpush1.msra.mxu0 0.0
  %3219 = vmatprep.subr.mxu0 0.0
  %3220 = vmatpush1.msra.mxu0 0.0
  %3221 = vmatprep.subr.mxu0 0.0
  %3222 = vmatpush1.msra.mxu0 0.0
  %3223 = vmatprep.subr.mxu0 0.0
  %3224 = vmatpush1.msra.mxu0 0.0
  %3225 = vmatprep.subr.mxu0 0.0
  %3226 = vmatpush1.msra.mxu0 0.0
  %3227 = vmatprep.subr.mxu0 0.0
  %3228 = vmatpush1.msra.mxu0 0.0
  %3229 = vmatprep.subr.mxu0 0.0
  %3230 = vmatpush1.msra.mxu0 0.0
  %3231 = vmatprep.subr.mxu0 0.0
  %3232 = vmatpush1.msra.mxu0 0.0
  %3233 = vmatprep.subr.mxu0 0.0
  %3234 = vmatpush1.msra.mxu0 0.0
  %3235 = vmatprep.subr.mxu0 0.0
  %3236 = vmatpush1.msra.mxu0 0.0
  %3237 = vmatprep.subr.mxu0 0.0
  %3238 = vmatpush1.msra.mxu0 0.0
  %3239 = vmatprep.subr.mxu0 0.0
  %3240 = vmatpush1.msra.mxu0 0.0
  %3241 = vmatprep.subr.mxu0 0.0
  %3242 = vmatpush1.msra.mxu0 0.0
  %3243 = vmatprep.subr.mxu0 0.0
  %3244 = vmatpush1.msra.mxu0 0.0
  %3245 = vmatprep.subr.mxu0 0.0
  %3246 = vmatpush1.msra.mxu0 0.0
  %3247 = vmatprep.subr.mxu0 0.0
  %3248 = vmatpush1.msra.mxu0 0.0
  %3249 = vmatprep.subr.mxu0 0.0
  %3250 = vmatpush1.msra.mxu0 0.0
  %3251 = vmatprep.subr.mxu0 0.0
  %3252 = vmatpush1.msra.mxu0 0.0
  %3253 = vmatprep.subr.mxu0 0.0
  %3254 = vmatpush1.msra.mxu0 0.0
  %3255 = vmatprep.subr.mxu0 0.0
  %3256 = vmatpush1.msra.mxu0 0.0
  %3257 = vmatprep.subr.mxu0 0.0
  %3258 = vmatpush1.msra.mxu0 0.0
  %3259 = vmatprep.subr.mxu0 0.0
  %3260 = vmatpush1.msra.mxu0 0.0
  %3261 = vmatprep.subr.mxu0 0.0
  %3262 = vmatpush1.msra.mxu0 0.0
  %3263 = vmatprep.subr.mxu0 0.0
  %3264 = vmatpush1.msra.mxu0 0.0
  %3265 = vmatprep.subr.mxu0 0.0
  %3266 = vmatpush1.msra.mxu0 0.0
  %3267 = vmatprep.subr.mxu0 0.0
  %3268 = vmatpush1.msra.mxu0 0.0
  %3269 = vmatprep.subr.mxu0 0.0
  %3270 = vmatpush1.msra.mxu0 0.0
  %3271 = vmatprep.subr.mxu0 0.0
  %3272 = vmatpush1.msra.mxu0 0.0
  %3273 = vmatprep.subr.mxu0 0.0
  %3274 = vmatpush1.msra.mxu0 0.0
  %3275 = vmatprep.subr.mxu0 0.0
  %3276 = vmatpush1.msra.mxu0 0.0
  %3277 = vmatprep.mubr.f32.mxu0 0.0
  %3278 = vmatmul.mubr.f32.gmra.mrb[0].mxu0 %v3211
  %v3279 = vpop.f32.mrb[0].mxu0
  %v3280 = vadd.f32 0.0, %v3279
  %v3281 = vpop.f32.mrb[0].mxu0
  %3282 = vdwg.mxu0
  %3283 = vrot.lane.b32.xlu0 %v2098, 48
  %v3284 = vpop.permute.xlu0 %3283
  %v3287 = vsel %vm344, %v2821, 0
  %3289 = vmatprep.subr.mxu0 0.0
  %3290 = vmatpush1.msra.mxu0 %v3284
  %3291 = vmatprep.subr.mxu0 0.0
  %3292 = vmatpush1.msra.mxu0 0.0
  %3293 = vmatprep.subr.mxu0 0.0
  %3294 = vmatpush1.msra.mxu0 0.0
  %3295 = vmatprep.subr.mxu0 0.0
  %3296 = vmatpush1.msra.mxu0 0.0
  %3297 = vmatprep.subr.mxu0 0.0
  %3298 = vmatpush1.msra.mxu0 0.0
  %3299 = vmatprep.subr.mxu0 0.0
  %3300 = vmatpush1.msra.mxu0 0.0
  %3301 = vmatprep.subr.mxu0 0.0
  %3302 = vmatpush1.msra.mxu0 0.0
  %3303 = vmatprep.subr.mxu0 0.0
  %3304 = vmatpush1.msra.mxu0 0.0
  %3305 = vmatprep.subr.mxu0 0.0
  %3306 = vmatpush1.msra.mxu0 0.0
  %3307 = vmatprep.subr.mxu0 0.0
  %3308 = vmatpush1.msra.mxu0 0.0
  %3309 = vmatprep.subr.mxu0 0.0
  %3310 = vmatpush1.msra.mxu0 0.0
  %3311 = vmatprep.subr.mxu0 0.0
  %3312 = vmatpush1.msra.mxu0 0.0
  %3313 = vmatprep.subr.mxu0 0.0
  %3314 = vmatpush1.msra.mxu0 0.0
  %3315 = vmatprep.subr.mxu0 0.0
  %3316 = vmatpush1.msra.mxu0 0.0
  %3317 = vmatprep.subr.mxu0 0.0
  %3318 = vmatpush1.msra.mxu0 0.0
  %3319 = vmatprep.subr.mxu0 0.0
  %3320 = vmatpush1.msra.mxu0 0.0
  %3321 = vmatprep.subr.mxu0 0.0
  %3322 = vmatpush1.msra.mxu0 0.0
  %3323 = vmatprep.subr.mxu0 0.0
  %3324 = vmatpush1.msra.mxu0 0.0
  %3325 = vmatprep.subr.mxu0 0.0
  %3326 = vmatpush1.msra.mxu0 0.0
  %3327 = vmatprep.subr.mxu0 0.0
  %3328 = vmatpush1.msra.mxu0 0.0
  %3329 = vmatprep.subr.mxu0 0.0
  %3330 = vmatpush1.msra.mxu0 0.0
  %3331 = vmatprep.subr.mxu0 0.0
  %3332 = vmatpush1.msra.mxu0 0.0
  %3333 = vmatprep.subr.mxu0 0.0
  %3334 = vmatpush1.msra.mxu0 0.0
  %3335 = vmatprep.subr.mxu0 0.0
  %3336 = vmatpush1.msra.mxu0 0.0
  %3337 = vmatprep.subr.mxu0 0.0
  %3338 = vmatpush1.msra.mxu0 0.0
  %3339 = vmatprep.subr.mxu0 0.0
  %3340 = vmatpush1.msra.mxu0 0.0
  %3341 = vmatprep.subr.mxu0 0.0
  %3342 = vmatpush1.msra.mxu0 0.0
  %3343 = vmatprep.subr.mxu0 0.0
  %3344 = vmatpush1.msra.mxu0 0.0
  %3345 = vmatprep.subr.mxu0 0.0
  %3346 = vmatpush1.msra.mxu0 0.0
  %3347 = vmatprep.subr.mxu0 0.0
  %3348 = vmatpush1.msra.mxu0 0.0
  %3349 = vmatprep.subr.mxu0 0.0
  %3350 = vmatpush1.msra.mxu0 0.0
  %3351 = vmatprep.subr.mxu0 0.0
  %3352 = vmatpush1.msra.mxu0 0.0
  %3353 = vmatprep.mubr.f32.mxu0 0.0
  %3354 = vmatmul.mubr.f32.gmra.mrb[0].mxu0 %v3287
  %v3355 = vpop.f32.mrb[0].mxu0
  %v3356 = vadd.f32 0.0, %v3355
  %v3357 = vpop.f32.mrb[0].mxu0
  %3358 = vdwg.mxu0
  %3359 = vrot.lane.b32.xlu0 %v2098, 40
  %v3360 = vpop.permute.xlu0 %3359
  %v3363 = vsel %vm344, %v2826, 0
  %3365 = vmatprep.subr.mxu0 0.0
  %3366 = vmatpush1.msra.mxu0 %v3360
  %3367 = vmatprep.subr.mxu0 0.0
  %3368 = vmatpush1.msra.mxu0 0.0
  %3369 = vmatprep.subr.mxu0 0.0
  %3370 = vmatpush1.msra.mxu0 0.0
  %3371 = vmatprep.subr.mxu0 0.0
  %3372 = vmatpush1.msra.mxu0 0.0
  %3373 = vmatprep.subr.mxu0 0.0
  %3374 = vmatpush1.msra.mxu0 0.0
  %3375 = vmatprep.subr.mxu0 0.0
  %3376 = vmatpush1.msra.mxu0 0.0
  %3377 = vmatprep.subr.mxu0 0.0
  %3378 = vmatpush1.msra.mxu0 0.0
  %3379 = vmatprep.subr.mxu0 0.0
  %3380 = vmatpush1.msra.mxu0 0.0
  %3381 = vmatprep.subr.mxu0 0.0
  %3382 = vmatpush1.msra.mxu0 0.0
  %3383 = vmatprep.subr.mxu0 0.0
  %3384 = vmatpush1.msra.mxu0 0.0
  %3385 = vmatprep.subr.mxu0 0.0
  %3386 = vmatpush1.msra.mxu0 0.0
  %3387 = vmatprep.subr.mxu0 0.0
  %3388 = vmatpush1.msra.mxu0 0.0
  %3389 = vmatprep.subr.mxu0 0.0
  %3390 = vmatpush1.msra.mxu0 0.0
  %3391 = vmatprep.subr.mxu0 0.0
  %3392 = vmatpush1.msra.mxu0 0.0
  %3393 = vmatprep.subr.mxu0 0.0
  %3394 = vmatpush1.msra.mxu0 0.0
  %3395 = vmatprep.subr.mxu0 0.0
  %3396 = vmatpush1.msra.mxu0 0.0
  %3397 = vmatprep.subr.mxu0 0.0
  %3398 = vmatpush1.msra.mxu0 0.0
  %3399 = vmatprep.subr.mxu0 0.0
  %3400 = vmatpush1.msra.mxu0 0.0
  %3401 = vmatprep.subr.mxu0 0.0
  %3402 = vmatpush1.msra.mxu0 0.0
  %3403 = vmatprep.subr.mxu0 0.0
  %3404 = vmatpush1.msra.mxu0 0.0
  %3405 = vmatprep.subr.mxu0 0.0
  %3406 = vmatpush1.msra.mxu0 0.0
  %3407 = vmatprep.subr.mxu0 0.0
  %3408 = vmatpush1.msra.mxu0 0.0
  %3409 = vmatprep.subr.mxu0 0.0
  %3410 = vmatpush1.msra.mxu0 0.0
  %3411 = vmatprep.subr.mxu0 0.0
  %3412 = vmatpush1.msra.mxu0 0.0
  %3413 = vmatprep.subr.mxu0 0.0
  %3414 = vmatpush1.msra.mxu0 0.0
  %3415 = vmatprep.subr.mxu0 0.0
  %3416 = vmatpush1.msra.mxu0 0.0
  %3417 = vmatprep.subr.mxu0 0.0
  %3418 = vmatpush1.msra.mxu0 0.0
  %3419 = vmatprep.subr.mxu0 0.0
  %3420 = vmatpush1.msra.mxu0 0.0
  %3421 = vmatprep.subr.mxu0 0.0
  %3422 = vmatpush1.msra.mxu0 0.0
  %3423 = vmatprep.subr.mxu0 0.0
  %3424 = vmatpush1.msra.mxu0 0.0
  %3425 = vmatprep.subr.mxu0 0.0
  %3426 = vmatpush1.msra.mxu0 0.0
  %3427 = vmatprep.subr.mxu0 0.0
  %3428 = vmatpush1.msra.mxu0 0.0
  %3429 = vmatprep.mubr.f32.mxu0 0.0
  %3430 = vmatmul.mubr.f32.gmra.mrb[0].mxu0 %v3363
  %v3431 = vpop.f32.mrb[0].mxu0
  %v3432 = vadd.f32 0.0, %v3431
  %v3433 = vpop.f32.mrb[0].mxu0
  %3434 = vdwg.mxu0
  %3436 = vrot.lane.b32.xlu0 %v2976, 8
  %v3437 = vpop.permute.xlu0 %3436
  %3440 = vrot.lane.b32.xlu0 %v3052, 16
  %v3441 = vpop.permute.xlu0 %3440
  %3444 = vrot.lane.b32.xlu0 %v3128, 24
  %v3445 = vpop.permute.xlu0 %3444
  %v3447 = vsel %vm344, %v2900, %v3437
  %v3448 = vsel %vm1695, %v3447, %v3441
  %v3449 = vsel %vm1697, %v3448, %v3445
  %3451 = vrot.lane.b32.xlu0 %v3280, 8
  %v3452 = vpop.permute.xlu0 %3451
  %3455 = vrot.lane.b32.xlu0 %v3356, 16
  %v3456 = vpop.permute.xlu0 %3455
  %3459 = vrot.lane.b32.xlu0 %v3432, 24
  %v3460 = vpop.permute.xlu0 %3459
  %v3462 = vsel %vm344, %v3204, %v3452
  %v3463 = vsel %vm1695, %v3462, %v3456
  %v3464 = vsel %vm1697, %v3463, %v3460
  %v3465 = vpack.c.bf16 %v3464, %v3449
  %s3466 = scalar_lea.vmem %s7, 16
  %v3467 = vld [vmem:[%s3466] sm:$0xf]
  %v3468 = vld [vmem:[%s3466 + $0x4] sm:$0xf]
  %v3469 = vld [vmem:[%s3466 + $0x8] sm:$0xf]
  %v3470 = vld [vmem:[%s3466 + $0xc] sm:$0xf]
  %v3475 = vunpack.c.l.b16 %v3467
  %v3476 = vunpack.c.l.b16 %v3468
  %v3477 = vunpack.c.l.b16 %v3469
  %v3478 = vunpack.c.l.b16 %v3470
  %v3479 = vpack.c.b16 %v3476, %v3475
  %v3480 = vpack.c.b16 %v3478, %v3477
  %v3484 = vsel %vm233, %v3465, 0
  %3486 = vmatprep.subr.bf16.mxu0 0
  %3487 = vmatpush1.bf16.msra.mxu0 %v3479
  %3488 = vmatprep.subr.bf16.mxu0 0
  %3489 = vmatpush1.bf16.msra.mxu0 %v3480
  %3490 = vmatprep.subr.bf16.mxu0 0
  %3491 = vmatpush1.bf16.msra.mxu0 0
  %3492 = vmatprep.subr.bf16.mxu0 0
  %3493 = vmatpush1.bf16.msra.mxu0 0
  %3494 = vmatprep.subr.bf16.mxu0 0
  %3495 = vmatpush1.bf16.msra.mxu0 0
  %3496 = vmatprep.subr.bf16.mxu0 0
  %3497 = vmatpush1.bf16.msra.mxu0 0
  %3498 = vmatprep.subr.bf16.mxu0 0
  %3499 = vmatpush1.bf16.msra.mxu0 0
  %3500 = vmatprep.subr.bf16.mxu0 0
  %3501 = vmatpush1.bf16.msra.mxu0 0
  %3502 = vmatprep.subr.bf16.mxu0 0
  %3503 = vmatpush1.bf16.msra.mxu0 0
  %3504 = vmatprep.subr.bf16.mxu0 0
  %3505 = vmatpush1.bf16.msra.mxu0 0
  %3506 = vmatprep.subr.bf16.mxu0 0
  %3507 = vmatpush1.bf16.msra.mxu0 0
  %3508 = vmatprep.subr.bf16.mxu0 0
  %3509 = vmatpush1.bf16.msra.mxu0 0
  %3510 = vmatprep.subr.bf16.mxu0 0
  %3511 = vmatpush1.bf16.msra.mxu0 0
  %3512 = vmatprep.subr.bf16.mxu0 0
  %3513 = vmatpush1.bf16.msra.mxu0 0
  %3514 = vmatprep.subr.bf16.mxu0 0
  %3515 = vmatpush1.bf16.msra.mxu0 0
  %3516 = vmatprep.subr.bf16.mxu0 0
  %3517 = vmatpush1.bf16.msra.mxu0 0
  %3518 = vmatprep.mubr.bf16.mxu0 0
  %3519 = vmatmul.mubr.bf16.gmra.mrb[0].mxu0 %v3484
  %v3520 = vpop.f32.mrb[0].mxu0
  %v3521 = vadd.f32 0.0, %v3520
  %v3522 = vpop.f32.mrb[0].mxu0
  %v3523 = vpop.f32.mrb[0].mxu0
  %v3524 = vadd.f32 0.0, %v3523
  %v3525 = vpop.f32.mrb[0].mxu0
  %3526 = vdwg.mxu0
  %v3527 = vadd.f32 %v1989, %v3521
  %v3528 = vadd.f32 %v1990, %v3524
  %s3529 = scalar_lea.vmem %s8, 1
  %v3530 = vld [vmem:[%s3529] sm:$0x1]
  %v3532 = vlaneseq
  %v3533 = vshrl.u32 %v3532, 7
  %v3534 = vsub.s32 0, %v3533
  %v3535 = vrot.slane %v3530, %v3534
  %v3537 = vadd.f32 %v3527, %v3535
  %v3538 = vadd.f32 %v3528, %v3535
  %v3539 = vsel %vm233, %v3537, 0.0
  %3540 = vadd.xlane.f32.xlu0 %v3539
  %v3541 = vpop.xlane.xlu0 %3540
  %v3542 = vsel %vm233, %v3538, 0.0
  %3543 = vadd.xlane.f32.xlu0 %v3542
  %v3544 = vpop.xlane.xlu0 %3543
  %v3545 = vmul.f32 %v3541, %v240
  %v3546 = vmul.f32 %v3544, %v240
  %v3547 = vsub.f32 %v3537, %v3545
  %v3548 = vsub.f32 %v3538, %v3546
  %v3549 = vmul.f32 %v3547, %v3547
  %v3550 = vmul.f32 %v3548, %v3548
  %v3551 = vsel %vm233, %v3549, 0.0
  %3552 = vadd.xlane.f32.xlu0 %v3551
  %v3553 = vpop.xlane.xlu0 %3552
  %v3554 = vsel %vm233, %v3550, 0.0
  %3555 = vadd.xlane.f32.xlu0 %v3554
  %v3556 = vpop.xlane.xlu0 %3555
  %v3557 = vmul.f32 %v3553, %v240
  %v3558 = vmul.f32 %v3556, %v240
  %v3559 = vadd.f32 %v3557, 1e-12
  %v3560 = vadd.f32 %v3558, 1e-12
  %v3561 = vrsqrt.pop %v3559
  %v3562 = vrsqrt.pop %v3560
  %v3563 = vmul.f32 %v3547, %v3561
  %v3564 = vmul.f32 %v3548, %v3562
  %v3565 = vlaneseq
  %v3566 = vshrl.u32 %v3565, 7
  %v3567 = vsub.s32 2, %v3566
  %v3568 = vrot.slane %v1992, %v3567
  %v3569 = vmul.f32 %v3563, %v3568
  %v3570 = vmul.f32 %v3564, %v3568
  %v3571 = vlaneseq
  %v3572 = vshrl.u32 %v3571, 7
  %v3573 = vsub.s32 3, %v3572
  %v3574 = vrot.slane %v1992, %v3573
  %v3575 = vadd.f32 %v3569, %v3574
  %v3576 = vadd.f32 %v3570, %v3574
  %v3577 = vpack.c.bf16 %v3576, %v3575
  %s3578 = scalar_lea.vmem %s9, 16
  %v3579 = vld [vmem:[%s3578] sm:$0xf]
  %v3580 = vld [vmem:[%s3578 + $0x4] sm:$0xf]
  %v3581 = vld [vmem:[%s3578 + $0x8] sm:$0xf]
  %v3582 = vld [vmem:[%s3578 + $0xc] sm:$0xf]
  %s3583 = scalar_lea.vmem %s10, 1
  %v3584 = vld [vmem:[%s3583] sm:$0x1]
  %v3586 = vlaneseq
  %v3587 = vshrl.u32 %v3586, 7
  %v3588 = vsub.s32 0, %v3587
  %v3589 = vrot.slane %v3584, %v3588
  %v3595 = vunpack.c.l.b16 %v3579
  %v3596 = vunpack.c.l.b16 %v3580
  %v3597 = vunpack.c.l.b16 %v3581
  %v3598 = vunpack.c.l.b16 %v3582
  %v3599 = vpack.c.b16 %v3596, %v3595
  %v3600 = vpack.c.b16 %v3598, %v3597
  %v3604 = vsel %vm233, %v3577, 0
  %3606 = vmatprep.subr.bf16.mxu0 0
  %3607 = vmatpush1.bf16.msra.mxu0 %v3599
  %3608 = vmatprep.subr.bf16.mxu0 0
  %3609 = vmatpush1.bf16.msra.mxu0 %v3600
  %3610 = vmatprep.subr.bf16.mxu0 0
  %3611 = vmatpush1.bf16.msra.mxu0 0
  %3612 = vmatprep.subr.bf16.mxu0 0
  %3613 = vmatpush1.bf16.msra.mxu0 0
  %3614 = vmatprep.subr.bf16.mxu0 0
  %3615 = vmatpush1.bf16.msra.mxu0 0
  %3616 = vmatprep.subr.bf16.mxu0 0
  %3617 = vmatpush1.bf16.msra.mxu0 0
  %3618 = vmatprep.subr.bf16.mxu0 0
  %3619 = vmatpush1.bf16.msra.mxu0 0
  %3620 = vmatprep.subr.bf16.mxu0 0
  %3621 = vmatpush1.bf16.msra.mxu0 0
  %3622 = vmatprep.subr.bf16.mxu0 0
  %3623 = vmatpush1.bf16.msra.mxu0 0
  %3624 = vmatprep.subr.bf16.mxu0 0
  %3625 = vmatpush1.bf16.msra.mxu0 0
  %3626 = vmatprep.subr.bf16.mxu0 0
  %3627 = vmatpush1.bf16.msra.mxu0 0
  %3628 = vmatprep.subr.bf16.mxu0 0
  %3629 = vmatpush1.bf16.msra.mxu0 0
  %3630 = vmatprep.subr.bf16.mxu0 0
  %3631 = vmatpush1.bf16.msra.mxu0 0
  %3632 = vmatprep.subr.bf16.mxu0 0
  %3633 = vmatpush1.bf16.msra.mxu0 0
  %3634 = vmatprep.subr.bf16.mxu0 0
  %3635 = vmatpush1.bf16.msra.mxu0 0
  %3636 = vmatprep.subr.bf16.mxu0 0
  %3637 = vmatpush1.bf16.msra.mxu0 0
  %3638 = vmatprep.mubr.bf16.mxu0 0
  %3639 = vmatmul.mubr.bf16.gmra.mrb[0].mxu0 %v3604
  %v3640 = vpop.f32.mrb[0].mxu0
  %v3641 = vadd.f32 %v3589, %v3640
  %v3642 = vpop.f32.mrb[0].mxu0
  %v3643 = vpop.f32.mrb[0].mxu0
  %v3644 = vadd.f32 %v3589, %v3643
  %v3645 = vpop.f32.mrb[0].mxu0
  %3646 = vdwg.mxu0
  %v3647 = vmul.f32 %v3641, 0.5
  %v3648 = vmul.f32 %v3644, 0.5
  %v3649 = vmul.f32 %v3641, 0.70710677
  %v3650 = vmul.f32 %v3644, 0.70710677
  %v3651 = verf.f32.pop %v3649
  %v3652 = verf.f32.pop %v3650
  %v3653 = vadd.f32 %v3651, 1.0
  %v3654 = vadd.f32 %v3652, 1.0
  %v3655 = vmul.f32 %v3647, %v3653
  %v3656 = vmul.f32 %v3648, %v3654
  %v3657 = vpack.c.bf16 %v3656, %v3655
  %s3658 = scalar_lea.vmem %s11, 32
  %v3659 = vld [vmem:[%s3658] sm:$0xf]
  %v3660 = vld [vmem:[%s3658 + $0x4] sm:$0xf]
  %v3661 = vld [vmem:[%s3658 + $0x8] sm:$0xf]
  %v3662 = vld [vmem:[%s3658 + $0xc] sm:$0xf]
  %v3663 = vld [vmem:[%s3658 + $0x10] sm:$0xf]
  %v3664 = vld [vmem:[%s3658 + $0x14] sm:$0xf]
  %v3665 = vld [vmem:[%s3658 + $0x18] sm:$0xf]
  %v3666 = vld [vmem:[%s3658 + $0x1c] sm:$0xf]
  %v3675 = vunpack.c.l.b16 %v3659
  %v3676 = vunpack.c.l.b16 %v3660
  %v3677 = vunpack.c.l.b16 %v3661
  %v3678 = vunpack.c.l.b16 %v3662
  %v3679 = vunpack.c.l.b16 %v3663
  %v3680 = vunpack.c.l.b16 %v3664
  %v3681 = vunpack.c.l.b16 %v3665
  %v3682 = vunpack.c.l.b16 %v3666
  %v3683 = vpack.c.b16 %v3676, %v3675
  %v3684 = vpack.c.b16 %v3678, %v3677
  %v3685 = vpack.c.b16 %v3680, %v3679
  %v3686 = vpack.c.b16 %v3682, %v3681
  %v3692 = vsel %vm1935, %v3657, 0
  %3694 = vmatprep.subr.bf16.mxu0 0
  %3695 = vmatpush1.bf16.msra.mxu0 %v3683
  %3696 = vmatprep.subr.bf16.mxu0 0
  %3697 = vmatpush1.bf16.msra.mxu0 %v3684
  %3698 = vmatprep.subr.bf16.mxu0 0
  %3699 = vmatpush1.bf16.msra.mxu0 %v3685
  %3700 = vmatprep.subr.bf16.mxu0 0
  %3701 = vmatpush1.bf16.msra.mxu0 %v3686
  %3702 = vmatprep.subr.bf16.mxu0 0
  %3703 = vmatpush1.bf16.msra.mxu0 0
  %3704 = vmatprep.subr.bf16.mxu0 0
  %3705 = vmatpush1.bf16.msra.mxu0 0
  %3706 = vmatprep.subr.bf16.mxu0 0
  %3707 = vmatpush1.bf16.msra.mxu0 0
  %3708 = vmatprep.subr.bf16.mxu0 0
  %3709 = vmatpush1.bf16.msra.mxu0 0
  %3710 = vmatprep.subr.bf16.mxu0 0
  %3711 = vmatpush1.bf16.msra.mxu0 0
  %3712 = vmatprep.subr.bf16.mxu0 0
  %3713 = vmatpush1.bf16.msra.mxu0 0
  %3714 = vmatprep.subr.bf16.mxu0 0
  %3715 = vmatpush1.bf16.msra.mxu0 0
  %3716 = vmatprep.subr.bf16.mxu0 0
  %3717 = vmatpush1.bf16.msra.mxu0 0
  %3718 = vmatprep.subr.bf16.mxu0 0
  %3719 = vmatpush1.bf16.msra.mxu0 0
  %3720 = vmatprep.subr.bf16.mxu0 0
  %3721 = vmatpush1.bf16.msra.mxu0 0
  %3722 = vmatprep.subr.bf16.mxu0 0
  %3723 = vmatpush1.bf16.msra.mxu0 0
  %3724 = vmatprep.subr.bf16.mxu0 0
  %3725 = vmatpush1.bf16.msra.mxu0 0
  %3726 = vmatprep.mubr.bf16.mxu0 0
  %3727 = vmatmul.mubr.bf16.gmra.mrb[0].mxu0 %v3692
  %v3728 = vpop.f32.mrb[0].mxu0
  %v3729 = vadd.f32 0.0, %v3728
  %v3730 = vpop.f32.mrb[0].mxu0
  %v3731 = vpop.f32.mrb[0].mxu0
  %v3732 = vadd.f32 0.0, %v3731
  %v3733 = vpop.f32.mrb[0].mxu0
  %3734 = vdwg.mxu0
  %v3735 = vadd.f32 %v3537, %v3729
  %v3736 = vadd.f32 %v3538, %v3732
  %s3737 = scalar_lea.vmem %s12, 1
  %v3738 = vld [vmem:[%s3737] sm:$0x1]
  %v3740 = vlaneseq
  %v3741 = vshrl.u32 %v3740, 7
  %v3742 = vsub.s32 0, %v3741
  %v3743 = vrot.slane %v3738, %v3742
  %v3745 = vadd.f32 %v3735, %v3743
  %v3746 = vadd.f32 %v3736, %v3743
  %v3747 = vld [vmem:[%s13] sm:$0xf]
  %v3748 = vsel %vm233, %v3745, 0.0
  %3749 = vadd.xlane.f32.xlu0 %v3748
  %v3750 = vpop.xlane.xlu0 %3749
  %v3751 = vsel %vm233, %v3746, 0.0
  %3752 = vadd.xlane.f32.xlu0 %v3751
  %v3753 = vpop.xlane.xlu0 %3752
  %v3754 = vmul.f32 %v3750, %v240
  %v3755 = vmul.f32 %v3753, %v240
  %v3756 = vsub.f32 %v3745, %v3754
  %v3757 = vsub.f32 %v3746, %v3755
  %v3758 = vmul.f32 %v3756, %v3756
  %v3759 = vmul.f32 %v3757, %v3757
  %v3760 = vsel %vm233, %v3758, 0.0
  %3761 = vadd.xlane.f32.xlu0 %v3760
  %v3762 = vpop.xlane.xlu0 %3761
  %v3763 = vsel %vm233, %v3759, 0.0
  %3764 = vadd.xlane.f32.xlu0 %v3763
  %v3765 = vpop.xlane.xlu0 %3764
  %v3766 = vmul.f32 %v3762, %v240
  %v3767 = vmul.f32 %v3765, %v240
  %v3768 = vadd.f32 %v3766, 1e-12
  %v3769 = vadd.f32 %v3767, 1e-12
  %v3770 = vrsqrt.pop %v3768
  %v3771 = vrsqrt.pop %v3769
  %v3772 = vmul.f32 %v3756, %v3770
  %v3773 = vmul.f32 %v3757, %v3771
  %v3774 = vlaneseq
  %v3775 = vshrl.u32 %v3774, 7
  %v3776 = vsub.s32 0, %v3775
  %v3777 = vrot.slane %v3747, %v3776
  %v3778 = vmul.f32 %v3772, %v3777
  %v3779 = vmul.f32 %v3773, %v3777
  %v3780 = vlaneseq
  %v3781 = vshrl.u32 %v3780, 7
  %v3782 = vsub.s32 1, %v3781
  %v3783 = vrot.slane %v3747, %v3782
  %v3784 = vadd.f32 %v3778, %v3783
  %v3785 = vadd.f32 %v3779, %v3783
  %v3786 = vsel %vm233, %v3784, 0.0
  %3787 = vadd.xlane.f32.xlu0 %v3786
  %v3788 = vpop.xlane.xlu0 %3787
  %v3789 = vsel %vm233, %v3785, 0.0
  %3790 = vadd.xlane.f32.xlu0 %v3789
  %v3791 = vpop.xlane.xlu0 %3790
  %v3792 = vmul.f32 %v3788, %v240
  %v3793 = vmul.f32 %v3791, %v240
  %v3794 = vsub.f32 %v3784, %v3792
  %v3795 = vsub.f32 %v3785, %v3793
  %v3796 = vmul.f32 %v3794, %v3794
  %v3797 = vmul.f32 %v3795, %v3795
  %v3798 = vsel %vm233, %v3796, 0.0
  %3799 = vadd.xlane.f32.xlu0 %v3798
  %v3800 = vpop.xlane.xlu0 %3799
  %v3801 = vsel %vm233, %v3797, 0.0
  %3802 = vadd.xlane.f32.xlu0 %v3801
  %v3803 = vpop.xlane.xlu0 %3802
  %v3804 = vmul.f32 %v3800, %v240
  %v3805 = vmul.f32 %v3803, %v240
  %v3806 = vadd.f32 %v3804, 1e-05
  %v3807 = vadd.f32 %v3805, 1e-05
  %v3808 = vrsqrt.pop %v3806
  %v3809 = vrsqrt.pop %v3807
  %v3810 = vmul.f32 %v3794, %v3808
  %v3811 = vmul.f32 %v3795, %v3809
  %v3812 = vlaneseq
  %v3813 = vshrl.u32 %v3812, 7
  %v3814 = vsub.s32 2, %v3813
  %v3815 = vrot.slane %v3747, %v3814
  %v3816 = vmul.f32 %v3810, %v3815
  %v3817 = vmul.f32 %v3811, %v3815
  %v3818 = vlaneseq
  %v3819 = vshrl.u32 %v3818, 7
  %v3820 = vsub.s32 3, %v3819
  %v3821 = vrot.slane %v3747, %v3820
  %v3822 = vadd.f32 %v3816, %v3821
  %v3823 = vadd.f32 %v3817, %v3821
  %v3824 = vld [vmem:[%s14] sm:$0xff]
  %v3825 = vld [vmem:[%s14 + $0x8] sm:$0xff]
  %v3826 = vld [vmem:[%s14 + $0x10] sm:$0xff]
  %v3827 = vld [vmem:[%s14 + $0x18] sm:$0xff]
  %v3828 = vld [vmem:[%s15] sm:$0x1]
  %v3830 = vlaneseq
  %v3831 = vshrl.u32 %v3830, 7
  %v3832 = vsub.s32 0, %v3831
  %v3833 = vrot.slane %v3828, %v3832
  %v3836 = vsel %vm233, %v3822, 0
  %v3839 = vsel %vm233, %v3823, 0
  %3841 = vmatprep.subr.mxu0 0.0
  %3842 = vmatpush1.msra.mxu0 %v3824
  %3843 = vmatprep.subr.mxu0 0.0
  %3844 = vmatpush1.msra.mxu0 %v3825
  %3845 = vmatprep.subr.mxu0 0.0
  %3846 = vmatpush1.msra.mxu0 %v3826
  %3847 = vmatprep.subr.mxu0 0.0
  %3848 = vmatpush1.msra.mxu0 %v3827
  %3849 = vmatprep.subr.mxu0 0.0
  %3850 = vmatpush1.msra.mxu0 0.0
  %3851 = vmatprep.subr.mxu0 0.0
  %3852 = vmatpush1.msra.mxu0 0.0
  %3853 = vmatprep.subr.mxu0 0.0
  %3854 = vmatpush1.msra.mxu0 0.0
  %3855 = vmatprep.subr.mxu0 0.0
  %3856 = vmatpush1.msra.mxu0 0.0
  %3857 = vmatprep.subr.mxu0 0.0
  %3858 = vmatpush1.msra.mxu0 0.0
  %3859 = vmatprep.subr.mxu0 0.0
  %3860 = vmatpush1.msra.mxu0 0.0
  %3861 = vmatprep.subr.mxu0 0.0
  %3862 = vmatpush1.msra.mxu0 0.0
  %3863 = vmatprep.subr.mxu0 0.0
  %3864 = vmatpush1.msra.mxu0 0.0
  %3865 = vmatprep.subr.mxu0 0.0
  %3866 = vmatpush1.msra.mxu0 0.0
  %3867 = vmatprep.subr.mxu0 0.0
  %3868 = vmatpush1.msra.mxu0 0.0
  %3869 = vmatprep.subr.mxu0 0.0
  %3870 = vmatpush1.msra.mxu0 0.0
  %3871 = vmatprep.subr.mxu0 0.0
  %3872 = vmatpush1.msra.mxu0 0.0
  %3873 = vmatprep.subr.mxu0 0.0
  %3874 = vmatpush1.msra.mxu0 0.0
  %3875 = vmatprep.subr.mxu0 0.0
  %3876 = vmatpush1.msra.mxu0 0.0
  %3877 = vmatprep.subr.mxu0 0.0
  %3878 = vmatpush1.msra.mxu0 0.0
  %3879 = vmatprep.subr.mxu0 0.0
  %3880 = vmatpush1.msra.mxu0 0.0
  %3881 = vmatprep.subr.mxu0 0.0
  %3882 = vmatpush1.msra.mxu0 0.0
  %3883 = vmatprep.subr.mxu0 0.0
  %3884 = vmatpush1.msra.mxu0 0.0
  %3885 = vmatprep.subr.mxu0 0.0
  %3886 = vmatpush1.msra.mxu0 0.0
  %3887 = vmatprep.subr.mxu0 0.0
  %3888 = vmatpush1.msra.mxu0 0.0
  %3889 = vmatprep.subr.mxu0 0.0
  %3890 = vmatpush1.msra.mxu0 0.0
  %3891 = vmatprep.subr.mxu0 0.0
  %3892 = vmatpush1.msra.mxu0 0.0
  %3893 = vmatprep.subr.mxu0 0.0
  %3894 = vmatpush1.msra.mxu0 0.0
  %3895 = vmatprep.subr.mxu0 0.0
  %3896 = vmatpush1.msra.mxu0 0.0
  %3897 = vmatprep.subr.mxu0 0.0
  %3898 = vmatpush1.msra.mxu0 0.0
  %3899 = vmatprep.subr.mxu0 0.0
  %3900 = vmatpush1.msra.mxu0 0.0
  %3901 = vmatprep.subr.mxu0 0.0
  %3902 = vmatpush1.msra.mxu0 0.0
  %3903 = vmatprep.subr.mxu0 0.0
  %3904 = vmatpush1.msra.mxu0 0.0
  %3905 = vmatprep.mubr.f32.mxu0 0.0
  %3906 = vmatmul.mubr.f32.gmra.mrb[0].mxu0 %v3836
  %v3907 = vpop.f32.mrb[0].mxu0
  %v3908 = vadd.f32 %v3833, %v3907
  %v3909 = vpop.f32.mrb[0].mxu0
  %3910 = vmatprep.mubr.f32.mxu0 0.0
  %3911 = vmatmul.mubr.f32.gmra.mrb[0].mxu0 %v3839
  %v3912 = vpop.f32.mrb[0].mxu0
  %v3913 = vadd.f32 %v3833, %v3912
  %v3914 = vpop.f32.mrb[0].mxu0
  %3915 = vdwg.mxu0
  %vm3916 = vcmask 39936
  %3917 = vst.msk [vmem:[%s16] sm:$0xff] %vm3916, %v3908
  %3918 = vst.msk [vmem:[%s16 + $0x8] sm:$0xff] %vm3916, %v3913
  // Predicated region
  $region66: #{tomato_vit_forward.1} parent=0 // pred_check
    _
  $region67: #{tomato_vit_forward.1} parent=0 // pred_check_branch
    %3920 = sbr.rel (0) target = $region69
  $region68: #{tomato_vit_forward.1} parent=0 // pred_region
    _
  $region69: #{tomato_vit_forward.1} parent=0 // pred_fallthru
    _
  // Predicated region
  $region70: #{tomato_vit_forward.1} parent=0 // pred_check
    _
  $region71: #{tomato_vit_forward.1} parent=0 // pred_check_branch
    %3922 = sbr.rel (0) target = $region73
  $region72: #{tomato_vit_forward.1} parent=0 // pred_region
    _
  $region73: #{tomato_vit_forward.1} parent=0 // pred_fallthru
    _

</llo_original>
